<compile_context>
chip_gen: v7x
topology: tpu7x:2x2x1
jax: 0.10.0
libtpu: 0.0.40
codegen_flags: <defaults>
</compile_context>

<pallas_src>
import functools

import jax
import jax.numpy as jnp
from jax.experimental import pallas as pl
from jax.experimental.pallas import tpu as pltpu

IN_FEATURES = 28 * 28          # 784
K_PAD = 896                    # 784 rounded up to a multiple of 128 (lane-dense)


def _round_up(n, m):
    return ((n + m - 1) // m) * m


def _cdiv(a, b):
    return -(-a // b)


# ---------------------------------------------------------------------------
# Kernel: four chained Linear layers on one batch tile.
# Weights/biases are VMEM-resident blocks (constant index_map); the batch is
# tiled over the grid.  bf16 operands, f32 MXU accumulation, bf16 output store.
# ---------------------------------------------------------------------------
def mlp_kernel(x_ref,
               w1_ref, b1_ref,
               w2_ref, b2_ref,
               w3_ref, b3_ref,
               w4_ref, b4_ref,
               o_ref):
    h = b1_ref[...] + jnp.dot(x_ref[...], w1_ref[...],
                              preferred_element_type=jnp.float32)
    h = b2_ref[...] + jnp.dot(h.astype(w2_ref.dtype), w2_ref[...],
                              preferred_element_type=jnp.float32)
    h = b3_ref[...] + jnp.dot(h.astype(w3_ref.dtype), w3_ref[...],
                              preferred_element_type=jnp.float32)
    h = b4_ref[...] + jnp.dot(h.astype(w4_ref.dtype), w4_ref[...],
                              preferred_element_type=jnp.float32)
    o_ref[...] = h.astype(o_ref.dtype)


def init_params(key, hidden_size):
    """Deterministic init mimicking nn.Linear's U(-1/sqrt(fan_in), 1/sqrt(fan_in)).
    Weights stored already transposed: (in_features, out_features), f32."""
    dims = [(IN_FEATURES, hidden_size),
            (hidden_size, hidden_size),
            (hidden_size, hidden_size),
            (hidden_size, hidden_size)]
    params = {}
    for i, (fan_in, fan_out) in enumerate(dims, start=1):
        key, kw, kb = jax.random.split(key, 3)
        bound = 1.0 / jnp.sqrt(jnp.float32(fan_in))
        params[f"w{i}"] = jax.random.uniform(
            kw, (fan_in, fan_out), jnp.float32, -bound, bound)
        params[f"b{i}"] = jax.random.uniform(
            kb, (1, fan_out), jnp.float32, -bound, bound)
    return params


def prepare_params(params, hidden, compute_dtype=jnp.bfloat16):
    """Zero-pad to lane-dense shapes and cast weights to the MXU compute dtype.

    w1: (784, H)  -> (896, H_pad)    bf16
    w2..4: (H, H) -> (H_pad, H_pad)  bf16
    b1..4: (1, H) -> (1, H_pad)      f32
    Zero padding keeps the padded matmul chain bit-identical on real columns.
    """
    h_pad = _round_up(hidden, 128)
    in_dims = [(IN_FEATURES, K_PAD)] + [(hidden, h_pad)] * 3
    padded = []
    for i, (d_in, d_in_pad) in enumerate(in_dims, start=1):
        w = params[f"w{i}"]
        b = params[f"b{i}"]
        w_p = jnp.zeros((d_in_pad, h_pad), compute_dtype)
        w_p = w_p.at[:d_in, :hidden].set(w.astype(compute_dtype))
        b_p = jnp.zeros((1, h_pad), jnp.float32)
        b_p = b_p.at[:, :hidden].set(b.astype(jnp.float32))
        padded += [w_p, b_p]
    return padded


def _choose_tiling(b, tm):
    """Pick (tile_m, n_tiles) for the batch grid.

    - large batch : tiles of ~tm rows (tm rounded to a multiple of 256, capped
      at 1024 for v7x's 64 MiB VMEM) with an EVEN tile count so the two v7x
      TensorCores get balanced work under dimension_semantics=("parallel",).
    - medium batch: exactly two balanced tiles (both TCs busy, no padded tile).
    - small batch : a single tile rounded to the bf16 sublane granule (latency).
    """
    tm = _round_up(max(256, min(int(tm), 1024)), 256)
    if b <= 256:
        return _round_up(max(b, 1), 16), 1
    n_tiles = max(2, _cdiv(b, tm))
    n_tiles += n_tiles % 2                      # even count -> balanced v7x split
    tile_m = _round_up(_cdiv(b, n_tiles), 16)
    return tile_m, n_tiles


@functools.partial(jax.jit, static_argnames=("hidden", "tile_m", "n_tiles"))
def _mlp_forward_impl(x, padded_params, *, hidden, tile_m, n_tiles):
    b = x.shape[0]
    h_pad = padded_params[0].shape[1]
    b_pad = tile_m * n_tiles

    # Under jit the reshape + bf16 cast + zero pad fuse into a single HBM pass.
    # The explicit zero pad of the K lanes keeps the padded matmul chain exact
    # (in-kernel VMEM lane padding is not guaranteed to be zero otherwise).
    x2d = x.reshape(b, IN_FEATURES).astype(jnp.bfloat16)
    x2d = jnp.pad(x2d, ((0, b_pad - b), (0, K_PAD - IN_FEATURES)))

    # VMEM budget: resident weights/biases (counted as double-buffered), the
    # double-buffered bf16 x/out tiles, plus headroom for the chained f32
    # intermediates.  1.5x margin, capped at 48 MiB (< v7x's 64 MiB physical).
    param_bytes = 2 * sum(int(p.size) * p.dtype.itemsize for p in padded_params)
    io_bytes = 2 * tile_m * (K_PAD + h_pad) * 2
    live_bytes = 6 * tile_m * h_pad * 4
    vmem_limit = int(min(48 << 20,
                         max(24 << 20,
                             1.5 * (param_bytes + io_bytes + live_bytes))))

    def resident_spec(p):
        # Same block every grid step -> fetched once, stays in VMEM across the
        # whole grid (no per-tile re-fetch).  Left at the default buffering for
        # maximum portability; the VMEM budget above already assumes 2 buffers.
        return pl.BlockSpec(p.shape, lambda i: (0, 0))

    out = pl.pallas_call(
        mlp_kernel,
        out_shape=jax.ShapeDtypeStruct((b_pad, h_pad), jnp.bfloat16),
        grid=(n_tiles,),
        in_specs=[pl.BlockSpec((tile_m, K_PAD), lambda i: (i, 0))]
                 + [resident_spec(p) for p in padded_params],
        out_specs=pl.BlockSpec((tile_m, h_pad), lambda i: (i, 0)),
        compiler_params=pltpu.CompilerParams(
            dimension_semantics=("parallel",),   # shard batch tiles across v7x's 2 TCs
            vmem_limit_bytes=vmem_limit),
    )(x2d, *padded_params)

    # Slice + upcast fuse with the kernel's bf16 store under jit.
    return out[:b, :hidden].astype(jnp.float32)


def my_mlp_forward(x, padded_params, hidden, *, tm=512):
    """x: (B, 28, 28, 1).  padded_params: output of prepare_params.
    Returns (B, hidden) float32."""
    tile_m, n_tiles = _choose_tiling(x.shape[0], tm)
    return _mlp_forward_impl(x, padded_params,
                             hidden=hidden, tile_m=tile_m, n_tiles=n_tiles)


def reference_forward_f32(x, params):
    """Pure-f32 chain: exactly the PyTorch module's math."""
    h = x.reshape(-1, IN_FEATURES)
    for i in range(1, 5):
        h = h @ params[f"w{i}"] + params[f"b{i}"]
    return h


def reference_forward_bf16(x, params):
    """Same math as the kernel: bf16 operands, f32 accumulation, f32 bias,
    bf16 output store, then upcast like the wrapper."""
    h = x.reshape(-1, IN_FEATURES).astype(jnp.bfloat16)
    for i in range(1, 5):
        w = params[f"w{i}"].astype(jnp.bfloat16)
        h32 = jnp.dot(h, w, preferred_element_type=jnp.float32) + params[f"b{i}"]
        h = h32.astype(jnp.bfloat16)
    return h.astype(jnp.float32)


if __name__ == "__main__":
    hidden_size = 500            # matches the PyTorch spec (padded to 512 inside)
    batch = 2

    key = jax.random.PRNGKey(0)
    key, kx = jax.random.split(key)
    x = jax.random.normal(kx, (batch, 28, 28, 1), jnp.float32)

    params = init_params(key, hidden_size)
    padded_params = prepare_params(params, hidden_size)

    # Small-batch / latency path (single tile).
    y = my_mlp_forward(x, padded_params, hidden_size)
    y = jax.block_until_ready(y)
    assert y.shape == (batch, hidden_size)

    # Check against a reference computing the same bf16/f32 math path.
    y_ref_bf16 = reference_forward_bf16(x, params)
    assert jnp.allclose(y, y_ref_bf16, atol=2e-2, rtol=2e-2), \
        float(jnp.max(jnp.abs(y - y_ref_bf16)))

    # Looser check against the pure-f32 PyTorch-equivalent chain (bf16 weight
    # quantization contributes ~1% relative error; well inside this bound).
    y_ref_f32 = reference_forward_f32(x, params)
    assert jnp.allclose(y, y_ref_f32, atol=5e-2, rtol=5e-2)

    # Multi-tile path (exercises the batch grid, padding, pipelining and the
    # even-tile-count split: batch 300 -> 2 balanced tiles of 160 rows).
    batch2 = 300
    key, kx2 = jax.random.split(key)
    x2 = jax.random.normal(kx2, (batch2, 28, 28, 1), jnp.float32)
    y2 = jax.block_until_ready(my_mlp_forward(x2, padded_params, hidden_size))
    assert y2.shape == (batch2, hidden_size)
    y2_ref = reference_forward_bf16(x2, params)
    assert jnp.allclose(y2, y2_ref, atol=2e-2, rtol=2e-2), \
        float(jnp.max(jnp.abs(y2 - y2_ref)))

    print("KERNEL_OK")
</pallas_src>

<mosaic_0001>
module attributes {stable_mosaic.version = 11 : i64} {
  func.func @mlp_kernel(%arg0: i32, %arg1: memref<16x896xbf16, #tpu.memory_space<vmem>>, %arg2: memref<896x512xbf16, #tpu.memory_space<vmem>>, %arg3: memref<1x512xf32, #tpu.memory_space<vmem>>, %arg4: memref<512x512xbf16, #tpu.memory_space<vmem>>, %arg5: memref<1x512xf32, #tpu.memory_space<vmem>>, %arg6: memref<512x512xbf16, #tpu.memory_space<vmem>>, %arg7: memref<1x512xf32, #tpu.memory_space<vmem>>, %arg8: memref<512x512xbf16, #tpu.memory_space<vmem>>, %arg9: memref<1x512xf32, #tpu.memory_space<vmem>>, %arg10: memref<16x512xbf16, #tpu.memory_space<vmem>>) attributes {dimension_semantics = [#tpu.dimension_semantics<parallel>], iteration_bounds = array<i64: 1>, scalar_prefetch = 0 : i64, scratch_operands = 0 : i64, tpu.core_type = #tpu.core_type<tc>, window_params = [{transform_indices = @transform_0, window_bounds = array<i64: 16, 896>}, {pipeline_mode = #tpu.pipeline_mode<synchronous>, transform_indices = @transform_1, window_bounds = array<i64: 896, 512>}, {pipeline_mode = #tpu.pipeline_mode<synchronous>, transform_indices = @transform_2, window_bounds = array<i64: 1, 512>}, {pipeline_mode = #tpu.pipeline_mode<synchronous>, transform_indices = @transform_3, window_bounds = array<i64: 512, 512>}, {pipeline_mode = #tpu.pipeline_mode<synchronous>, transform_indices = @transform_4, window_bounds = array<i64: 1, 512>}, {pipeline_mode = #tpu.pipeline_mode<synchronous>, transform_indices = @transform_5, window_bounds = array<i64: 512, 512>}, {pipeline_mode = #tpu.pipeline_mode<synchronous>, transform_indices = @transform_6, window_bounds = array<i64: 1, 512>}, {pipeline_mode = #tpu.pipeline_mode<synchronous>, transform_indices = @transform_7, window_bounds = array<i64: 512, 512>}, {pipeline_mode = #tpu.pipeline_mode<synchronous>, transform_indices = @transform_8, window_bounds = array<i64: 1, 512>}, {transform_indices = @transform_9, window_bounds = array<i64: 16, 512>}]} {
    %c0 = arith.constant 0 : index
    %c0_0 = arith.constant 0 : index
    %0 = vector.load %arg3[%c0, %c0_0] : memref<1x512xf32, #tpu.memory_space<vmem>>, vector<1x512xf32>
    %c0_1 = arith.constant 0 : index
    %c0_2 = arith.constant 0 : index
    %1 = vector.load %arg1[%c0_1, %c0_2] : memref<16x896xbf16, #tpu.memory_space<vmem>>, vector<16x896xbf16>
    %c0_3 = arith.constant 0 : index
    %c0_4 = arith.constant 0 : index
    %2 = vector.load %arg2[%c0_3, %c0_4] : memref<896x512xbf16, #tpu.memory_space<vmem>>, vector<896x512xbf16>
    %cst = arith.constant dense<0.000000e+00> : vector<16x512xf32>
    %3 = tpu.matmul %1, %2, %cst {dimension_numbers = #tpu.dot_dimension_numbers<[1], [0], [0], [1], [0, 0, 1, 1], [], []>} : vector<16x896xbf16>, vector<896x512xbf16>, vector<16x512xf32> -> vector<16x512xf32>
    %4 = vector.broadcast %0 : vector<1x512xf32> to vector<16x512xf32>
    %5 = arith.addf %4, %3 : vector<16x512xf32>
    %c0_5 = arith.constant 0 : index
    %c0_6 = arith.constant 0 : index
    %6 = vector.load %arg5[%c0_5, %c0_6] : memref<1x512xf32, #tpu.memory_space<vmem>>, vector<1x512xf32>
    %7 = arith.truncf %5 : vector<16x512xf32> to vector<16x512xbf16>
    %c0_7 = arith.constant 0 : index
    %c0_8 = arith.constant 0 : index
    %8 = vector.load %arg4[%c0_7, %c0_8] : memref<512x512xbf16, #tpu.memory_space<vmem>>, vector<512x512xbf16>
    %cst_9 = arith.constant dense<0.000000e+00> : vector<16x512xf32>
    %9 = tpu.matmul %7, %8, %cst_9 {dimension_numbers = #tpu.dot_dimension_numbers<[1], [0], [0], [1], [0, 0, 1, 1], [], []>} : vector<16x512xbf16>, vector<512x512xbf16>, vector<16x512xf32> -> vector<16x512xf32>
    %10 = vector.broadcast %6 : vector<1x512xf32> to vector<16x512xf32>
    %11 = arith.addf %10, %9 : vector<16x512xf32>
    %c0_10 = arith.constant 0 : index
    %c0_11 = arith.constant 0 : index
    %12 = vector.load %arg7[%c0_10, %c0_11] : memref<1x512xf32, #tpu.memory_space<vmem>>, vector<1x512xf32>
    %13 = arith.truncf %11 : vector<16x512xf32> to vector<16x512xbf16>
    %c0_12 = arith.constant 0 : index
    %c0_13 = arith.constant 0 : index
    %14 = vector.load %arg6[%c0_12, %c0_13] : memref<512x512xbf16, #tpu.memory_space<vmem>>, vector<512x512xbf16>
    %cst_14 = arith.constant dense<0.000000e+00> : vector<16x512xf32>
    %15 = tpu.matmul %13, %14, %cst_14 {dimension_numbers = #tpu.dot_dimension_numbers<[1], [0], [0], [1], [0, 0, 1, 1], [], []>} : vector<16x512xbf16>, vector<512x512xbf16>, vector<16x512xf32> -> vector<16x512xf32>
    %16 = vector.broadcast %12 : vector<1x512xf32> to vector<16x512xf32>
    %17 = arith.addf %16, %15 : vector<16x512xf32>
    %c0_15 = arith.constant 0 : index
    %c0_16 = arith.constant 0 : index
    %18 = vector.load %arg9[%c0_15, %c0_16] : memref<1x512xf32, #tpu.memory_space<vmem>>, vector<1x512xf32>
    %19 = arith.truncf %17 : vector<16x512xf32> to vector<16x512xbf16>
    %c0_17 = arith.constant 0 : index
    %c0_18 = arith.constant 0 : index
    %20 = vector.load %arg8[%c0_17, %c0_18] : memref<512x512xbf16, #tpu.memory_space<vmem>>, vector<512x512xbf16>
    %cst_19 = arith.constant dense<0.000000e+00> : vector<16x512xf32>
    %21 = tpu.matmul %19, %20, %cst_19 {dimension_numbers = #tpu.dot_dimension_numbers<[1], [0], [0], [1], [0, 0, 1, 1], [], []>} : vector<16x512xbf16>, vector<512x512xbf16>, vector<16x512xf32> -> vector<16x512xf32>
    %22 = vector.broadcast %18 : vector<1x512xf32> to vector<16x512xf32>
    %23 = arith.addf %22, %21 : vector<16x512xf32>
    %24 = arith.truncf %23 : vector<16x512xf32> to vector<16x512xbf16>
    %c0_20 = arith.constant 0 : index
    %c0_21 = arith.constant 0 : index
    %25 = vector.load %arg10[%c0_20, %c0_21] : memref<16x512xbf16, #tpu.memory_space<vmem>>, vector<16x512xbf16>
    tpu.vector_store %arg10[%c0_20, %c0_21], %24 {strides = array<i32>} : memref<16x512xbf16, #tpu.memory_space<vmem>>, vector<16x512xbf16>,
    return
  }
  func.func @transform_0(%arg0: i32) -> (i32, i32) {
    %c0_i32 = arith.constant 0 : i32
    %c0_i32_0 = arith.constant 0 : i32
    return %arg0, %c0_i32 : i32, i32
  }
  func.func @transform_1(%arg0: i32) -> (i32, i32) {
    %c0_i32 = arith.constant 0 : i32
    %c0_i32_0 = arith.constant 0 : i32
    %c0_i32_1 = arith.constant 0 : i32
    return %c0_i32, %c0_i32_0 : i32, i32
  }
  func.func @transform_2(%arg0: i32) -> (i32, i32) {
    %c0_i32 = arith.constant 0 : i32
    %c0_i32_0 = arith.constant 0 : i32
    %c0_i32_1 = arith.constant 0 : i32
    return %c0_i32, %c0_i32_0 : i32, i32
  }
  func.func @transform_3(%arg0: i32) -> (i32, i32) {
    %c0_i32 = arith.constant 0 : i32
    %c0_i32_0 = arith.constant 0 : i32
    %c0_i32_1 = arith.constant 0 : i32
    return %c0_i32, %c0_i32_0 : i32, i32
  }
  func.func @transform_4(%arg0: i32) -> (i32, i32) {
    %c0_i32 = arith.constant 0 : i32
    %c0_i32_0 = arith.constant 0 : i32
    %c0_i32_1 = arith.constant 0 : i32
    return %c0_i32, %c0_i32_0 : i32, i32
  }
  func.func @transform_5(%arg0: i32) -> (i32, i32) {
    %c0_i32 = arith.constant 0 : i32
    %c0_i32_0 = arith.constant 0 : i32
    %c0_i32_1 = arith.constant 0 : i32
    return %c0_i32, %c0_i32_0 : i32, i32
  }
  func.func @transform_6(%arg0: i32) -> (i32, i32) {
    %c0_i32 = arith.constant 0 : i32
    %c0_i32_0 = arith.constant 0 : i32
    %c0_i32_1 = arith.constant 0 : i32
    return %c0_i32, %c0_i32_0 : i32, i32
  }
  func.func @transform_7(%arg0: i32) -> (i32, i32) {
    %c0_i32 = arith.constant 0 : i32
    %c0_i32_0 = arith.constant 0 : i32
    %c0_i32_1 = arith.constant 0 : i32
    return %c0_i32, %c0_i32_0 : i32, i32
  }
  func.func @transform_8(%arg0: i32) -> (i32, i32) {
    %c0_i32 = arith.constant 0 : i32
    %c0_i32_0 = arith.constant 0 : i32
    %c0_i32_1 = arith.constant 0 : i32
    return %c0_i32, %c0_i32_0 : i32, i32
  }
  func.func @transform_9(%arg0: i32) -> (i32, i32) {
    %c0_i32 = arith.constant 0 : i32
    %c0_i32_0 = arith.constant 0 : i32
    return %arg0, %c0_i32 : i32, i32
  }
}

</mosaic_0001>

<llo_original>
// kernel: _mlp_forward_impl.1
$region0: #{_mlp_forward_impl.1}
  #allocation0 [shape = 'u32[]', space=smem, size = 0x4, offset = 0x4, fixed_abs, tag = 'smem constant byte address 0x4 - core index']
  #allocation1 [shape = 'u32[144,128]{1,0:T(1,128)}', space=vmem, size = 0x12000, scoped, tag = 'internal scratch']
  %s0 = inlined_call_operand.vmem [shape: bf16[16,896], index: 0, kind: input, shape index: {}]
  %s1 = inlined_call_operand.hbm [shape: bf16[896,512], index: 1, kind: input, shape index: {}]
  %s2 = inlined_call_operand.vmem [shape: f32[1,512], index: 2, kind: input, shape index: {}]
  %s3 = inlined_call_operand.hbm [shape: bf16[512,512], index: 3, kind: input, shape index: {}]
  %s4 = inlined_call_operand.vmem [shape: f32[1,512], index: 4, kind: input, shape index: {}]
  %s5 = inlined_call_operand.hbm [shape: bf16[512,512], index: 5, kind: input, shape index: {}]
  %s6 = inlined_call_operand.vmem [shape: f32[1,512], index: 6, kind: input, shape index: {}]
  %s7 = inlined_call_operand.hbm [shape: bf16[512,512], index: 7, kind: input, shape index: {}]
  %s8 = inlined_call_operand.vmem [shape: f32[1,512], index: 8, kind: input, shape index: {}]
  %s9 = inlined_call_operand.vmem [shape: bf16[16,512], index: 9, kind: output, shape index: {}]
  %s10 = sld [smem:[#allocation0]]
  $region62: #{_mlp_forward_impl.1} parent=0
    _
  %s12 = ssub.s32 1, %s10
  %s13 = scalar_select 0, %s12, %s10
  $region1: #{_mlp_forward_impl.1} parent=0
    #allocation2 [shape = 'u8[917504]{0}', space=vmem, size = 0xe0000, scoped, tag = 'input window, operand 1, single buffered']
    #allocation3 [shape = 's32[1]{0}', space=sflag, size = 0x4, scoped, tag = 'scoped memory for _mlp_forward_impl.1']
    #allocation4 [shape = 'u8[524288]{0}', space=vmem, size = 0x80000, scoped, tag = 'input window, operand 3, single buffered']
    #allocation5 [shape = 's32[1]{0}', space=sflag, size = 0x4, scoped, tag = 'scoped memory for _mlp_forward_impl.1']
    #allocation6 [shape = 'u8[524288]{0}', space=vmem, size = 0x80000, scoped, tag = 'input window, operand 5, single buffered']
    #allocation7 [shape = 'u8[524288]{0}', space=vmem, size = 0x80000, scoped, tag = 'input window, operand 7, single buffered']
    #allocation8 [shape = 's32[1]{0}', space=sflag, size = 0x4, scoped, tag = 'scoped memory for _mlp_forward_impl.1']
    %14 = vsyncpa [#allocation3], 0
    %15 = vsyncpa [#allocation5], 0
    %16 = vsyncpa [#allocation8], 0
    // Predicated region
    $region2: #{_mlp_forward_impl.1} parent=1 // pred_check
      _
    $region3: #{_mlp_forward_impl.1} parent=1 // pred_check_branch
      %18 = sbr.rel (0) target = $region5
    $region4: #{_mlp_forward_impl.1} parent=1 // pred_region
      _
    $region5: #{_mlp_forward_impl.1} parent=1 // pred_fallthru
      _
    // Predicated region
    $region6: #{_mlp_forward_impl.1} parent=1 // pred_check
      _
    $region7: #{_mlp_forward_impl.1} parent=1 // pred_check_branch
      %20 = sbr.rel (0) target = $region9
    $region8: #{_mlp_forward_impl.1} parent=1 // pred_region
      %s22 = ssub.s32 28672, 28672
      %23 = vsyncadd [#allocation3], %s22
      %s24 = sshll.u32 [#allocation2], 4
      %s25 = int_to_ptr.vmem [resolvable:$true] %s24
      %30 = dma.hbm_to_vmem [thread:$0]  %s1, 28672, %s25, [#allocation3], 256, 256, 16
    $region9: #{_mlp_forward_impl.1} parent=1 // pred_fallthru
      _
    // Predicated region
    $region10: #{_mlp_forward_impl.1} parent=1 // pred_check
      _
    $region11: #{_mlp_forward_impl.1} parent=1 // pred_check_branch
      %32 = sbr.rel (0) target = $region13
    $region12: #{_mlp_forward_impl.1} parent=1 // pred_region
      _
    $region13: #{_mlp_forward_impl.1} parent=1 // pred_fallthru
      _
    // Predicated region
    $region14: #{_mlp_forward_impl.1} parent=1 // pred_check
      _
    $region15: #{_mlp_forward_impl.1} parent=1 // pred_check_branch
      %34 = sbr.rel (0) target = $region17
    $region16: #{_mlp_forward_impl.1} parent=1 // pred_region
      %s36 = ssub.s32 16384, 16384
      %37 = vsyncadd [#allocation5], %s36
      %s38 = sshll.u32 [#allocation4], 4
      %s39 = int_to_ptr.vmem [resolvable:$true] %s38
      %44 = dma.hbm_to_vmem [thread:$0]  %s3, 16384, %s39, [#allocation5], 256, 256, 16
    $region17: #{_mlp_forward_impl.1} parent=1 // pred_fallthru
      _
    // Predicated region
    $region18: #{_mlp_forward_impl.1} parent=1 // pred_check
      _
    $region19: #{_mlp_forward_impl.1} parent=1 // pred_check_branch
      %46 = sbr.rel (0) target = $region21
    $region20: #{_mlp_forward_impl.1} parent=1 // pred_region
      _
    $region21: #{_mlp_forward_impl.1} parent=1 // pred_fallthru
      _
    // Predicated region
    $region22: #{_mlp_forward_impl.1} parent=1 // pred_check
      _
    $region23: #{_mlp_forward_impl.1} parent=1 // pred_check_branch
      %48 = sbr.rel (0) target = $region25
    $region24: #{_mlp_forward_impl.1} parent=1 // pred_region
      %s50 = ssub.s32 16384, 16384
      %51 = vsyncadd [#allocation5], %s50
      %s52 = sshll.u32 [#allocation6], 4
      %s53 = int_to_ptr.vmem [resolvable:$true] %s52
      %58 = dma.hbm_to_vmem [thread:$0]  %s5, 16384, %s53, [#allocation5], 256, 256, 16
    $region25: #{_mlp_forward_impl.1} parent=1 // pred_fallthru
      _
    // Predicated region
    $region26: #{_mlp_forward_impl.1} parent=1 // pred_check
      _
    $region27: #{_mlp_forward_impl.1} parent=1 // pred_check_branch
      %60 = sbr.rel (0) target = $region29
    $region28: #{_mlp_forward_impl.1} parent=1 // pred_region
      _
    $region29: #{_mlp_forward_impl.1} parent=1 // pred_fallthru
      _
    // Predicated region
    $region30: #{_mlp_forward_impl.1} parent=1 // pred_check
      _
    $region31: #{_mlp_forward_impl.1} parent=1 // pred_check_branch
      %62 = sbr.rel (0) target = $region33
    $region32: #{_mlp_forward_impl.1} parent=1 // pred_region
      %s64 = ssub.s32 16384, 16384
      %65 = vsyncadd [#allocation8], %s64
      %s66 = sshll.u32 [#allocation7], 4
      %s67 = int_to_ptr.vmem [resolvable:$true] %s66
      %72 = dma.hbm_to_vmem [thread:$0]  %s7, 16384, %s67, [#allocation8], 256, 256, 16
    $region33: #{_mlp_forward_impl.1} parent=1 // pred_fallthru
      _
    // Predicated region
    $region34: #{_mlp_forward_impl.1} parent=1 // pred_check
      _
    $region35: #{_mlp_forward_impl.1} parent=1 // pred_check_branch
      %74 = sbr.rel (0) target = $region37
    $region36: #{_mlp_forward_impl.1} parent=1 // pred_region
      _
    $region37: #{_mlp_forward_impl.1} parent=1 // pred_fallthru
      _
    // Predicated region
    $region38: #{_mlp_forward_impl.1} parent=1 // pred_check
      _
    $region39: #{_mlp_forward_impl.1} parent=1 // pred_check_branch
      %76 = sbr.rel (0) target = $region41
    $region40: #{_mlp_forward_impl.1} parent=1 // pred_region
      %77 = dma.done [#allocation3], 28672
    $region41: #{_mlp_forward_impl.1} parent=1 // pred_fallthru
      _
    // Predicated region
    $region42: #{_mlp_forward_impl.1} parent=1 // pred_check
      _
    $region43: #{_mlp_forward_impl.1} parent=1 // pred_check_branch
      %79 = sbr.rel (0) target = $region45
    $region44: #{_mlp_forward_impl.1} parent=1 // pred_region
      %80 = dma.done [#allocation5], 16384
    $region45: #{_mlp_forward_impl.1} parent=1 // pred_fallthru
      _
    // Predicated region
    $region46: #{_mlp_forward_impl.1} parent=1 // pred_check
      _
    $region47: #{_mlp_forward_impl.1} parent=1 // pred_check_branch
      %82 = sbr.rel (0) target = $region49
    $region48: #{_mlp_forward_impl.1} parent=1 // pred_region
      %83 = dma.done [#allocation5], 16384
    $region49: #{_mlp_forward_impl.1} parent=1 // pred_fallthru
      _
    // Predicated region
    $region50: #{_mlp_forward_impl.1} parent=1 // pred_check
      _
    $region51: #{_mlp_forward_impl.1} parent=1 // pred_check_branch
      %85 = sbr.rel (0) target = $region53
    $region52: #{_mlp_forward_impl.1} parent=1 // pred_region
      %86 = dma.done [#allocation8], 16384
    $region53: #{_mlp_forward_impl.1} parent=1 // pred_fallthru
      _
    %v88 = vld [vmem:[%s2] sm:$0xf]
    %v89 = vld [vmem:[%s0] sm:$0xff]
    %v90 = vld [vmem:[%s0 + $0x8] sm:$0xff]
    %v91 = vld [vmem:[%s0 + $0x10] sm:$0xff]
    %v92 = vld [vmem:[%s0 + $0x18] sm:$0xf]
    %v93 = vld [vmem:[%s0 + $0x1c] sm:$0xff]
    %v94 = vld [vmem:[%s0 + $0x24] sm:$0xff]
    %v95 = vld [vmem:[%s0 + $0x2c] sm:$0xff]
    %v96 = vld [vmem:[%s0 + $0x34] sm:$0xf]
    %v97 = vld [vmem:[#allocation2] sm:$0xff]
    %v98 = vld [vmem:[#allocation2 + $0x8] sm:$0xff]
    %v99 = vld [vmem:[#allocation2 + $0x10] sm:$0xff]
    %v100 = vld [vmem:[#allocation2 + $0x18] sm:$0xff]
    %v101 = vld [vmem:[#allocation2 + $0x20] sm:$0xff]
    %v102 = vld [vmem:[#allocation2 + $0x28] sm:$0xff]
    %v103 = vld [vmem:[#allocation2 + $0x30] sm:$0xff]
    %v104 = vld [vmem:[#allocation2 + $0x38] sm:$0xff]
    %v105 = vld [vmem:[#allocation2 + $0x40] sm:$0xff]
    %v106 = vld [vmem:[#allocation2 + $0x48] sm:$0xff]
    %v107 = vld [vmem:[#allocation2 + $0x50] sm:$0xff]
    %v108 = vld [vmem:[#allocation2 + $0x58] sm:$0xff]
    %v109 = vld [vmem:[#allocation2 + $0x60] sm:$0xff]
    %v110 = vld [vmem:[#allocation2 + $0x68] sm:$0xff]
    %v111 = vld [vmem:[#allocation2 + $0x70] sm:$0xff]
    %v112 = vld [vmem:[#allocation2 + $0x78] sm:$0xff]
    %v113 = vld [vmem:[#allocation2 + $0x80] sm:$0xff]
    %v114 = vld [vmem:[#allocation2 + $0x88] sm:$0xff]
    %v115 = vld [vmem:[#allocation2 + $0x90] sm:$0xff]
    %v116 = vld [vmem:[#allocation2 + $0x98] sm:$0xff]
    %v117 = vld [vmem:[#allocation2 + $0xa0] sm:$0xff]
    %v118 = vld [vmem:[#allocation2 + $0xa8] sm:$0xff]
    %v119 = vld [vmem:[#allocation2 + $0xb0] sm:$0xff]
    %v120 = vld [vmem:[#allocation2 + $0xb8] sm:$0xff]
    %v121 = vld [vmem:[#allocation2 + $0xc0] sm:$0xff]
    %v122 = vld [vmem:[#allocation2 + $0xc8] sm:$0xff]
    %v123 = vld [vmem:[#allocation2 + $0xd0] sm:$0xff]
    %v124 = vld [vmem:[#allocation2 + $0xd8] sm:$0xff]
    %v125 = vld [vmem:[#allocation2 + $0xe0] sm:$0xff]
    %v126 = vld [vmem:[#allocation2 + $0xe8] sm:$0xff]
    %v127 = vld [vmem:[#allocation2 + $0xf0] sm:$0xff]
    %v128 = vld [vmem:[#allocation2 + $0xf8] sm:$0xff]
    %v129 = vld [vmem:[#allocation2 + $0x100] sm:$0xff]
    %v130 = vld [vmem:[#allocation2 + $0x108] sm:$0xff]
    %v131 = vld [vmem:[#allocation2 + $0x110] sm:$0xff]
    %v132 = vld [vmem:[#allocation2 + $0x118] sm:$0xff]
    %v133 = vld [vmem:[#allocation2 + $0x120] sm:$0xff]
    %v134 = vld [vmem:[#allocation2 + $0x128] sm:$0xff]
    %v135 = vld [vmem:[#allocation2 + $0x130] sm:$0xff]
    %v136 = vld [vmem:[#allocation2 + $0x138] sm:$0xff]
    %v137 = vld [vmem:[#allocation2 + $0x140] sm:$0xff]
    %v138 = vld [vmem:[#allocation2 + $0x148] sm:$0xff]
    %v139 = vld [vmem:[#allocation2 + $0x150] sm:$0xff]
    %v140 = vld [vmem:[#allocation2 + $0x158] sm:$0xff]
    %v141 = vld [vmem:[#allocation2 + $0x160] sm:$0xff]
    %v142 = vld [vmem:[#allocation2 + $0x168] sm:$0xff]
    %v143 = vld [vmem:[#allocation2 + $0x170] sm:$0xff]
    %v144 = vld [vmem:[#allocation2 + $0x178] sm:$0xff]
    %v145 = vld [vmem:[#allocation2 + $0x180] sm:$0xff]
    %v146 = vld [vmem:[#allocation2 + $0x188] sm:$0xff]
    %v147 = vld [vmem:[#allocation2 + $0x190] sm:$0xff]
    %v148 = vld [vmem:[#allocation2 + $0x198] sm:$0xff]
    %v149 = vld [vmem:[#allocation2 + $0x1a0] sm:$0xff]
    %v150 = vld [vmem:[#allocation2 + $0x1a8] sm:$0xff]
    %v151 = vld [vmem:[#allocation2 + $0x1b0] sm:$0xff]
    %v152 = vld [vmem:[#allocation2 + $0x1b8] sm:$0xff]
    %v153 = vld [vmem:[#allocation2 + $0x1c0] sm:$0xff]
    %v154 = vld [vmem:[#allocation2 + $0x1c8] sm:$0xff]
    %v155 = vld [vmem:[#allocation2 + $0x1d0] sm:$0xff]
    %v156 = vld [vmem:[#allocation2 + $0x1d8] sm:$0xff]
    %v157 = vld [vmem:[#allocation2 + $0x1e0] sm:$0xff]
    %v158 = vld [vmem:[#allocation2 + $0x1e8] sm:$0xff]
    %v159 = vld [vmem:[#allocation2 + $0x1f0] sm:$0xff]
    %v160 = vld [vmem:[#allocation2 + $0x1f8] sm:$0xff]
    %v161 = vld [vmem:[#allocation2 + $0x200] sm:$0xff]
    %v162 = vld [vmem:[#allocation2 + $0x208] sm:$0xff]
    %v163 = vld [vmem:[#allocation2 + $0x210] sm:$0xff]
    %v164 = vld [vmem:[#allocation2 + $0x218] sm:$0xff]
    %v165 = vld [vmem:[#allocation2 + $0x220] sm:$0xff]
    %v166 = vld [vmem:[#allocation2 + $0x228] sm:$0xff]
    %v167 = vld [vmem:[#allocation2 + $0x230] sm:$0xff]
    %v168 = vld [vmem:[#allocation2 + $0x238] sm:$0xff]
    %v169 = vld [vmem:[#allocation2 + $0x240] sm:$0xff]
    %v170 = vld [vmem:[#allocation2 + $0x248] sm:$0xff]
    %v171 = vld [vmem:[#allocation2 + $0x250] sm:$0xff]
    %v172 = vld [vmem:[#allocation2 + $0x258] sm:$0xff]
    %v173 = vld [vmem:[#allocation2 + $0x260] sm:$0xff]
    %v174 = vld [vmem:[#allocation2 + $0x268] sm:$0xff]
    %v175 = vld [vmem:[#allocation2 + $0x270] sm:$0xff]
    %v176 = vld [vmem:[#allocation2 + $0x278] sm:$0xff]
    %v177 = vld [vmem:[#allocation2 + $0x280] sm:$0xff]
    %v178 = vld [vmem:[#allocation2 + $0x288] sm:$0xff]
    %v179 = vld [vmem:[#allocation2 + $0x290] sm:$0xff]
    %v180 = vld [vmem:[#allocation2 + $0x298] sm:$0xff]
    %v181 = vld [vmem:[#allocation2 + $0x2a0] sm:$0xff]
    %v182 = vld [vmem:[#allocation2 + $0x2a8] sm:$0xff]
    %v183 = vld [vmem:[#allocation2 + $0x2b0] sm:$0xff]
    %v184 = vld [vmem:[#allocation2 + $0x2b8] sm:$0xff]
    %v185 = vld [vmem:[#allocation2 + $0x2c0] sm:$0xff]
    %v186 = vld [vmem:[#allocation2 + $0x2c8] sm:$0xff]
    %v187 = vld [vmem:[#allocation2 + $0x2d0] sm:$0xff]
    %v188 = vld [vmem:[#allocation2 + $0x2d8] sm:$0xff]
    %v189 = vld [vmem:[#allocation2 + $0x2e0] sm:$0xff]
    %v190 = vld [vmem:[#allocation2 + $0x2e8] sm:$0xff]
    %v191 = vld [vmem:[#allocation2 + $0x2f0] sm:$0xff]
    %v192 = vld [vmem:[#allocation2 + $0x2f8] sm:$0xff]
    %v193 = vld [vmem:[#allocation2 + $0x300] sm:$0xff]
    %v194 = vld [vmem:[#allocation2 + $0x308] sm:$0xff]
    %v195 = vld [vmem:[#allocation2 + $0x310] sm:$0xff]
    %v196 = vld [vmem:[#allocation2 + $0x318] sm:$0xff]
    %v197 = vld [vmem:[#allocation2 + $0x320] sm:$0xff]
    %v198 = vld [vmem:[#allocation2 + $0x328] sm:$0xff]
    %v199 = vld [vmem:[#allocation2 + $0x330] sm:$0xff]
    %v200 = vld [vmem:[#allocation2 + $0x338] sm:$0xff]
    %v201 = vld [vmem:[#allocation2 + $0x340] sm:$0xff]
    %v202 = vld [vmem:[#allocation2 + $0x348] sm:$0xff]
    %v203 = vld [vmem:[#allocation2 + $0x350] sm:$0xff]
    %v204 = vld [vmem:[#allocation2 + $0x358] sm:$0xff]
    %v205 = vld [vmem:[#allocation2 + $0x360] sm:$0xff]
    %v206 = vld [vmem:[#allocation2 + $0x368] sm:$0xff]
    %v207 = vld [vmem:[#allocation2 + $0x370] sm:$0xff]
    %v208 = vld [vmem:[#allocation2 + $0x378] sm:$0xff]
    %v209 = vld [vmem:[#allocation2 + $0x380] sm:$0xff]
    %v210 = vld [vmem:[#allocation2 + $0x388] sm:$0xff]
    %v211 = vld [vmem:[#allocation2 + $0x390] sm:$0xff]
    %v212 = vld [vmem:[#allocation2 + $0x398] sm:$0xff]
    %v213 = vld [vmem:[#allocation2 + $0x3a0] sm:$0xff]
    %v214 = vld [vmem:[#allocation2 + $0x3a8] sm:$0xff]
    %v215 = vld [vmem:[#allocation2 + $0x3b0] sm:$0xff]
    %v216 = vld [vmem:[#allocation2 + $0x3b8] sm:$0xff]
    %v217 = vld [vmem:[#allocation2 + $0x3c0] sm:$0xff]
    %v218 = vld [vmem:[#allocation2 + $0x3c8] sm:$0xff]
    %v219 = vld [vmem:[#allocation2 + $0x3d0] sm:$0xff]
    %v220 = vld [vmem:[#allocation2 + $0x3d8] sm:$0xff]
    %v221 = vld [vmem:[#allocation2 + $0x3e0] sm:$0xff]
    %v222 = vld [vmem:[#allocation2 + $0x3e8] sm:$0xff]
    %v223 = vld [vmem:[#allocation2 + $0x3f0] sm:$0xff]
    %v224 = vld [vmem:[#allocation2 + $0x3f8] sm:$0xff]
    %v225 = vld [vmem:[#allocation2 + $0x400] sm:$0xff]
    %v226 = vld [vmem:[#allocation2 + $0x408] sm:$0xff]
    %v227 = vld [vmem:[#allocation2 + $0x410] sm:$0xff]
    %v228 = vld [vmem:[#allocation2 + $0x418] sm:$0xff]
    %v229 = vld [vmem:[#allocation2 + $0x420] sm:$0xff]
    %v230 = vld [vmem:[#allocation2 + $0x428] sm:$0xff]
    %v231 = vld [vmem:[#allocation2 + $0x430] sm:$0xff]
    %v232 = vld [vmem:[#allocation2 + $0x438] sm:$0xff]
    %v233 = vld [vmem:[#allocation2 + $0x440] sm:$0xff]
    %v234 = vld [vmem:[#allocation2 + $0x448] sm:$0xff]
    %v235 = vld [vmem:[#allocation2 + $0x450] sm:$0xff]
    %v236 = vld [vmem:[#allocation2 + $0x458] sm:$0xff]
    %v237 = vld [vmem:[#allocation2 + $0x460] sm:$0xff]
    %v238 = vld [vmem:[#allocation2 + $0x468] sm:$0xff]
    %v239 = vld [vmem:[#allocation2 + $0x470] sm:$0xff]
    %v240 = vld [vmem:[#allocation2 + $0x478] sm:$0xff]
    %v241 = vld [vmem:[#allocation2 + $0x480] sm:$0xff]
    %v242 = vld [vmem:[#allocation2 + $0x488] sm:$0xff]
    %v243 = vld [vmem:[#allocation2 + $0x490] sm:$0xff]
    %v244 = vld [vmem:[#allocation2 + $0x498] sm:$0xff]
    %v245 = vld [vmem:[#allocation2 + $0x4a0] sm:$0xff]
    %v246 = vld [vmem:[#allocation2 + $0x4a8] sm:$0xff]
    %v247 = vld [vmem:[#allocation2 + $0x4b0] sm:$0xff]
    %v248 = vld [vmem:[#allocation2 + $0x4b8] sm:$0xff]
    %v249 = vld [vmem:[#allocation2 + $0x4c0] sm:$0xff]
    %v250 = vld [vmem:[#allocation2 + $0x4c8] sm:$0xff]
    %v251 = vld [vmem:[#allocation2 + $0x4d0] sm:$0xff]
    %v252 = vld [vmem:[#allocation2 + $0x4d8] sm:$0xff]
    %v253 = vld [vmem:[#allocation2 + $0x4e0] sm:$0xff]
    %v254 = vld [vmem:[#allocation2 + $0x4e8] sm:$0xff]
    %v255 = vld [vmem:[#allocation2 + $0x4f0] sm:$0xff]
    %v256 = vld [vmem:[#allocation2 + $0x4f8] sm:$0xff]
    %v257 = vld [vmem:[#allocation2 + $0x500] sm:$0xff]
    %v258 = vld [vmem:[#allocation2 + $0x508] sm:$0xff]
    %v259 = vld [vmem:[#allocation2 + $0x510] sm:$0xff]
    %v260 = vld [vmem:[#allocation2 + $0x518] sm:$0xff]
    %v261 = vld [vmem:[#allocation2 + $0x520] sm:$0xff]
    %v262 = vld [vmem:[#allocation2 + $0x528] sm:$0xff]
    %v263 = vld [vmem:[#allocation2 + $0x530] sm:$0xff]
    %v264 = vld [vmem:[#allocation2 + $0x538] sm:$0xff]
    %v265 = vld [vmem:[#allocation2 + $0x540] sm:$0xff]
    %v266 = vld [vmem:[#allocation2 + $0x548] sm:$0xff]
    %v267 = vld [vmem:[#allocation2 + $0x550] sm:$0xff]
    %v268 = vld [vmem:[#allocation2 + $0x558] sm:$0xff]
    %v269 = vld [vmem:[#allocation2 + $0x560] sm:$0xff]
    %v270 = vld [vmem:[#allocation2 + $0x568] sm:$0xff]
    %v271 = vld [vmem:[#allocation2 + $0x570] sm:$0xff]
    %v272 = vld [vmem:[#allocation2 + $0x578] sm:$0xff]
    %v273 = vld [vmem:[#allocation2 + $0x580] sm:$0xff]
    %v274 = vld [vmem:[#allocation2 + $0x588] sm:$0xff]
    %v275 = vld [vmem:[#allocation2 + $0x590] sm:$0xff]
    %v276 = vld [vmem:[#allocation2 + $0x598] sm:$0xff]
    %v277 = vld [vmem:[#allocation2 + $0x5a0] sm:$0xff]
    %v278 = vld [vmem:[#allocation2 + $0x5a8] sm:$0xff]
    %v279 = vld [vmem:[#allocation2 + $0x5b0] sm:$0xff]
    %v280 = vld [vmem:[#allocation2 + $0x5b8] sm:$0xff]
    %v281 = vld [vmem:[#allocation2 + $0x5c0] sm:$0xff]
    %v282 = vld [vmem:[#allocation2 + $0x5c8] sm:$0xff]
    %v283 = vld [vmem:[#allocation2 + $0x5d0] sm:$0xff]
    %v284 = vld [vmem:[#allocation2 + $0x5d8] sm:$0xff]
    %v285 = vld [vmem:[#allocation2 + $0x5e0] sm:$0xff]
    %v286 = vld [vmem:[#allocation2 + $0x5e8] sm:$0xff]
    %v287 = vld [vmem:[#allocation2 + $0x5f0] sm:$0xff]
    %v288 = vld [vmem:[#allocation2 + $0x5f8] sm:$0xff]
    %v289 = vld [vmem:[#allocation2 + $0x600] sm:$0xff]
    %v290 = vld [vmem:[#allocation2 + $0x608] sm:$0xff]
    %v291 = vld [vmem:[#allocation2 + $0x610] sm:$0xff]
    %v292 = vld [vmem:[#allocation2 + $0x618] sm:$0xff]
    %v293 = vld [vmem:[#allocation2 + $0x620] sm:$0xff]
    %v294 = vld [vmem:[#allocation2 + $0x628] sm:$0xff]
    %v295 = vld [vmem:[#allocation2 + $0x630] sm:$0xff]
    %v296 = vld [vmem:[#allocation2 + $0x638] sm:$0xff]
    %v297 = vld [vmem:[#allocation2 + $0x640] sm:$0xff]
    %v298 = vld [vmem:[#allocation2 + $0x648] sm:$0xff]
    %v299 = vld [vmem:[#allocation2 + $0x650] sm:$0xff]
    %v300 = vld [vmem:[#allocation2 + $0x658] sm:$0xff]
    %v301 = vld [vmem:[#allocation2 + $0x660] sm:$0xff]
    %v302 = vld [vmem:[#allocation2 + $0x668] sm:$0xff]
    %v303 = vld [vmem:[#allocation2 + $0x670] sm:$0xff]
    %v304 = vld [vmem:[#allocation2 + $0x678] sm:$0xff]
    %v305 = vld [vmem:[#allocation2 + $0x680] sm:$0xff]
    %v306 = vld [vmem:[#allocation2 + $0x688] sm:$0xff]
    %v307 = vld [vmem:[#allocation2 + $0x690] sm:$0xff]
    %v308 = vld [vmem:[#allocation2 + $0x698] sm:$0xff]
    %v309 = vld [vmem:[#allocation2 + $0x6a0] sm:$0xff]
    %v310 = vld [vmem:[#allocation2 + $0x6a8] sm:$0xff]
    %v311 = vld [vmem:[#allocation2 + $0x6b0] sm:$0xff]
    %v312 = vld [vmem:[#allocation2 + $0x6b8] sm:$0xff]
    %v313 = vld [vmem:[#allocation2 + $0x6c0] sm:$0xff]
    %v314 = vld [vmem:[#allocation2 + $0x6c8] sm:$0xff]
    %v315 = vld [vmem:[#allocation2 + $0x6d0] sm:$0xff]
    %v316 = vld [vmem:[#allocation2 + $0x6d8] sm:$0xff]
    %v317 = vld [vmem:[#allocation2 + $0x6e0] sm:$0xff]
    %v318 = vld [vmem:[#allocation2 + $0x6e8] sm:$0xff]
    %v319 = vld [vmem:[#allocation2 + $0x6f0] sm:$0xff]
    %v320 = vld [vmem:[#allocation2 + $0x6f8] sm:$0xff]
    %v329 = vunpack.c.l.b16 %v89
    %v330 = vunpack.c.h.b16 %v89
    %v331 = vunpack.c.l.b16 %v90
    %v332 = vunpack.c.h.b16 %v90
    %v333 = vunpack.c.l.b16 %v91
    %v334 = vunpack.c.h.b16 %v91
    %v335 = vunpack.c.l.b16 %v92
    %v336 = vunpack.c.l.b16 %v93
    %v337 = vunpack.c.h.b16 %v93
    %v338 = vunpack.c.l.b16 %v94
    %v339 = vunpack.c.h.b16 %v94
    %v340 = vunpack.c.l.b16 %v95
    %v341 = vunpack.c.h.b16 %v95
    %v342 = vunpack.c.l.b16 %v96
    %v343 = vpack.c.b16 %v336, %v329
    %v344 = vpack.c.b16 %v337, %v330
    %v345 = vpack.c.b16 %v338, %v331
    %v346 = vpack.c.b16 %v339, %v332
    %v347 = vpack.c.b16 %v340, %v333
    %v348 = vpack.c.b16 %v341, %v334
    %v349 = vpack.c.b16 %v342, %v335
    %v581 = vunpack.c.l.b16 %v97
    %v582 = vunpack.c.h.b16 %v97
    %v583 = vunpack.c.l.b16 %v98
    %v584 = vunpack.c.h.b16 %v98
    %v585 = vunpack.c.l.b16 %v99
    %v586 = vunpack.c.h.b16 %v99
    %v587 = vunpack.c.l.b16 %v100
    %v588 = vunpack.c.h.b16 %v100
    %v589 = vunpack.c.l.b16 %v101
    %v590 = vunpack.c.h.b16 %v101
    %v591 = vunpack.c.l.b16 %v102
    %v592 = vunpack.c.h.b16 %v102
    %v593 = vunpack.c.l.b16 %v103
    %v594 = vunpack.c.h.b16 %v103
    %v595 = vunpack.c.l.b16 %v104
    %v596 = vunpack.c.h.b16 %v104
    %v597 = vunpack.c.l.b16 %v105
    %v598 = vunpack.c.h.b16 %v105
    %v599 = vunpack.c.l.b16 %v106
    %v600 = vunpack.c.h.b16 %v106
    %v601 = vunpack.c.l.b16 %v107
    %v602 = vunpack.c.h.b16 %v107
    %v603 = vunpack.c.l.b16 %v108
    %v604 = vunpack.c.h.b16 %v108
    %v605 = vunpack.c.l.b16 %v109
    %v606 = vunpack.c.h.b16 %v109
    %v607 = vunpack.c.l.b16 %v110
    %v608 = vunpack.c.h.b16 %v110
    %v609 = vunpack.c.l.b16 %v111
    %v610 = vunpack.c.h.b16 %v111
    %v611 = vunpack.c.l.b16 %v112
    %v612 = vunpack.c.h.b16 %v112
    %v613 = vunpack.c.l.b16 %v113
    %v614 = vunpack.c.h.b16 %v113
    %v615 = vunpack.c.l.b16 %v114
    %v616 = vunpack.c.h.b16 %v114
    %v617 = vunpack.c.l.b16 %v115
    %v618 = vunpack.c.h.b16 %v115
    %v619 = vunpack.c.l.b16 %v116
    %v620 = vunpack.c.h.b16 %v116
    %v621 = vunpack.c.l.b16 %v117
    %v622 = vunpack.c.h.b16 %v117
    %v623 = vunpack.c.l.b16 %v118
    %v624 = vunpack.c.h.b16 %v118
    %v625 = vunpack.c.l.b16 %v119
    %v626 = vunpack.c.h.b16 %v119
    %v627 = vunpack.c.l.b16 %v120
    %v628 = vunpack.c.h.b16 %v120
    %v629 = vunpack.c.l.b16 %v121
    %v630 = vunpack.c.h.b16 %v121
    %v631 = vunpack.c.l.b16 %v122
    %v632 = vunpack.c.h.b16 %v122
    %v633 = vunpack.c.l.b16 %v123
    %v634 = vunpack.c.h.b16 %v123
    %v635 = vunpack.c.l.b16 %v124
    %v636 = vunpack.c.h.b16 %v124
    %v637 = vunpack.c.l.b16 %v125
    %v638 = vunpack.c.h.b16 %v125
    %v639 = vunpack.c.l.b16 %v126
    %v640 = vunpack.c.h.b16 %v126
    %v641 = vunpack.c.l.b16 %v127
    %v642 = vunpack.c.h.b16 %v127
    %v643 = vunpack.c.l.b16 %v128
    %v644 = vunpack.c.h.b16 %v128
    %v645 = vunpack.c.l.b16 %v129
    %v646 = vunpack.c.h.b16 %v129
    %v647 = vunpack.c.l.b16 %v130
    %v648 = vunpack.c.h.b16 %v130
    %v649 = vunpack.c.l.b16 %v131
    %v650 = vunpack.c.h.b16 %v131
    %v651 = vunpack.c.l.b16 %v132
    %v652 = vunpack.c.h.b16 %v132
    %v653 = vunpack.c.l.b16 %v133
    %v654 = vunpack.c.h.b16 %v133
    %v655 = vunpack.c.l.b16 %v134
    %v656 = vunpack.c.h.b16 %v134
    %v657 = vunpack.c.l.b16 %v135
    %v658 = vunpack.c.h.b16 %v135
    %v659 = vunpack.c.l.b16 %v136
    %v660 = vunpack.c.h.b16 %v136
    %v661 = vunpack.c.l.b16 %v137
    %v662 = vunpack.c.h.b16 %v137
    %v663 = vunpack.c.l.b16 %v138
    %v664 = vunpack.c.h.b16 %v138
    %v665 = vunpack.c.l.b16 %v139
    %v666 = vunpack.c.h.b16 %v139
    %v667 = vunpack.c.l.b16 %v140
    %v668 = vunpack.c.h.b16 %v140
    %v669 = vunpack.c.l.b16 %v141
    %v670 = vunpack.c.h.b16 %v141
    %v671 = vunpack.c.l.b16 %v142
    %v672 = vunpack.c.h.b16 %v142
    %v673 = vunpack.c.l.b16 %v143
    %v674 = vunpack.c.h.b16 %v143
    %v675 = vunpack.c.l.b16 %v144
    %v676 = vunpack.c.h.b16 %v144
    %v677 = vunpack.c.l.b16 %v145
    %v678 = vunpack.c.h.b16 %v145
    %v679 = vunpack.c.l.b16 %v146
    %v680 = vunpack.c.h.b16 %v146
    %v681 = vunpack.c.l.b16 %v147
    %v682 = vunpack.c.h.b16 %v147
    %v683 = vunpack.c.l.b16 %v148
    %v684 = vunpack.c.h.b16 %v148
    %v685 = vunpack.c.l.b16 %v149
    %v686 = vunpack.c.h.b16 %v149
    %v687 = vunpack.c.l.b16 %v150
    %v688 = vunpack.c.h.b16 %v150
    %v689 = vunpack.c.l.b16 %v151
    %v690 = vunpack.c.h.b16 %v151
    %v691 = vunpack.c.l.b16 %v152
    %v692 = vunpack.c.h.b16 %v152
    %v693 = vunpack.c.l.b16 %v153
    %v694 = vunpack.c.h.b16 %v153
    %v695 = vunpack.c.l.b16 %v154
    %v696 = vunpack.c.h.b16 %v154
    %v697 = vunpack.c.l.b16 %v155
    %v698 = vunpack.c.h.b16 %v155
    %v699 = vunpack.c.l.b16 %v156
    %v700 = vunpack.c.h.b16 %v156
    %v701 = vunpack.c.l.b16 %v157
    %v702 = vunpack.c.h.b16 %v157
    %v703 = vunpack.c.l.b16 %v158
    %v704 = vunpack.c.h.b16 %v158
    %v705 = vunpack.c.l.b16 %v159
    %v706 = vunpack.c.h.b16 %v159
    %v707 = vunpack.c.l.b16 %v160
    %v708 = vunpack.c.h.b16 %v160
    %v709 = vunpack.c.l.b16 %v161
    %v710 = vunpack.c.h.b16 %v161
    %v711 = vunpack.c.l.b16 %v162
    %v712 = vunpack.c.h.b16 %v162
    %v713 = vunpack.c.l.b16 %v163
    %v714 = vunpack.c.h.b16 %v163
    %v715 = vunpack.c.l.b16 %v164
    %v716 = vunpack.c.h.b16 %v164
    %v717 = vunpack.c.l.b16 %v165
    %v718 = vunpack.c.h.b16 %v165
    %v719 = vunpack.c.l.b16 %v166
    %v720 = vunpack.c.h.b16 %v166
    %v721 = vunpack.c.l.b16 %v167
    %v722 = vunpack.c.h.b16 %v167
    %v723 = vunpack.c.l.b16 %v168
    %v724 = vunpack.c.h.b16 %v168
    %v725 = vunpack.c.l.b16 %v169
    %v726 = vunpack.c.h.b16 %v169
    %v727 = vunpack.c.l.b16 %v170
    %v728 = vunpack.c.h.b16 %v170
    %v729 = vunpack.c.l.b16 %v171
    %v730 = vunpack.c.h.b16 %v171
    %v731 = vunpack.c.l.b16 %v172
    %v732 = vunpack.c.h.b16 %v172
    %v733 = vunpack.c.l.b16 %v173
    %v734 = vunpack.c.h.b16 %v173
    %v735 = vunpack.c.l.b16 %v174
    %v736 = vunpack.c.h.b16 %v174
    %v737 = vunpack.c.l.b16 %v175
    %v738 = vunpack.c.h.b16 %v175
    %v739 = vunpack.c.l.b16 %v176
    %v740 = vunpack.c.h.b16 %v176
    %v741 = vunpack.c.l.b16 %v177
    %v742 = vunpack.c.h.b16 %v177
    %v743 = vunpack.c.l.b16 %v178
    %v744 = vunpack.c.h.b16 %v178
    %v745 = vunpack.c.l.b16 %v179
    %v746 = vunpack.c.h.b16 %v179
    %v747 = vunpack.c.l.b16 %v180
    %v748 = vunpack.c.h.b16 %v180
    %v749 = vunpack.c.l.b16 %v181
    %v750 = vunpack.c.h.b16 %v181
    %v751 = vunpack.c.l.b16 %v182
    %v752 = vunpack.c.h.b16 %v182
    %v753 = vunpack.c.l.b16 %v183
    %v754 = vunpack.c.h.b16 %v183
    %v755 = vunpack.c.l.b16 %v184
    %v756 = vunpack.c.h.b16 %v184
    %v757 = vunpack.c.l.b16 %v185
    %v758 = vunpack.c.h.b16 %v185
    %v759 = vunpack.c.l.b16 %v186
    %v760 = vunpack.c.h.b16 %v186
    %v761 = vunpack.c.l.b16 %v187
    %v762 = vunpack.c.h.b16 %v187
    %v763 = vunpack.c.l.b16 %v188
    %v764 = vunpack.c.h.b16 %v188
    %v765 = vunpack.c.l.b16 %v189
    %v766 = vunpack.c.h.b16 %v189
    %v767 = vunpack.c.l.b16 %v190
    %v768 = vunpack.c.h.b16 %v190
    %v769 = vunpack.c.l.b16 %v191
    %v770 = vunpack.c.h.b16 %v191
    %v771 = vunpack.c.l.b16 %v192
    %v772 = vunpack.c.h.b16 %v192
    %v773 = vunpack.c.l.b16 %v193
    %v774 = vunpack.c.h.b16 %v193
    %v775 = vunpack.c.l.b16 %v194
    %v776 = vunpack.c.h.b16 %v194
    %v777 = vunpack.c.l.b16 %v195
    %v778 = vunpack.c.h.b16 %v195
    %v779 = vunpack.c.l.b16 %v196
    %v780 = vunpack.c.h.b16 %v196
    %v781 = vunpack.c.l.b16 %v197
    %v782 = vunpack.c.h.b16 %v197
    %v783 = vunpack.c.l.b16 %v198
    %v784 = vunpack.c.h.b16 %v198
    %v785 = vunpack.c.l.b16 %v199
    %v786 = vunpack.c.h.b16 %v199
    %v787 = vunpack.c.l.b16 %v200
    %v788 = vunpack.c.h.b16 %v200
    %v789 = vunpack.c.l.b16 %v201
    %v790 = vunpack.c.h.b16 %v201
    %v791 = vunpack.c.l.b16 %v202
    %v792 = vunpack.c.h.b16 %v202
    %v793 = vunpack.c.l.b16 %v203
    %v794 = vunpack.c.h.b16 %v203
    %v795 = vunpack.c.l.b16 %v204
    %v796 = vunpack.c.h.b16 %v204
    %v797 = vunpack.c.l.b16 %v205
    %v798 = vunpack.c.h.b16 %v205
    %v799 = vunpack.c.l.b16 %v206
    %v800 = vunpack.c.h.b16 %v206
    %v801 = vunpack.c.l.b16 %v207
    %v802 = vunpack.c.h.b16 %v207
    %v803 = vunpack.c.l.b16 %v208
    %v804 = vunpack.c.h.b16 %v208
    %v805 = vunpack.c.l.b16 %v209
    %v806 = vunpack.c.h.b16 %v209
    %v807 = vunpack.c.l.b16 %v210
    %v808 = vunpack.c.h.b16 %v210
    %v809 = vunpack.c.l.b16 %v211
    %v810 = vunpack.c.h.b16 %v211
    %v811 = vunpack.c.l.b16 %v212
    %v812 = vunpack.c.h.b16 %v212
    %v813 = vunpack.c.l.b16 %v213
    %v814 = vunpack.c.h.b16 %v213
    %v815 = vunpack.c.l.b16 %v214
    %v816 = vunpack.c.h.b16 %v214
    %v817 = vunpack.c.l.b16 %v215
    %v818 = vunpack.c.h.b16 %v215
    %v819 = vunpack.c.l.b16 %v216
    %v820 = vunpack.c.h.b16 %v216
    %v821 = vunpack.c.l.b16 %v217
    %v822 = vunpack.c.h.b16 %v217
    %v823 = vunpack.c.l.b16 %v218
    %v824 = vunpack.c.h.b16 %v218
    %v825 = vunpack.c.l.b16 %v219
    %v826 = vunpack.c.h.b16 %v219
    %v827 = vunpack.c.l.b16 %v220
    %v828 = vunpack.c.h.b16 %v220
    %v829 = vunpack.c.l.b16 %v221
    %v830 = vunpack.c.h.b16 %v221
    %v831 = vunpack.c.l.b16 %v222
    %v832 = vunpack.c.h.b16 %v222
    %v833 = vunpack.c.l.b16 %v223
    %v834 = vunpack.c.h.b16 %v223
    %v835 = vunpack.c.l.b16 %v224
    %v836 = vunpack.c.h.b16 %v224
    %v837 = vunpack.c.l.b16 %v225
    %v838 = vunpack.c.h.b16 %v225
    %v839 = vunpack.c.l.b16 %v226
    %v840 = vunpack.c.h.b16 %v226
    %v841 = vunpack.c.l.b16 %v227
    %v842 = vunpack.c.h.b16 %v227
    %v843 = vunpack.c.l.b16 %v228
    %v844 = vunpack.c.h.b16 %v228
    %v845 = vunpack.c.l.b16 %v229
    %v846 = vunpack.c.h.b16 %v229
    %v847 = vunpack.c.l.b16 %v230
    %v848 = vunpack.c.h.b16 %v230
    %v849 = vunpack.c.l.b16 %v231
    %v850 = vunpack.c.h.b16 %v231
    %v851 = vunpack.c.l.b16 %v232
    %v852 = vunpack.c.h.b16 %v232
    %v853 = vunpack.c.l.b16 %v233
    %v854 = vunpack.c.h.b16 %v233
    %v855 = vunpack.c.l.b16 %v234
    %v856 = vunpack.c.h.b16 %v234
    %v857 = vunpack.c.l.b16 %v235
    %v858 = vunpack.c.h.b16 %v235
    %v859 = vunpack.c.l.b16 %v236
    %v860 = vunpack.c.h.b16 %v236
    %v861 = vunpack.c.l.b16 %v237
    %v862 = vunpack.c.h.b16 %v237
    %v863 = vunpack.c.l.b16 %v238
    %v864 = vunpack.c.h.b16 %v238
    %v865 = vunpack.c.l.b16 %v239
    %v866 = vunpack.c.h.b16 %v239
    %v867 = vunpack.c.l.b16 %v240
    %v868 = vunpack.c.h.b16 %v240
    %v869 = vunpack.c.l.b16 %v241
    %v870 = vunpack.c.h.b16 %v241
    %v871 = vunpack.c.l.b16 %v242
    %v872 = vunpack.c.h.b16 %v242
    %v873 = vunpack.c.l.b16 %v243
    %v874 = vunpack.c.h.b16 %v243
    %v875 = vunpack.c.l.b16 %v244
    %v876 = vunpack.c.h.b16 %v244
    %v877 = vunpack.c.l.b16 %v245
    %v878 = vunpack.c.h.b16 %v245
    %v879 = vunpack.c.l.b16 %v246
    %v880 = vunpack.c.h.b16 %v246
    %v881 = vunpack.c.l.b16 %v247
    %v882 = vunpack.c.h.b16 %v247
    %v883 = vunpack.c.l.b16 %v248
    %v884 = vunpack.c.h.b16 %v248
    %v885 = vunpack.c.l.b16 %v249
    %v886 = vunpack.c.h.b16 %v249
    %v887 = vunpack.c.l.b16 %v250
    %v888 = vunpack.c.h.b16 %v250
    %v889 = vunpack.c.l.b16 %v251
    %v890 = vunpack.c.h.b16 %v251
    %v891 = vunpack.c.l.b16 %v252
    %v892 = vunpack.c.h.b16 %v252
    %v893 = vunpack.c.l.b16 %v253
    %v894 = vunpack.c.h.b16 %v253
    %v895 = vunpack.c.l.b16 %v254
    %v896 = vunpack.c.h.b16 %v254
    %v897 = vunpack.c.l.b16 %v255
    %v898 = vunpack.c.h.b16 %v255
    %v899 = vunpack.c.l.b16 %v256
    %v900 = vunpack.c.h.b16 %v256
    %v901 = vunpack.c.l.b16 %v257
    %v902 = vunpack.c.h.b16 %v257
    %v903 = vunpack.c.l.b16 %v258
    %v904 = vunpack.c.h.b16 %v258
    %v905 = vunpack.c.l.b16 %v259
    %v906 = vunpack.c.h.b16 %v259
    %v907 = vunpack.c.l.b16 %v260
    %v908 = vunpack.c.h.b16 %v260
    %v909 = vunpack.c.l.b16 %v261
    %v910 = vunpack.c.h.b16 %v261
    %v911 = vunpack.c.l.b16 %v262
    %v912 = vunpack.c.h.b16 %v262
    %v913 = vunpack.c.l.b16 %v263
    %v914 = vunpack.c.h.b16 %v263
    %v915 = vunpack.c.l.b16 %v264
    %v916 = vunpack.c.h.b16 %v264
    %v917 = vunpack.c.l.b16 %v265
    %v918 = vunpack.c.h.b16 %v265
    %v919 = vunpack.c.l.b16 %v266
    %v920 = vunpack.c.h.b16 %v266
    %v921 = vunpack.c.l.b16 %v267
    %v922 = vunpack.c.h.b16 %v267
    %v923 = vunpack.c.l.b16 %v268
    %v924 = vunpack.c.h.b16 %v268
    %v925 = vunpack.c.l.b16 %v269
    %v926 = vunpack.c.h.b16 %v269
    %v927 = vunpack.c.l.b16 %v270
    %v928 = vunpack.c.h.b16 %v270
    %v929 = vunpack.c.l.b16 %v271
    %v930 = vunpack.c.h.b16 %v271
    %v931 = vunpack.c.l.b16 %v272
    %v932 = vunpack.c.h.b16 %v272
    %v933 = vunpack.c.l.b16 %v273
    %v934 = vunpack.c.h.b16 %v273
    %v935 = vunpack.c.l.b16 %v274
    %v936 = vunpack.c.h.b16 %v274
    %v937 = vunpack.c.l.b16 %v275
    %v938 = vunpack.c.h.b16 %v275
    %v939 = vunpack.c.l.b16 %v276
    %v940 = vunpack.c.h.b16 %v276
    %v941 = vunpack.c.l.b16 %v277
    %v942 = vunpack.c.h.b16 %v277
    %v943 = vunpack.c.l.b16 %v278
    %v944 = vunpack.c.h.b16 %v278
    %v945 = vunpack.c.l.b16 %v279
    %v946 = vunpack.c.h.b16 %v279
    %v947 = vunpack.c.l.b16 %v280
    %v948 = vunpack.c.h.b16 %v280
    %v949 = vunpack.c.l.b16 %v281
    %v950 = vunpack.c.h.b16 %v281
    %v951 = vunpack.c.l.b16 %v282
    %v952 = vunpack.c.h.b16 %v282
    %v953 = vunpack.c.l.b16 %v283
    %v954 = vunpack.c.h.b16 %v283
    %v955 = vunpack.c.l.b16 %v284
    %v956 = vunpack.c.h.b16 %v284
    %v957 = vunpack.c.l.b16 %v285
    %v958 = vunpack.c.h.b16 %v285
    %v959 = vunpack.c.l.b16 %v286
    %v960 = vunpack.c.h.b16 %v286
    %v961 = vunpack.c.l.b16 %v287
    %v962 = vunpack.c.h.b16 %v287
    %v963 = vunpack.c.l.b16 %v288
    %v964 = vunpack.c.h.b16 %v288
    %v965 = vunpack.c.l.b16 %v289
    %v966 = vunpack.c.h.b16 %v289
    %v967 = vunpack.c.l.b16 %v290
    %v968 = vunpack.c.h.b16 %v290
    %v969 = vunpack.c.l.b16 %v291
    %v970 = vunpack.c.h.b16 %v291
    %v971 = vunpack.c.l.b16 %v292
    %v972 = vunpack.c.h.b16 %v292
    %v973 = vunpack.c.l.b16 %v293
    %v974 = vunpack.c.h.b16 %v293
    %v975 = vunpack.c.l.b16 %v294
    %v976 = vunpack.c.h.b16 %v294
    %v977 = vunpack.c.l.b16 %v295
    %v978 = vunpack.c.h.b16 %v295
    %v979 = vunpack.c.l.b16 %v296
    %v980 = vunpack.c.h.b16 %v296
    %v981 = vunpack.c.l.b16 %v297
    %v982 = vunpack.c.h.b16 %v297
    %v983 = vunpack.c.l.b16 %v298
    %v984 = vunpack.c.h.b16 %v298
    %v985 = vunpack.c.l.b16 %v299
    %v986 = vunpack.c.h.b16 %v299
    %v987 = vunpack.c.l.b16 %v300
    %v988 = vunpack.c.h.b16 %v300
    %v989 = vunpack.c.l.b16 %v301
    %v990 = vunpack.c.h.b16 %v301
    %v991 = vunpack.c.l.b16 %v302
    %v992 = vunpack.c.h.b16 %v302
    %v993 = vunpack.c.l.b16 %v303
    %v994 = vunpack.c.h.b16 %v303
    %v995 = vunpack.c.l.b16 %v304
    %v996 = vunpack.c.h.b16 %v304
    %v997 = vunpack.c.l.b16 %v305
    %v998 = vunpack.c.h.b16 %v305
    %v999 = vunpack.c.l.b16 %v306
    %v1000 = vunpack.c.h.b16 %v306
    %v1001 = vunpack.c.l.b16 %v307
    %v1002 = vunpack.c.h.b16 %v307
    %v1003 = vunpack.c.l.b16 %v308
    %v1004 = vunpack.c.h.b16 %v308
    %v1005 = vunpack.c.l.b16 %v309
    %v1006 = vunpack.c.h.b16 %v309
    %v1007 = vunpack.c.l.b16 %v310
    %v1008 = vunpack.c.h.b16 %v310
    %v1009 = vunpack.c.l.b16 %v311
    %v1010 = vunpack.c.h.b16 %v311
    %v1011 = vunpack.c.l.b16 %v312
    %v1012 = vunpack.c.h.b16 %v312
    %v1013 = vunpack.c.l.b16 %v313
    %v1014 = vunpack.c.h.b16 %v313
    %v1015 = vunpack.c.l.b16 %v314
    %v1016 = vunpack.c.h.b16 %v314
    %v1017 = vunpack.c.l.b16 %v315
    %v1018 = vunpack.c.h.b16 %v315
    %v1019 = vunpack.c.l.b16 %v316
    %v1020 = vunpack.c.h.b16 %v316
    %v1021 = vunpack.c.l.b16 %v317
    %v1022 = vunpack.c.h.b16 %v317
    %v1023 = vunpack.c.l.b16 %v318
    %v1024 = vunpack.c.h.b16 %v318
    %v1025 = vunpack.c.l.b16 %v319
    %v1026 = vunpack.c.h.b16 %v319
    %v1027 = vunpack.c.l.b16 %v320
    %v1028 = vunpack.c.h.b16 %v320
    %v1029 = vpack.c.b16 %v585, %v581
    %v1030 = vpack.c.b16 %v586, %v582
    %v1031 = vpack.c.b16 %v587, %v583
    %v1032 = vpack.c.b16 %v588, %v584
    %v1033 = vpack.c.b16 %v593, %v589
    %v1034 = vpack.c.b16 %v594, %v590
    %v1035 = vpack.c.b16 %v595, %v591
    %v1036 = vpack.c.b16 %v596, %v592
    %v1037 = vpack.c.b16 %v601, %v597
    %v1038 = vpack.c.b16 %v602, %v598
    %v1039 = vpack.c.b16 %v603, %v599
    %v1040 = vpack.c.b16 %v604, %v600
    %v1041 = vpack.c.b16 %v609, %v605
    %v1042 = vpack.c.b16 %v610, %v606
    %v1043 = vpack.c.b16 %v611, %v607
    %v1044 = vpack.c.b16 %v612, %v608
    %v1045 = vpack.c.b16 %v617, %v613
    %v1046 = vpack.c.b16 %v618, %v614
    %v1047 = vpack.c.b16 %v619, %v615
    %v1048 = vpack.c.b16 %v620, %v616
    %v1049 = vpack.c.b16 %v625, %v621
    %v1050 = vpack.c.b16 %v626, %v622
    %v1051 = vpack.c.b16 %v627, %v623
    %v1052 = vpack.c.b16 %v628, %v624
    %v1053 = vpack.c.b16 %v633, %v629
    %v1054 = vpack.c.b16 %v634, %v630
    %v1055 = vpack.c.b16 %v635, %v631
    %v1056 = vpack.c.b16 %v636, %v632
    %v1057 = vpack.c.b16 %v641, %v637
    %v1058 = vpack.c.b16 %v642, %v638
    %v1059 = vpack.c.b16 %v643, %v639
    %v1060 = vpack.c.b16 %v644, %v640
    %v1061 = vpack.c.b16 %v649, %v645
    %v1062 = vpack.c.b16 %v650, %v646
    %v1063 = vpack.c.b16 %v651, %v647
    %v1064 = vpack.c.b16 %v652, %v648
    %v1065 = vpack.c.b16 %v657, %v653
    %v1066 = vpack.c.b16 %v658, %v654
    %v1067 = vpack.c.b16 %v659, %v655
    %v1068 = vpack.c.b16 %v660, %v656
    %v1069 = vpack.c.b16 %v665, %v661
    %v1070 = vpack.c.b16 %v666, %v662
    %v1071 = vpack.c.b16 %v667, %v663
    %v1072 = vpack.c.b16 %v668, %v664
    %v1073 = vpack.c.b16 %v673, %v669
    %v1074 = vpack.c.b16 %v674, %v670
    %v1075 = vpack.c.b16 %v675, %v671
    %v1076 = vpack.c.b16 %v676, %v672
    %v1077 = vpack.c.b16 %v681, %v677
    %v1078 = vpack.c.b16 %v682, %v678
    %v1079 = vpack.c.b16 %v683, %v679
    %v1080 = vpack.c.b16 %v684, %v680
    %v1081 = vpack.c.b16 %v689, %v685
    %v1082 = vpack.c.b16 %v690, %v686
    %v1083 = vpack.c.b16 %v691, %v687
    %v1084 = vpack.c.b16 %v692, %v688
    %v1085 = vpack.c.b16 %v697, %v693
    %v1086 = vpack.c.b16 %v698, %v694
    %v1087 = vpack.c.b16 %v699, %v695
    %v1088 = vpack.c.b16 %v700, %v696
    %v1089 = vpack.c.b16 %v705, %v701
    %v1090 = vpack.c.b16 %v706, %v702
    %v1091 = vpack.c.b16 %v707, %v703
    %v1092 = vpack.c.b16 %v708, %v704
    %v1093 = vpack.c.b16 %v713, %v709
    %v1094 = vpack.c.b16 %v714, %v710
    %v1095 = vpack.c.b16 %v715, %v711
    %v1096 = vpack.c.b16 %v716, %v712
    %v1097 = vpack.c.b16 %v721, %v717
    %v1098 = vpack.c.b16 %v722, %v718
    %v1099 = vpack.c.b16 %v723, %v719
    %v1100 = vpack.c.b16 %v724, %v720
    %v1101 = vpack.c.b16 %v729, %v725
    %v1102 = vpack.c.b16 %v730, %v726
    %v1103 = vpack.c.b16 %v731, %v727
    %v1104 = vpack.c.b16 %v732, %v728
    %v1105 = vpack.c.b16 %v737, %v733
    %v1106 = vpack.c.b16 %v738, %v734
    %v1107 = vpack.c.b16 %v739, %v735
    %v1108 = vpack.c.b16 %v740, %v736
    %v1109 = vpack.c.b16 %v745, %v741
    %v1110 = vpack.c.b16 %v746, %v742
    %v1111 = vpack.c.b16 %v747, %v743
    %v1112 = vpack.c.b16 %v748, %v744
    %v1113 = vpack.c.b16 %v753, %v749
    %v1114 = vpack.c.b16 %v754, %v750
    %v1115 = vpack.c.b16 %v755, %v751
    %v1116 = vpack.c.b16 %v756, %v752
    %v1117 = vpack.c.b16 %v761, %v757
    %v1118 = vpack.c.b16 %v762, %v758
    %v1119 = vpack.c.b16 %v763, %v759
    %v1120 = vpack.c.b16 %v764, %v760
    %v1121 = vpack.c.b16 %v769, %v765
    %v1122 = vpack.c.b16 %v770, %v766
    %v1123 = vpack.c.b16 %v771, %v767
    %v1124 = vpack.c.b16 %v772, %v768
    %v1125 = vpack.c.b16 %v777, %v773
    %v1126 = vpack.c.b16 %v778, %v774
    %v1127 = vpack.c.b16 %v779, %v775
    %v1128 = vpack.c.b16 %v780, %v776
    %v1129 = vpack.c.b16 %v785, %v781
    %v1130 = vpack.c.b16 %v786, %v782
    %v1131 = vpack.c.b16 %v787, %v783
    %v1132 = vpack.c.b16 %v788, %v784
    %v1133 = vpack.c.b16 %v793, %v789
    %v1134 = vpack.c.b16 %v794, %v790
    %v1135 = vpack.c.b16 %v795, %v791
    %v1136 = vpack.c.b16 %v796, %v792
    %v1137 = vpack.c.b16 %v801, %v797
    %v1138 = vpack.c.b16 %v802, %v798
    %v1139 = vpack.c.b16 %v803, %v799
    %v1140 = vpack.c.b16 %v804, %v800
    %v1141 = vpack.c.b16 %v809, %v805
    %v1142 = vpack.c.b16 %v810, %v806
    %v1143 = vpack.c.b16 %v811, %v807
    %v1144 = vpack.c.b16 %v812, %v808
    %v1145 = vpack.c.b16 %v817, %v813
    %v1146 = vpack.c.b16 %v818, %v814
    %v1147 = vpack.c.b16 %v819, %v815
    %v1148 = vpack.c.b16 %v820, %v816
    %v1149 = vpack.c.b16 %v825, %v821
    %v1150 = vpack.c.b16 %v826, %v822
    %v1151 = vpack.c.b16 %v827, %v823
    %v1152 = vpack.c.b16 %v828, %v824
    %v1153 = vpack.c.b16 %v833, %v829
    %v1154 = vpack.c.b16 %v834, %v830
    %v1155 = vpack.c.b16 %v835, %v831
    %v1156 = vpack.c.b16 %v836, %v832
    %v1157 = vpack.c.b16 %v841, %v837
    %v1158 = vpack.c.b16 %v842, %v838
    %v1159 = vpack.c.b16 %v843, %v839
    %v1160 = vpack.c.b16 %v844, %v840
    %v1161 = vpack.c.b16 %v849, %v845
    %v1162 = vpack.c.b16 %v850, %v846
    %v1163 = vpack.c.b16 %v851, %v847
    %v1164 = vpack.c.b16 %v852, %v848
    %v1165 = vpack.c.b16 %v857, %v853
    %v1166 = vpack.c.b16 %v858, %v854
    %v1167 = vpack.c.b16 %v859, %v855
    %v1168 = vpack.c.b16 %v860, %v856
    %v1169 = vpack.c.b16 %v865, %v861
    %v1170 = vpack.c.b16 %v866, %v862
    %v1171 = vpack.c.b16 %v867, %v863
    %v1172 = vpack.c.b16 %v868, %v864
    %v1173 = vpack.c.b16 %v873, %v869
    %v1174 = vpack.c.b16 %v874, %v870
    %v1175 = vpack.c.b16 %v875, %v871
    %v1176 = vpack.c.b16 %v876, %v872
    %v1177 = vpack.c.b16 %v881, %v877
    %v1178 = vpack.c.b16 %v882, %v878
    %v1179 = vpack.c.b16 %v883, %v879
    %v1180 = vpack.c.b16 %v884, %v880
    %v1181 = vpack.c.b16 %v889, %v885
    %v1182 = vpack.c.b16 %v890, %v886
    %v1183 = vpack.c.b16 %v891, %v887
    %v1184 = vpack.c.b16 %v892, %v888
    %v1185 = vpack.c.b16 %v897, %v893
    %v1186 = vpack.c.b16 %v898, %v894
    %v1187 = vpack.c.b16 %v899, %v895
    %v1188 = vpack.c.b16 %v900, %v896
    %v1189 = vpack.c.b16 %v905, %v901
    %v1190 = vpack.c.b16 %v906, %v902
    %v1191 = vpack.c.b16 %v907, %v903
    %v1192 = vpack.c.b16 %v908, %v904
    %v1193 = vpack.c.b16 %v913, %v909
    %v1194 = vpack.c.b16 %v914, %v910
    %v1195 = vpack.c.b16 %v915, %v911
    %v1196 = vpack.c.b16 %v916, %v912
    %v1197 = vpack.c.b16 %v921, %v917
    %v1198 = vpack.c.b16 %v922, %v918
    %v1199 = vpack.c.b16 %v923, %v919
    %v1200 = vpack.c.b16 %v924, %v920
    %v1201 = vpack.c.b16 %v929, %v925
    %v1202 = vpack.c.b16 %v930, %v926
    %v1203 = vpack.c.b16 %v931, %v927
    %v1204 = vpack.c.b16 %v932, %v928
    %v1205 = vpack.c.b16 %v937, %v933
    %v1206 = vpack.c.b16 %v938, %v934
    %v1207 = vpack.c.b16 %v939, %v935
    %v1208 = vpack.c.b16 %v940, %v936
    %v1209 = vpack.c.b16 %v945, %v941
    %v1210 = vpack.c.b16 %v946, %v942
    %v1211 = vpack.c.b16 %v947, %v943
    %v1212 = vpack.c.b16 %v948, %v944
    %v1213 = vpack.c.b16 %v953, %v949
    %v1214 = vpack.c.b16 %v954, %v950
    %v1215 = vpack.c.b16 %v955, %v951
    %v1216 = vpack.c.b16 %v956, %v952
    %v1217 = vpack.c.b16 %v961, %v957
    %v1218 = vpack.c.b16 %v962, %v958
    %v1219 = vpack.c.b16 %v963, %v959
    %v1220 = vpack.c.b16 %v964, %v960
    %v1221 = vpack.c.b16 %v969, %v965
    %v1222 = vpack.c.b16 %v970, %v966
    %v1223 = vpack.c.b16 %v971, %v967
    %v1224 = vpack.c.b16 %v972, %v968
    %v1225 = vpack.c.b16 %v977, %v973
    %v1226 = vpack.c.b16 %v978, %v974
    %v1227 = vpack.c.b16 %v979, %v975
    %v1228 = vpack.c.b16 %v980, %v976
    %v1229 = vpack.c.b16 %v985, %v981
    %v1230 = vpack.c.b16 %v986, %v982
    %v1231 = vpack.c.b16 %v987, %v983
    %v1232 = vpack.c.b16 %v988, %v984
    %v1233 = vpack.c.b16 %v993, %v989
    %v1234 = vpack.c.b16 %v994, %v990
    %v1235 = vpack.c.b16 %v995, %v991
    %v1236 = vpack.c.b16 %v996, %v992
    %v1237 = vpack.c.b16 %v1001, %v997
    %v1238 = vpack.c.b16 %v1002, %v998
    %v1239 = vpack.c.b16 %v1003, %v999
    %v1240 = vpack.c.b16 %v1004, %v1000
    %v1241 = vpack.c.b16 %v1009, %v1005
    %v1242 = vpack.c.b16 %v1010, %v1006
    %v1243 = vpack.c.b16 %v1011, %v1007
    %v1244 = vpack.c.b16 %v1012, %v1008
    %v1245 = vpack.c.b16 %v1017, %v1013
    %v1246 = vpack.c.b16 %v1018, %v1014
    %v1247 = vpack.c.b16 %v1019, %v1015
    %v1248 = vpack.c.b16 %v1020, %v1016
    %v1249 = vpack.c.b16 %v1025, %v1021
    %v1250 = vpack.c.b16 %v1026, %v1022
    %v1251 = vpack.c.b16 %v1027, %v1023
    %v1252 = vpack.c.b16 %v1028, %v1024
    %1477 = vmatprep.subr.bf16.mxu0 %v1030
    %1478 = vmatpush1.bf16.msra.mxu0 %v1029
    %1479 = vmatprep.subr.bf16.mxu0 %v1034
    %1480 = vmatpush1.bf16.msra.mxu0 %v1033
    %1481 = vmatprep.subr.bf16.mxu0 %v1038
    %1482 = vmatpush1.bf16.msra.mxu0 %v1037
    %1483 = vmatprep.subr.bf16.mxu0 %v1042
    %1484 = vmatpush1.bf16.msra.mxu0 %v1041
    %1485 = vmatprep.subr.bf16.mxu0 %v1046
    %1486 = vmatpush1.bf16.msra.mxu0 %v1045
    %1487 = vmatprep.subr.bf16.mxu0 %v1050
    %1488 = vmatpush1.bf16.msra.mxu0 %v1049
    %1489 = vmatprep.subr.bf16.mxu0 %v1054
    %1490 = vmatpush1.bf16.msra.mxu0 %v1053
    %1491 = vmatprep.subr.bf16.mxu0 %v1058
    %1492 = vmatpush1.bf16.msra.mxu0 %v1057
    %1493 = vmatprep.subr.bf16.mxu0 %v1062
    %1494 = vmatpush1.bf16.msra.mxu0 %v1061
    %1495 = vmatprep.subr.bf16.mxu0 %v1066
    %1496 = vmatpush1.bf16.msra.mxu0 %v1065
    %1497 = vmatprep.subr.bf16.mxu0 %v1070
    %1498 = vmatpush1.bf16.msra.mxu0 %v1069
    %1499 = vmatprep.subr.bf16.mxu0 %v1074
    %1500 = vmatpush1.bf16.msra.mxu0 %v1073
    %1501 = vmatprep.subr.bf16.mxu0 %v1078
    %1502 = vmatpush1.bf16.msra.mxu0 %v1077
    %1503 = vmatprep.subr.bf16.mxu0 %v1082
    %1504 = vmatpush1.bf16.msra.mxu0 %v1081
    %1505 = vmatprep.subr.bf16.mxu0 %v1086
    %1506 = vmatpush1.bf16.msra.mxu0 %v1085
    %1507 = vmatprep.subr.bf16.mxu0 %v1090
    %1508 = vmatpush1.bf16.msra.mxu0 %v1089
    %1509 = vmatprep.mubr.bf16.mxu0 %v344
    %1510 = vmatmul.mubr.bf16.gmra.mrb[0].mxu0 %v343
    %v1511 = vpop.f32.mrb[0].mxu0
    %v1512 = vadd.f32 0.0, %v1511
    %v1513 = vpop.f32.mrb[0].mxu0
    %v1514 = vadd.f32 0.0, %v1513
    %v1515 = vpop.f32.mrb[0].mxu0
    %v1516 = vadd.f32 0.0, %v1515
    %v1517 = vpop.f32.mrb[0].mxu0
    %v1518 = vadd.f32 0.0, %v1517
    %1519 = vdwg.mxu0
    %1520 = vmatprep.subr.bf16.mxu0 %v1094
    %1521 = vmatpush1.bf16.msra.mxu0 %v1093
    %1522 = vmatprep.subr.bf16.mxu0 %v1098
    %1523 = vmatpush1.bf16.msra.mxu0 %v1097
    %1524 = vmatprep.subr.bf16.mxu0 %v1102
    %1525 = vmatpush1.bf16.msra.mxu0 %v1101
    %1526 = vmatprep.subr.bf16.mxu0 %v1106
    %1527 = vmatpush1.bf16.msra.mxu0 %v1105
    %1528 = vmatprep.subr.bf16.mxu0 %v1110
    %1529 = vmatpush1.bf16.msra.mxu0 %v1109
    %1530 = vmatprep.subr.bf16.mxu0 %v1114
    %1531 = vmatpush1.bf16.msra.mxu0 %v1113
    %1532 = vmatprep.subr.bf16.mxu0 %v1118
    %1533 = vmatpush1.bf16.msra.mxu0 %v1117
    %1534 = vmatprep.subr.bf16.mxu0 %v1122
    %1535 = vmatpush1.bf16.msra.mxu0 %v1121
    %1536 = vmatprep.subr.bf16.mxu0 %v1126
    %1537 = vmatpush1.bf16.msra.mxu0 %v1125
    %1538 = vmatprep.subr.bf16.mxu0 %v1130
    %1539 = vmatpush1.bf16.msra.mxu0 %v1129
    %1540 = vmatprep.subr.bf16.mxu0 %v1134
    %1541 = vmatpush1.bf16.msra.mxu0 %v1133
    %1542 = vmatprep.subr.bf16.mxu0 %v1138
    %1543 = vmatpush1.bf16.msra.mxu0 %v1137
    %1544 = vmatprep.subr.bf16.mxu0 %v1142
    %1545 = vmatpush1.bf16.msra.mxu0 %v1141
    %1546 = vmatprep.subr.bf16.mxu0 %v1146
    %1547 = vmatpush1.bf16.msra.mxu0 %v1145
    %1548 = vmatprep.subr.bf16.mxu0 %v1150
    %1549 = vmatpush1.bf16.msra.mxu0 %v1149
    %1550 = vmatprep.subr.bf16.mxu0 %v1154
    %1551 = vmatpush1.bf16.msra.mxu0 %v1153
    %1552 = vmatprep.mubr.bf16.mxu0 %v346
    %1553 = vmatmul.mubr.bf16.gmra.mrb[0].mxu0 %v345
    %v1554 = vpop.f32.mrb[0].mxu0
    %v1555 = vadd.f32 %v1512, %v1554
    %v1556 = vpop.f32.mrb[0].mxu0
    %v1557 = vadd.f32 %v1514, %v1556
    %v1558 = vpop.f32.mrb[0].mxu0
    %v1559 = vadd.f32 %v1516, %v1558
    %v1560 = vpop.f32.mrb[0].mxu0
    %v1561 = vadd.f32 %v1518, %v1560
    %1562 = vdwg.mxu0
    %1563 = vmatprep.subr.bf16.mxu0 %v1158
    %1564 = vmatpush1.bf16.msra.mxu0 %v1157
    %1565 = vmatprep.subr.bf16.mxu0 %v1162
    %1566 = vmatpush1.bf16.msra.mxu0 %v1161
    %1567 = vmatprep.subr.bf16.mxu0 %v1166
    %1568 = vmatpush1.bf16.msra.mxu0 %v1165
    %1569 = vmatprep.subr.bf16.mxu0 %v1170
    %1570 = vmatpush1.bf16.msra.mxu0 %v1169
    %1571 = vmatprep.subr.bf16.mxu0 %v1174
    %1572 = vmatpush1.bf16.msra.mxu0 %v1173
    %1573 = vmatprep.subr.bf16.mxu0 %v1178
    %1574 = vmatpush1.bf16.msra.mxu0 %v1177
    %1575 = vmatprep.subr.bf16.mxu0 %v1182
    %1576 = vmatpush1.bf16.msra.mxu0 %v1181
    %1577 = vmatprep.subr.bf16.mxu0 %v1186
    %1578 = vmatpush1.bf16.msra.mxu0 %v1185
    %1579 = vmatprep.subr.bf16.mxu0 %v1190
    %1580 = vmatpush1.bf16.msra.mxu0 %v1189
    %1581 = vmatprep.subr.bf16.mxu0 %v1194
    %1582 = vmatpush1.bf16.msra.mxu0 %v1193
    %1583 = vmatprep.subr.bf16.mxu0 %v1198
    %1584 = vmatpush1.bf16.msra.mxu0 %v1197
    %1585 = vmatprep.subr.bf16.mxu0 %v1202
    %1586 = vmatpush1.bf16.msra.mxu0 %v1201
    %1587 = vmatprep.subr.bf16.mxu0 %v1206
    %1588 = vmatpush1.bf16.msra.mxu0 %v1205
    %1589 = vmatprep.subr.bf16.mxu0 %v1210
    %1590 = vmatpush1.bf16.msra.mxu0 %v1209
    %1591 = vmatprep.subr.bf16.mxu0 %v1214
    %1592 = vmatpush1.bf16.msra.mxu0 %v1213
    %1593 = vmatprep.subr.bf16.mxu0 %v1218
    %1594 = vmatpush1.bf16.msra.mxu0 %v1217
    %1595 = vmatprep.mubr.bf16.mxu0 %v348
    %1596 = vmatmul.mubr.bf16.gmra.mrb[0].mxu0 %v347
    %v1597 = vpop.f32.mrb[0].mxu0
    %v1598 = vadd.f32 %v1555, %v1597
    %v1599 = vpop.f32.mrb[0].mxu0
    %v1600 = vadd.f32 %v1557, %v1599
    %v1601 = vpop.f32.mrb[0].mxu0
    %v1602 = vadd.f32 %v1559, %v1601
    %v1603 = vpop.f32.mrb[0].mxu0
    %v1604 = vadd.f32 %v1561, %v1603
    %1605 = vdwg.mxu0
    %1606 = vmatprep.subr.bf16.mxu0 %v1222
    %1607 = vmatpush1.bf16.msra.mxu0 %v1221
    %1608 = vmatprep.subr.bf16.mxu0 %v1226
    %1609 = vmatpush1.bf16.msra.mxu0 %v1225
    %1610 = vmatprep.subr.bf16.mxu0 %v1230
    %1611 = vmatpush1.bf16.msra.mxu0 %v1229
    %1612 = vmatprep.subr.bf16.mxu0 %v1234
    %1613 = vmatpush1.bf16.msra.mxu0 %v1233
    %1614 = vmatprep.subr.bf16.mxu0 %v1238
    %1615 = vmatpush1.bf16.msra.mxu0 %v1237
    %1616 = vmatprep.subr.bf16.mxu0 %v1242
    %1617 = vmatpush1.bf16.msra.mxu0 %v1241
    %1618 = vmatprep.subr.bf16.mxu0 %v1246
    %1619 = vmatpush1.bf16.msra.mxu0 %v1245
    %1620 = vmatprep.subr.bf16.mxu0 %v1250
    %1621 = vmatpush1.bf16.msra.mxu0 %v1249
    %1622 = vmatprep.subr.bf16.mxu0 0
    %1623 = vmatpush1.bf16.msra.mxu0 0
    %1624 = vmatprep.subr.bf16.mxu0 0
    %1625 = vmatpush1.bf16.msra.mxu0 0
    %1626 = vmatprep.subr.bf16.mxu0 0
    %1627 = vmatpush1.bf16.msra.mxu0 0
    %1628 = vmatprep.subr.bf16.mxu0 0
    %1629 = vmatpush1.bf16.msra.mxu0 0
    %1630 = vmatprep.subr.bf16.mxu0 0
    %1631 = vmatpush1.bf16.msra.mxu0 0
    %1632 = vmatprep.subr.bf16.mxu0 0
    %1633 = vmatpush1.bf16.msra.mxu0 0
    %1634 = vmatprep.subr.bf16.mxu0 0
    %1635 = vmatpush1.bf16.msra.mxu0 0
    %1636 = vmatprep.subr.bf16.mxu0 0
    %1637 = vmatpush1.bf16.msra.mxu0 0
    %1638 = vmatprep.mubr.bf16.mxu0 0
    %1639 = vmatmul.mubr.bf16.gmra.mrb[0].mxu0 %v349
    %v1640 = vpop.f32.mrb[0].mxu0
    %v1641 = vadd.f32 %v1598, %v1640
    %v1642 = vpop.f32.mrb[0].mxu0
    %v1643 = vadd.f32 %v1600, %v1642
    %v1644 = vpop.f32.mrb[0].mxu0
    %v1645 = vadd.f32 %v1602, %v1644
    %v1646 = vpop.f32.mrb[0].mxu0
    %v1647 = vadd.f32 %v1604, %v1646
    %1648 = vdwg.mxu0
    %1649 = vmatprep.subr.bf16.mxu0 %v1032
    %1650 = vmatpush1.bf16.msra.mxu0 %v1031
    %1651 = vmatprep.subr.bf16.mxu0 %v1036
    %1652 = vmatpush1.bf16.msra.mxu0 %v1035
    %1653 = vmatprep.subr.bf16.mxu0 %v1040
    %1654 = vmatpush1.bf16.msra.mxu0 %v1039
    %1655 = vmatprep.subr.bf16.mxu0 %v1044
    %1656 = vmatpush1.bf16.msra.mxu0 %v1043
    %1657 = vmatprep.subr.bf16.mxu0 %v1048
    %1658 = vmatpush1.bf16.msra.mxu0 %v1047
    %1659 = vmatprep.subr.bf16.mxu0 %v1052
    %1660 = vmatpush1.bf16.msra.mxu0 %v1051
    %1661 = vmatprep.subr.bf16.mxu0 %v1056
    %1662 = vmatpush1.bf16.msra.mxu0 %v1055
    %1663 = vmatprep.subr.bf16.mxu0 %v1060
    %1664 = vmatpush1.bf16.msra.mxu0 %v1059
    %1665 = vmatprep.subr.bf16.mxu0 %v1064
    %1666 = vmatpush1.bf16.msra.mxu0 %v1063
    %1667 = vmatprep.subr.bf16.mxu0 %v1068
    %1668 = vmatpush1.bf16.msra.mxu0 %v1067
    %1669 = vmatprep.subr.bf16.mxu0 %v1072
    %1670 = vmatpush1.bf16.msra.mxu0 %v1071
    %1671 = vmatprep.subr.bf16.mxu0 %v1076
    %1672 = vmatpush1.bf16.msra.mxu0 %v1075
    %1673 = vmatprep.subr.bf16.mxu0 %v1080
    %1674 = vmatpush1.bf16.msra.mxu0 %v1079
    %1675 = vmatprep.subr.bf16.mxu0 %v1084
    %1676 = vmatpush1.bf16.msra.mxu0 %v1083
    %1677 = vmatprep.subr.bf16.mxu0 %v1088
    %1678 = vmatpush1.bf16.msra.mxu0 %v1087
    %1679 = vmatprep.subr.bf16.mxu0 %v1092
    %1680 = vmatpush1.bf16.msra.mxu0 %v1091
    %1681 = vmatprep.mubr.bf16.mxu0 %v344
    %1682 = vmatmul.mubr.bf16.gmra.mrb[0].mxu0 %v343
    %v1683 = vpop.f32.mrb[0].mxu0
    %v1684 = vadd.f32 0.0, %v1683
    %v1685 = vpop.f32.mrb[0].mxu0
    %v1686 = vadd.f32 0.0, %v1685
    %v1687 = vpop.f32.mrb[0].mxu0
    %v1688 = vadd.f32 0.0, %v1687
    %v1689 = vpop.f32.mrb[0].mxu0
    %v1690 = vadd.f32 0.0, %v1689
    %1691 = vdwg.mxu0
    %1692 = vmatprep.subr.bf16.mxu0 %v1096
    %1693 = vmatpush1.bf16.msra.mxu0 %v1095
    %1694 = vmatprep.subr.bf16.mxu0 %v1100
    %1695 = vmatpush1.bf16.msra.mxu0 %v1099
    %1696 = vmatprep.subr.bf16.mxu0 %v1104
    %1697 = vmatpush1.bf16.msra.mxu0 %v1103
    %1698 = vmatprep.subr.bf16.mxu0 %v1108
    %1699 = vmatpush1.bf16.msra.mxu0 %v1107
    %1700 = vmatprep.subr.bf16.mxu0 %v1112
    %1701 = vmatpush1.bf16.msra.mxu0 %v1111
    %1702 = vmatprep.subr.bf16.mxu0 %v1116
    %1703 = vmatpush1.bf16.msra.mxu0 %v1115
    %1704 = vmatprep.subr.bf16.mxu0 %v1120
    %1705 = vmatpush1.bf16.msra.mxu0 %v1119
    %1706 = vmatprep.subr.bf16.mxu0 %v1124
    %1707 = vmatpush1.bf16.msra.mxu0 %v1123
    %1708 = vmatprep.subr.bf16.mxu0 %v1128
    %1709 = vmatpush1.bf16.msra.mxu0 %v1127
    %1710 = vmatprep.subr.bf16.mxu0 %v1132
    %1711 = vmatpush1.bf16.msra.mxu0 %v1131
    %1712 = vmatprep.subr.bf16.mxu0 %v1136
    %1713 = vmatpush1.bf16.msra.mxu0 %v1135
    %1714 = vmatprep.subr.bf16.mxu0 %v1140
    %1715 = vmatpush1.bf16.msra.mxu0 %v1139
    %1716 = vmatprep.subr.bf16.mxu0 %v1144
    %1717 = vmatpush1.bf16.msra.mxu0 %v1143
    %1718 = vmatprep.subr.bf16.mxu0 %v1148
    %1719 = vmatpush1.bf16.msra.mxu0 %v1147
    %1720 = vmatprep.subr.bf16.mxu0 %v1152
    %1721 = vmatpush1.bf16.msra.mxu0 %v1151
    %1722 = vmatprep.subr.bf16.mxu0 %v1156
    %1723 = vmatpush1.bf16.msra.mxu0 %v1155
    %1724 = vmatprep.mubr.bf16.mxu0 %v346
    %1725 = vmatmul.mubr.bf16.gmra.mrb[0].mxu0 %v345
    %v1726 = vpop.f32.mrb[0].mxu0
    %v1727 = vadd.f32 %v1684, %v1726
    %v1728 = vpop.f32.mrb[0].mxu0
    %v1729 = vadd.f32 %v1686, %v1728
    %v1730 = vpop.f32.mrb[0].mxu0
    %v1731 = vadd.f32 %v1688, %v1730
    %v1732 = vpop.f32.mrb[0].mxu0
    %v1733 = vadd.f32 %v1690, %v1732
    %1734 = vdwg.mxu0
    %1735 = vmatprep.subr.bf16.mxu0 %v1160
    %1736 = vmatpush1.bf16.msra.mxu0 %v1159
    %1737 = vmatprep.subr.bf16.mxu0 %v1164
    %1738 = vmatpush1.bf16.msra.mxu0 %v1163
    %1739 = vmatprep.subr.bf16.mxu0 %v1168
    %1740 = vmatpush1.bf16.msra.mxu0 %v1167
    %1741 = vmatprep.subr.bf16.mxu0 %v1172
    %1742 = vmatpush1.bf16.msra.mxu0 %v1171
    %1743 = vmatprep.subr.bf16.mxu0 %v1176
    %1744 = vmatpush1.bf16.msra.mxu0 %v1175
    %1745 = vmatprep.subr.bf16.mxu0 %v1180
    %1746 = vmatpush1.bf16.msra.mxu0 %v1179
    %1747 = vmatprep.subr.bf16.mxu0 %v1184
    %1748 = vmatpush1.bf16.msra.mxu0 %v1183
    %1749 = vmatprep.subr.bf16.mxu0 %v1188
    %1750 = vmatpush1.bf16.msra.mxu0 %v1187
    %1751 = vmatprep.subr.bf16.mxu0 %v1192
    %1752 = vmatpush1.bf16.msra.mxu0 %v1191
    %1753 = vmatprep.subr.bf16.mxu0 %v1196
    %1754 = vmatpush1.bf16.msra.mxu0 %v1195
    %1755 = vmatprep.subr.bf16.mxu0 %v1200
    %1756 = vmatpush1.bf16.msra.mxu0 %v1199
    %1757 = vmatprep.subr.bf16.mxu0 %v1204
    %1758 = vmatpush1.bf16.msra.mxu0 %v1203
    %1759 = vmatprep.subr.bf16.mxu0 %v1208
    %1760 = vmatpush1.bf16.msra.mxu0 %v1207
    %1761 = vmatprep.subr.bf16.mxu0 %v1212
    %1762 = vmatpush1.bf16.msra.mxu0 %v1211
    %1763 = vmatprep.subr.bf16.mxu0 %v1216
    %1764 = vmatpush1.bf16.msra.mxu0 %v1215
    %1765 = vmatprep.subr.bf16.mxu0 %v1220
    %1766 = vmatpush1.bf16.msra.mxu0 %v1219
    %1767 = vmatprep.mubr.bf16.mxu0 %v348
    %1768 = vmatmul.mubr.bf16.gmra.mrb[0].mxu0 %v347
    %v1769 = vpop.f32.mrb[0].mxu0
    %v1770 = vadd.f32 %v1727, %v1769
    %v1771 = vpop.f32.mrb[0].mxu0
    %v1772 = vadd.f32 %v1729, %v1771
    %v1773 = vpop.f32.mrb[0].mxu0
    %v1774 = vadd.f32 %v1731, %v1773
    %v1775 = vpop.f32.mrb[0].mxu0
    %v1776 = vadd.f32 %v1733, %v1775
    %1777 = vdwg.mxu0
    %1778 = vmatprep.subr.bf16.mxu0 %v1224
    %1779 = vmatpush1.bf16.msra.mxu0 %v1223
    %1780 = vmatprep.subr.bf16.mxu0 %v1228
    %1781 = vmatpush1.bf16.msra.mxu0 %v1227
    %1782 = vmatprep.subr.bf16.mxu0 %v1232
    %1783 = vmatpush1.bf16.msra.mxu0 %v1231
    %1784 = vmatprep.subr.bf16.mxu0 %v1236
    %1785 = vmatpush1.bf16.msra.mxu0 %v1235
    %1786 = vmatprep.subr.bf16.mxu0 %v1240
    %1787 = vmatpush1.bf16.msra.mxu0 %v1239
    %1788 = vmatprep.subr.bf16.mxu0 %v1244
    %1789 = vmatpush1.bf16.msra.mxu0 %v1243
    %1790 = vmatprep.subr.bf16.mxu0 %v1248
    %1791 = vmatpush1.bf16.msra.mxu0 %v1247
    %1792 = vmatprep.subr.bf16.mxu0 %v1252
    %1793 = vmatpush1.bf16.msra.mxu0 %v1251
    %1794 = vmatprep.subr.bf16.mxu0 0
    %1795 = vmatpush1.bf16.msra.mxu0 0
    %1796 = vmatprep.subr.bf16.mxu0 0
    %1797 = vmatpush1.bf16.msra.mxu0 0
    %1798 = vmatprep.subr.bf16.mxu0 0
    %1799 = vmatpush1.bf16.msra.mxu0 0
    %1800 = vmatprep.subr.bf16.mxu0 0
    %1801 = vmatpush1.bf16.msra.mxu0 0
    %1802 = vmatprep.subr.bf16.mxu0 0
    %1803 = vmatpush1.bf16.msra.mxu0 0
    %1804 = vmatprep.subr.bf16.mxu0 0
    %1805 = vmatpush1.bf16.msra.mxu0 0
    %1806 = vmatprep.subr.bf16.mxu0 0
    %1807 = vmatpush1.bf16.msra.mxu0 0
    %1808 = vmatprep.subr.bf16.mxu0 0
    %1809 = vmatpush1.bf16.msra.mxu0 0
    %1810 = vmatprep.mubr.bf16.mxu0 0
    %1811 = vmatmul.mubr.bf16.gmra.mrb[0].mxu0 %v349
    %v1812 = vpop.f32.mrb[0].mxu0
    %v1813 = vadd.f32 %v1770, %v1812
    %v1814 = vpop.f32.mrb[0].mxu0
    %v1815 = vadd.f32 %v1772, %v1814
    %v1816 = vpop.f32.mrb[0].mxu0
    %v1817 = vadd.f32 %v1774, %v1816
    %v1818 = vpop.f32.mrb[0].mxu0
    %v1819 = vadd.f32 %v1776, %v1818
    %1820 = vdwg.mxu0
    %v1822 = vlaneseq
    %v1823 = vshrl.u32 %v1822, 7
    %v1824 = vsub.s32 0, %v1823
    %v1825 = vrot.slane %v88, %v1824
    %v1826 = vlaneseq
    %v1827 = vshrl.u32 %v1826, 7
    %v1828 = vsub.s32 1, %v1827
    %v1829 = vrot.slane %v88, %v1828
    %v1830 = vlaneseq
    %v1831 = vshrl.u32 %v1830, 7
    %v1832 = vsub.s32 2, %v1831
    %v1833 = vrot.slane %v88, %v1832
    %v1834 = vlaneseq
    %v1835 = vshrl.u32 %v1834, 7
    %v1836 = vsub.s32 3, %v1835
    %v1837 = vrot.slane %v88, %v1836
    %v1842 = vadd.f32 %v1825, %v1641
    %v1843 = vadd.f32 %v1829, %v1643
    %v1844 = vadd.f32 %v1833, %v1813
    %v1845 = vadd.f32 %v1837, %v1815
    %v1846 = vadd.f32 %v1825, %v1645
    %v1847 = vadd.f32 %v1829, %v1647
    %v1848 = vadd.f32 %v1833, %v1817
    %v1849 = vadd.f32 %v1837, %v1819
    %v1850 = vld [vmem:[%s4] sm:$0xf]
    %v1851 = vpack.c.bf16 %v1846, %v1842
    %v1852 = vpack.c.bf16 %v1847, %v1843
    %v1853 = vpack.c.bf16 %v1848, %v1844
    %v1854 = vpack.c.bf16 %v1849, %v1845
    %v1855 = vld [vmem:[#allocation4] sm:$0xff]
    %v1856 = vld [vmem:[#allocation4 + $0x8] sm:$0xff]
    %v1857 = vld [vmem:[#allocation4 + $0x10] sm:$0xff]
    %v1858 = vld [vmem:[#allocation4 + $0x18] sm:$0xff]
    %v1859 = vld [vmem:[#allocation4 + $0x20] sm:$0xff]
    %v1860 = vld [vmem:[#allocation4 + $0x28] sm:$0xff]
    %v1861 = vld [vmem:[#allocation4 + $0x30] sm:$0xff]
    %v1862 = vld [vmem:[#allocation4 + $0x38] sm:$0xff]
    %v1863 = vld [vmem:[#allocation4 + $0x40] sm:$0xff]
    %v1864 = vld [vmem:[#allocation4 + $0x48] sm:$0xff]
    %v1865 = vld [vmem:[#allocation4 + $0x50] sm:$0xff]
    %v1866 = vld [vmem:[#allocation4 + $0x58] sm:$0xff]
    %v1867 = vld [vmem:[#allocation4 + $0x60] sm:$0xff]
    %v1868 = vld [vmem:[#allocation4 + $0x68] sm:$0xff]
    %v1869 = vld [vmem:[#allocation4 + $0x70] sm:$0xff]
    %v1870 = vld [vmem:[#allocation4 + $0x78] sm:$0xff]
    %v1871 = vld [vmem:[#allocation4 + $0x80] sm:$0xff]
    %v1872 = vld [vmem:[#allocation4 + $0x88] sm:$0xff]
    %v1873 = vld [vmem:[#allocation4 + $0x90] sm:$0xff]
    %v1874 = vld [vmem:[#allocation4 + $0x98] sm:$0xff]
    %v1875 = vld [vmem:[#allocation4 + $0xa0] sm:$0xff]
    %v1876 = vld [vmem:[#allocation4 + $0xa8] sm:$0xff]
    %v1877 = vld [vmem:[#allocation4 + $0xb0] sm:$0xff]
    %v1878 = vld [vmem:[#allocation4 + $0xb8] sm:$0xff]
    %v1879 = vld [vmem:[#allocation4 + $0xc0] sm:$0xff]
    %v1880 = vld [vmem:[#allocation4 + $0xc8] sm:$0xff]
    %v1881 = vld [vmem:[#allocation4 + $0xd0] sm:$0xff]
    %v1882 = vld [vmem:[#allocation4 + $0xd8] sm:$0xff]
    %v1883 = vld [vmem:[#allocation4 + $0xe0] sm:$0xff]
    %v1884 = vld [vmem:[#allocation4 + $0xe8] sm:$0xff]
    %v1885 = vld [vmem:[#allocation4 + $0xf0] sm:$0xff]
    %v1886 = vld [vmem:[#allocation4 + $0xf8] sm:$0xff]
    %v1887 = vld [vmem:[#allocation4 + $0x100] sm:$0xff]
    %v1888 = vld [vmem:[#allocation4 + $0x108] sm:$0xff]
    %v1889 = vld [vmem:[#allocation4 + $0x110] sm:$0xff]
    %v1890 = vld [vmem:[#allocation4 + $0x118] sm:$0xff]
    %v1891 = vld [vmem:[#allocation4 + $0x120] sm:$0xff]
    %v1892 = vld [vmem:[#allocation4 + $0x128] sm:$0xff]
    %v1893 = vld [vmem:[#allocation4 + $0x130] sm:$0xff]
    %v1894 = vld [vmem:[#allocation4 + $0x138] sm:$0xff]
    %v1895 = vld [vmem:[#allocation4 + $0x140] sm:$0xff]
    %v1896 = vld [vmem:[#allocation4 + $0x148] sm:$0xff]
    %v1897 = vld [vmem:[#allocation4 + $0x150] sm:$0xff]
    %v1898 = vld [vmem:[#allocation4 + $0x158] sm:$0xff]
    %v1899 = vld [vmem:[#allocation4 + $0x160] sm:$0xff]
    %v1900 = vld [vmem:[#allocation4 + $0x168] sm:$0xff]
    %v1901 = vld [vmem:[#allocation4 + $0x170] sm:$0xff]
    %v1902 = vld [vmem:[#allocation4 + $0x178] sm:$0xff]
    %v1903 = vld [vmem:[#allocation4 + $0x180] sm:$0xff]
    %v1904 = vld [vmem:[#allocation4 + $0x188] sm:$0xff]
    %v1905 = vld [vmem:[#allocation4 + $0x190] sm:$0xff]
    %v1906 = vld [vmem:[#allocation4 + $0x198] sm:$0xff]
    %v1907 = vld [vmem:[#allocation4 + $0x1a0] sm:$0xff]
    %v1908 = vld [vmem:[#allocation4 + $0x1a8] sm:$0xff]
    %v1909 = vld [vmem:[#allocation4 + $0x1b0] sm:$0xff]
    %v1910 = vld [vmem:[#allocation4 + $0x1b8] sm:$0xff]
    %v1911 = vld [vmem:[#allocation4 + $0x1c0] sm:$0xff]
    %v1912 = vld [vmem:[#allocation4 + $0x1c8] sm:$0xff]
    %v1913 = vld [vmem:[#allocation4 + $0x1d0] sm:$0xff]
    %v1914 = vld [vmem:[#allocation4 + $0x1d8] sm:$0xff]
    %v1915 = vld [vmem:[#allocation4 + $0x1e0] sm:$0xff]
    %v1916 = vld [vmem:[#allocation4 + $0x1e8] sm:$0xff]
    %v1917 = vld [vmem:[#allocation4 + $0x1f0] sm:$0xff]
    %v1918 = vld [vmem:[#allocation4 + $0x1f8] sm:$0xff]
    %v1919 = vld [vmem:[#allocation4 + $0x200] sm:$0xff]
    %v1920 = vld [vmem:[#allocation4 + $0x208] sm:$0xff]
    %v1921 = vld [vmem:[#allocation4 + $0x210] sm:$0xff]
    %v1922 = vld [vmem:[#allocation4 + $0x218] sm:$0xff]
    %v1923 = vld [vmem:[#allocation4 + $0x220] sm:$0xff]
    %v1924 = vld [vmem:[#allocation4 + $0x228] sm:$0xff]
    %v1925 = vld [vmem:[#allocation4 + $0x230] sm:$0xff]
    %v1926 = vld [vmem:[#allocation4 + $0x238] sm:$0xff]
    %v1927 = vld [vmem:[#allocation4 + $0x240] sm:$0xff]
    %v1928 = vld [vmem:[#allocation4 + $0x248] sm:$0xff]
    %v1929 = vld [vmem:[#allocation4 + $0x250] sm:$0xff]
    %v1930 = vld [vmem:[#allocation4 + $0x258] sm:$0xff]
    %v1931 = vld [vmem:[#allocation4 + $0x260] sm:$0xff]
    %v1932 = vld [vmem:[#allocation4 + $0x268] sm:$0xff]
    %v1933 = vld [vmem:[#allocation4 + $0x270] sm:$0xff]
    %v1934 = vld [vmem:[#allocation4 + $0x278] sm:$0xff]
    %v1935 = vld [vmem:[#allocation4 + $0x280] sm:$0xff]
    %v1936 = vld [vmem:[#allocation4 + $0x288] sm:$0xff]
    %v1937 = vld [vmem:[#allocation4 + $0x290] sm:$0xff]
    %v1938 = vld [vmem:[#allocation4 + $0x298] sm:$0xff]
    %v1939 = vld [vmem:[#allocation4 + $0x2a0] sm:$0xff]
    %v1940 = vld [vmem:[#allocation4 + $0x2a8] sm:$0xff]
    %v1941 = vld [vmem:[#allocation4 + $0x2b0] sm:$0xff]
    %v1942 = vld [vmem:[#allocation4 + $0x2b8] sm:$0xff]
    %v1943 = vld [vmem:[#allocation4 + $0x2c0] sm:$0xff]
    %v1944 = vld [vmem:[#allocation4 + $0x2c8] sm:$0xff]
    %v1945 = vld [vmem:[#allocation4 + $0x2d0] sm:$0xff]
    %v1946 = vld [vmem:[#allocation4 + $0x2d8] sm:$0xff]
    %v1947 = vld [vmem:[#allocation4 + $0x2e0] sm:$0xff]
    %v1948 = vld [vmem:[#allocation4 + $0x2e8] sm:$0xff]
    %v1949 = vld [vmem:[#allocation4 + $0x2f0] sm:$0xff]
    %v1950 = vld [vmem:[#allocation4 + $0x2f8] sm:$0xff]
    %v1951 = vld [vmem:[#allocation4 + $0x300] sm:$0xff]
    %v1952 = vld [vmem:[#allocation4 + $0x308] sm:$0xff]
    %v1953 = vld [vmem:[#allocation4 + $0x310] sm:$0xff]
    %v1954 = vld [vmem:[#allocation4 + $0x318] sm:$0xff]
    %v1955 = vld [vmem:[#allocation4 + $0x320] sm:$0xff]
    %v1956 = vld [vmem:[#allocation4 + $0x328] sm:$0xff]
    %v1957 = vld [vmem:[#allocation4 + $0x330] sm:$0xff]
    %v1958 = vld [vmem:[#allocation4 + $0x338] sm:$0xff]
    %v1959 = vld [vmem:[#allocation4 + $0x340] sm:$0xff]
    %v1960 = vld [vmem:[#allocation4 + $0x348] sm:$0xff]
    %v1961 = vld [vmem:[#allocation4 + $0x350] sm:$0xff]
    %v1962 = vld [vmem:[#allocation4 + $0x358] sm:$0xff]
    %v1963 = vld [vmem:[#allocation4 + $0x360] sm:$0xff]
    %v1964 = vld [vmem:[#allocation4 + $0x368] sm:$0xff]
    %v1965 = vld [vmem:[#allocation4 + $0x370] sm:$0xff]
    %v1966 = vld [vmem:[#allocation4 + $0x378] sm:$0xff]
    %v1967 = vld [vmem:[#allocation4 + $0x380] sm:$0xff]
    %v1968 = vld [vmem:[#allocation4 + $0x388] sm:$0xff]
    %v1969 = vld [vmem:[#allocation4 + $0x390] sm:$0xff]
    %v1970 = vld [vmem:[#allocation4 + $0x398] sm:$0xff]
    %v1971 = vld [vmem:[#allocation4 + $0x3a0] sm:$0xff]
    %v1972 = vld [vmem:[#allocation4 + $0x3a8] sm:$0xff]
    %v1973 = vld [vmem:[#allocation4 + $0x3b0] sm:$0xff]
    %v1974 = vld [vmem:[#allocation4 + $0x3b8] sm:$0xff]
    %v1975 = vld [vmem:[#allocation4 + $0x3c0] sm:$0xff]
    %v1976 = vld [vmem:[#allocation4 + $0x3c8] sm:$0xff]
    %v1977 = vld [vmem:[#allocation4 + $0x3d0] sm:$0xff]
    %v1978 = vld [vmem:[#allocation4 + $0x3d8] sm:$0xff]
    %v1979 = vld [vmem:[#allocation4 + $0x3e0] sm:$0xff]
    %v1980 = vld [vmem:[#allocation4 + $0x3e8] sm:$0xff]
    %v1981 = vld [vmem:[#allocation4 + $0x3f0] sm:$0xff]
    %v1982 = vld [vmem:[#allocation4 + $0x3f8] sm:$0xff]
    %v2111 = vunpack.c.l.b16 %v1855
    %v2112 = vunpack.c.h.b16 %v1855
    %v2113 = vunpack.c.l.b16 %v1856
    %v2114 = vunpack.c.h.b16 %v1856
    %v2115 = vunpack.c.l.b16 %v1857
    %v2116 = vunpack.c.h.b16 %v1857
    %v2117 = vunpack.c.l.b16 %v1858
    %v2118 = vunpack.c.h.b16 %v1858
    %v2119 = vunpack.c.l.b16 %v1859
    %v2120 = vunpack.c.h.b16 %v1859
    %v2121 = vunpack.c.l.b16 %v1860
    %v2122 = vunpack.c.h.b16 %v1860
    %v2123 = vunpack.c.l.b16 %v1861
    %v2124 = vunpack.c.h.b16 %v1861
    %v2125 = vunpack.c.l.b16 %v1862
    %v2126 = vunpack.c.h.b16 %v1862
    %v2127 = vunpack.c.l.b16 %v1863
    %v2128 = vunpack.c.h.b16 %v1863
    %v2129 = vunpack.c.l.b16 %v1864
    %v2130 = vunpack.c.h.b16 %v1864
    %v2131 = vunpack.c.l.b16 %v1865
    %v2132 = vunpack.c.h.b16 %v1865
    %v2133 = vunpack.c.l.b16 %v1866
    %v2134 = vunpack.c.h.b16 %v1866
    %v2135 = vunpack.c.l.b16 %v1867
    %v2136 = vunpack.c.h.b16 %v1867
    %v2137 = vunpack.c.l.b16 %v1868
    %v2138 = vunpack.c.h.b16 %v1868
    %v2139 = vunpack.c.l.b16 %v1869
    %v2140 = vunpack.c.h.b16 %v1869
    %v2141 = vunpack.c.l.b16 %v1870
    %v2142 = vunpack.c.h.b16 %v1870
    %v2143 = vunpack.c.l.b16 %v1871
    %v2144 = vunpack.c.h.b16 %v1871
    %v2145 = vunpack.c.l.b16 %v1872
    %v2146 = vunpack.c.h.b16 %v1872
    %v2147 = vunpack.c.l.b16 %v1873
    %v2148 = vunpack.c.h.b16 %v1873
    %v2149 = vunpack.c.l.b16 %v1874
    %v2150 = vunpack.c.h.b16 %v1874
    %v2151 = vunpack.c.l.b16 %v1875
    %v2152 = vunpack.c.h.b16 %v1875
    %v2153 = vunpack.c.l.b16 %v1876
    %v2154 = vunpack.c.h.b16 %v1876
    %v2155 = vunpack.c.l.b16 %v1877
    %v2156 = vunpack.c.h.b16 %v1877
    %v2157 = vunpack.c.l.b16 %v1878
    %v2158 = vunpack.c.h.b16 %v1878
    %v2159 = vunpack.c.l.b16 %v1879
    %v2160 = vunpack.c.h.b16 %v1879
    %v2161 = vunpack.c.l.b16 %v1880
    %v2162 = vunpack.c.h.b16 %v1880
    %v2163 = vunpack.c.l.b16 %v1881
    %v2164 = vunpack.c.h.b16 %v1881
    %v2165 = vunpack.c.l.b16 %v1882
    %v2166 = vunpack.c.h.b16 %v1882
    %v2167 = vunpack.c.l.b16 %v1883
    %v2168 = vunpack.c.h.b16 %v1883
    %v2169 = vunpack.c.l.b16 %v1884
    %v2170 = vunpack.c.h.b16 %v1884
    %v2171 = vunpack.c.l.b16 %v1885
    %v2172 = vunpack.c.h.b16 %v1885
    %v2173 = vunpack.c.l.b16 %v1886
    %v2174 = vunpack.c.h.b16 %v1886
    %v2175 = vunpack.c.l.b16 %v1887
    %v2176 = vunpack.c.h.b16 %v1887
    %v2177 = vunpack.c.l.b16 %v1888
    %v2178 = vunpack.c.h.b16 %v1888
    %v2179 = vunpack.c.l.b16 %v1889
    %v2180 = vunpack.c.h.b16 %v1889
    %v2181 = vunpack.c.l.b16 %v1890
    %v2182 = vunpack.c.h.b16 %v1890
    %v2183 = vunpack.c.l.b16 %v1891
    %v2184 = vunpack.c.h.b16 %v1891
    %v2185 = vunpack.c.l.b16 %v1892
    %v2186 = vunpack.c.h.b16 %v1892
    %v2187 = vunpack.c.l.b16 %v1893
    %v2188 = vunpack.c.h.b16 %v1893
    %v2189 = vunpack.c.l.b16 %v1894
    %v2190 = vunpack.c.h.b16 %v1894
    %v2191 = vunpack.c.l.b16 %v1895
    %v2192 = vunpack.c.h.b16 %v1895
    %v2193 = vunpack.c.l.b16 %v1896
    %v2194 = vunpack.c.h.b16 %v1896
    %v2195 = vunpack.c.l.b16 %v1897
    %v2196 = vunpack.c.h.b16 %v1897
    %v2197 = vunpack.c.l.b16 %v1898
    %v2198 = vunpack.c.h.b16 %v1898
    %v2199 = vunpack.c.l.b16 %v1899
    %v2200 = vunpack.c.h.b16 %v1899
    %v2201 = vunpack.c.l.b16 %v1900
    %v2202 = vunpack.c.h.b16 %v1900
    %v2203 = vunpack.c.l.b16 %v1901
    %v2204 = vunpack.c.h.b16 %v1901
    %v2205 = vunpack.c.l.b16 %v1902
    %v2206 = vunpack.c.h.b16 %v1902
    %v2207 = vunpack.c.l.b16 %v1903
    %v2208 = vunpack.c.h.b16 %v1903
    %v2209 = vunpack.c.l.b16 %v1904
    %v2210 = vunpack.c.h.b16 %v1904
    %v2211 = vunpack.c.l.b16 %v1905
    %v2212 = vunpack.c.h.b16 %v1905
    %v2213 = vunpack.c.l.b16 %v1906
    %v2214 = vunpack.c.h.b16 %v1906
    %v2215 = vunpack.c.l.b16 %v1907
    %v2216 = vunpack.c.h.b16 %v1907
    %v2217 = vunpack.c.l.b16 %v1908
    %v2218 = vunpack.c.h.b16 %v1908
    %v2219 = vunpack.c.l.b16 %v1909
    %v2220 = vunpack.c.h.b16 %v1909
    %v2221 = vunpack.c.l.b16 %v1910
    %v2222 = vunpack.c.h.b16 %v1910
    %v2223 = vunpack.c.l.b16 %v1911
    %v2224 = vunpack.c.h.b16 %v1911
    %v2225 = vunpack.c.l.b16 %v1912
    %v2226 = vunpack.c.h.b16 %v1912
    %v2227 = vunpack.c.l.b16 %v1913
    %v2228 = vunpack.c.h.b16 %v1913
    %v2229 = vunpack.c.l.b16 %v1914
    %v2230 = vunpack.c.h.b16 %v1914
    %v2231 = vunpack.c.l.b16 %v1915
    %v2232 = vunpack.c.h.b16 %v1915
    %v2233 = vunpack.c.l.b16 %v1916
    %v2234 = vunpack.c.h.b16 %v1916
    %v2235 = vunpack.c.l.b16 %v1917
    %v2236 = vunpack.c.h.b16 %v1917
    %v2237 = vunpack.c.l.b16 %v1918
    %v2238 = vunpack.c.h.b16 %v1918
    %v2239 = vunpack.c.l.b16 %v1919
    %v2240 = vunpack.c.h.b16 %v1919
    %v2241 = vunpack.c.l.b16 %v1920
    %v2242 = vunpack.c.h.b16 %v1920
    %v2243 = vunpack.c.l.b16 %v1921
    %v2244 = vunpack.c.h.b16 %v1921
    %v2245 = vunpack.c.l.b16 %v1922
    %v2246 = vunpack.c.h.b16 %v1922
    %v2247 = vunpack.c.l.b16 %v1923
    %v2248 = vunpack.c.h.b16 %v1923
    %v2249 = vunpack.c.l.b16 %v1924
    %v2250 = vunpack.c.h.b16 %v1924
    %v2251 = vunpack.c.l.b16 %v1925
    %v2252 = vunpack.c.h.b16 %v1925
    %v2253 = vunpack.c.l.b16 %v1926
    %v2254 = vunpack.c.h.b16 %v1926
    %v2255 = vunpack.c.l.b16 %v1927
    %v2256 = vunpack.c.h.b16 %v1927
    %v2257 = vunpack.c.l.b16 %v1928
    %v2258 = vunpack.c.h.b16 %v1928
    %v2259 = vunpack.c.l.b16 %v1929
    %v2260 = vunpack.c.h.b16 %v1929
    %v2261 = vunpack.c.l.b16 %v1930
    %v2262 = vunpack.c.h.b16 %v1930
    %v2263 = vunpack.c.l.b16 %v1931
    %v2264 = vunpack.c.h.b16 %v1931
    %v2265 = vunpack.c.l.b16 %v1932
    %v2266 = vunpack.c.h.b16 %v1932
    %v2267 = vunpack.c.l.b16 %v1933
    %v2268 = vunpack.c.h.b16 %v1933
    %v2269 = vunpack.c.l.b16 %v1934
    %v2270 = vunpack.c.h.b16 %v1934
    %v2271 = vunpack.c.l.b16 %v1935
    %v2272 = vunpack.c.h.b16 %v1935
    %v2273 = vunpack.c.l.b16 %v1936
    %v2274 = vunpack.c.h.b16 %v1936
    %v2275 = vunpack.c.l.b16 %v1937
    %v2276 = vunpack.c.h.b16 %v1937
    %v2277 = vunpack.c.l.b16 %v1938
    %v2278 = vunpack.c.h.b16 %v1938
    %v2279 = vunpack.c.l.b16 %v1939
    %v2280 = vunpack.c.h.b16 %v1939
    %v2281 = vunpack.c.l.b16 %v1940
    %v2282 = vunpack.c.h.b16 %v1940
    %v2283 = vunpack.c.l.b16 %v1941
    %v2284 = vunpack.c.h.b16 %v1941
    %v2285 = vunpack.c.l.b16 %v1942
    %v2286 = vunpack.c.h.b16 %v1942
    %v2287 = vunpack.c.l.b16 %v1943
    %v2288 = vunpack.c.h.b16 %v1943
    %v2289 = vunpack.c.l.b16 %v1944
    %v2290 = vunpack.c.h.b16 %v1944
    %v2291 = vunpack.c.l.b16 %v1945
    %v2292 = vunpack.c.h.b16 %v1945
    %v2293 = vunpack.c.l.b16 %v1946
    %v2294 = vunpack.c.h.b16 %v1946
    %v2295 = vunpack.c.l.b16 %v1947
    %v2296 = vunpack.c.h.b16 %v1947
    %v2297 = vunpack.c.l.b16 %v1948
    %v2298 = vunpack.c.h.b16 %v1948
    %v2299 = vunpack.c.l.b16 %v1949
    %v2300 = vunpack.c.h.b16 %v1949
    %v2301 = vunpack.c.l.b16 %v1950
    %v2302 = vunpack.c.h.b16 %v1950
    %v2303 = vunpack.c.l.b16 %v1951
    %v2304 = vunpack.c.h.b16 %v1951
    %v2305 = vunpack.c.l.b16 %v1952
    %v2306 = vunpack.c.h.b16 %v1952
    %v2307 = vunpack.c.l.b16 %v1953
    %v2308 = vunpack.c.h.b16 %v1953
    %v2309 = vunpack.c.l.b16 %v1954
    %v2310 = vunpack.c.h.b16 %v1954
    %v2311 = vunpack.c.l.b16 %v1955
    %v2312 = vunpack.c.h.b16 %v1955
    %v2313 = vunpack.c.l.b16 %v1956
    %v2314 = vunpack.c.h.b16 %v1956
    %v2315 = vunpack.c.l.b16 %v1957
    %v2316 = vunpack.c.h.b16 %v1957
    %v2317 = vunpack.c.l.b16 %v1958
    %v2318 = vunpack.c.h.b16 %v1958
    %v2319 = vunpack.c.l.b16 %v1959
    %v2320 = vunpack.c.h.b16 %v1959
    %v2321 = vunpack.c.l.b16 %v1960
    %v2322 = vunpack.c.h.b16 %v1960
    %v2323 = vunpack.c.l.b16 %v1961
    %v2324 = vunpack.c.h.b16 %v1961
    %v2325 = vunpack.c.l.b16 %v1962
    %v2326 = vunpack.c.h.b16 %v1962
    %v2327 = vunpack.c.l.b16 %v1963
    %v2328 = vunpack.c.h.b16 %v1963
    %v2329 = vunpack.c.l.b16 %v1964
    %v2330 = vunpack.c.h.b16 %v1964
    %v2331 = vunpack.c.l.b16 %v1965
    %v2332 = vunpack.c.h.b16 %v1965
    %v2333 = vunpack.c.l.b16 %v1966
    %v2334 = vunpack.c.h.b16 %v1966
    %v2335 = vunpack.c.l.b16 %v1967
    %v2336 = vunpack.c.h.b16 %v1967
    %v2337 = vunpack.c.l.b16 %v1968
    %v2338 = vunpack.c.h.b16 %v1968
    %v2339 = vunpack.c.l.b16 %v1969
    %v2340 = vunpack.c.h.b16 %v1969
    %v2341 = vunpack.c.l.b16 %v1970
    %v2342 = vunpack.c.h.b16 %v1970
    %v2343 = vunpack.c.l.b16 %v1971
    %v2344 = vunpack.c.h.b16 %v1971
    %v2345 = vunpack.c.l.b16 %v1972
    %v2346 = vunpack.c.h.b16 %v1972
    %v2347 = vunpack.c.l.b16 %v1973
    %v2348 = vunpack.c.h.b16 %v1973
    %v2349 = vunpack.c.l.b16 %v1974
    %v2350 = vunpack.c.h.b16 %v1974
    %v2351 = vunpack.c.l.b16 %v1975
    %v2352 = vunpack.c.h.b16 %v1975
    %v2353 = vunpack.c.l.b16 %v1976
    %v2354 = vunpack.c.h.b16 %v1976
    %v2355 = vunpack.c.l.b16 %v1977
    %v2356 = vunpack.c.h.b16 %v1977
    %v2357 = vunpack.c.l.b16 %v1978
    %v2358 = vunpack.c.h.b16 %v1978
    %v2359 = vunpack.c.l.b16 %v1979
    %v2360 = vunpack.c.h.b16 %v1979
    %v2361 = vunpack.c.l.b16 %v1980
    %v2362 = vunpack.c.h.b16 %v1980
    %v2363 = vunpack.c.l.b16 %v1981
    %v2364 = vunpack.c.h.b16 %v1981
    %v2365 = vunpack.c.l.b16 %v1982
    %v2366 = vunpack.c.h.b16 %v1982
    %v2367 = vpack.c.b16 %v2115, %v2111
    %v2368 = vpack.c.b16 %v2116, %v2112
    %v2369 = vpack.c.b16 %v2117, %v2113
    %v2370 = vpack.c.b16 %v2118, %v2114
    %v2371 = vpack.c.b16 %v2123, %v2119
    %v2372 = vpack.c.b16 %v2124, %v2120
    %v2373 = vpack.c.b16 %v2125, %v2121
    %v2374 = vpack.c.b16 %v2126, %v2122
    %v2375 = vpack.c.b16 %v2131, %v2127
    %v2376 = vpack.c.b16 %v2132, %v2128
    %v2377 = vpack.c.b16 %v2133, %v2129
    %v2378 = vpack.c.b16 %v2134, %v2130
    %v2379 = vpack.c.b16 %v2139, %v2135
    %v2380 = vpack.c.b16 %v2140, %v2136
    %v2381 = vpack.c.b16 %v2141, %v2137
    %v2382 = vpack.c.b16 %v2142, %v2138
    %v2383 = vpack.c.b16 %v2147, %v2143
    %v2384 = vpack.c.b16 %v2148, %v2144
    %v2385 = vpack.c.b16 %v2149, %v2145
    %v2386 = vpack.c.b16 %v2150, %v2146
    %v2387 = vpack.c.b16 %v2155, %v2151
    %v2388 = vpack.c.b16 %v2156, %v2152
    %v2389 = vpack.c.b16 %v2157, %v2153
    %v2390 = vpack.c.b16 %v2158, %v2154
    %v2391 = vpack.c.b16 %v2163, %v2159
    %v2392 = vpack.c.b16 %v2164, %v2160
    %v2393 = vpack.c.b16 %v2165, %v2161
    %v2394 = vpack.c.b16 %v2166, %v2162
    %v2395 = vpack.c.b16 %v2171, %v2167
    %v2396 = vpack.c.b16 %v2172, %v2168
    %v2397 = vpack.c.b16 %v2173, %v2169
    %v2398 = vpack.c.b16 %v2174, %v2170
    %v2399 = vpack.c.b16 %v2179, %v2175
    %v2400 = vpack.c.b16 %v2180, %v2176
    %v2401 = vpack.c.b16 %v2181, %v2177
    %v2402 = vpack.c.b16 %v2182, %v2178
    %v2403 = vpack.c.b16 %v2187, %v2183
    %v2404 = vpack.c.b16 %v2188, %v2184
    %v2405 = vpack.c.b16 %v2189, %v2185
    %v2406 = vpack.c.b16 %v2190, %v2186
    %v2407 = vpack.c.b16 %v2195, %v2191
    %v2408 = vpack.c.b16 %v2196, %v2192
    %v2409 = vpack.c.b16 %v2197, %v2193
    %v2410 = vpack.c.b16 %v2198, %v2194
    %v2411 = vpack.c.b16 %v2203, %v2199
    %v2412 = vpack.c.b16 %v2204, %v2200
    %v2413 = vpack.c.b16 %v2205, %v2201
    %v2414 = vpack.c.b16 %v2206, %v2202
    %v2415 = vpack.c.b16 %v2211, %v2207
    %v2416 = vpack.c.b16 %v2212, %v2208
    %v2417 = vpack.c.b16 %v2213, %v2209
    %v2418 = vpack.c.b16 %v2214, %v2210
    %v2419 = vpack.c.b16 %v2219, %v2215
    %v2420 = vpack.c.b16 %v2220, %v2216
    %v2421 = vpack.c.b16 %v2221, %v2217
    %v2422 = vpack.c.b16 %v2222, %v2218
    %v2423 = vpack.c.b16 %v2227, %v2223
    %v2424 = vpack.c.b16 %v2228, %v2224
    %v2425 = vpack.c.b16 %v2229, %v2225
    %v2426 = vpack.c.b16 %v2230, %v2226
    %v2427 = vpack.c.b16 %v2235, %v2231
    %v2428 = vpack.c.b16 %v2236, %v2232
    %v2429 = vpack.c.b16 %v2237, %v2233
    %v2430 = vpack.c.b16 %v2238, %v2234
    %v2431 = vpack.c.b16 %v2243, %v2239
    %v2432 = vpack.c.b16 %v2244, %v2240
    %v2433 = vpack.c.b16 %v2245, %v2241
    %v2434 = vpack.c.b16 %v2246, %v2242
    %v2435 = vpack.c.b16 %v2251, %v2247
    %v2436 = vpack.c.b16 %v2252, %v2248
    %v2437 = vpack.c.b16 %v2253, %v2249
    %v2438 = vpack.c.b16 %v2254, %v2250
    %v2439 = vpack.c.b16 %v2259, %v2255
    %v2440 = vpack.c.b16 %v2260, %v2256
    %v2441 = vpack.c.b16 %v2261, %v2257
    %v2442 = vpack.c.b16 %v2262, %v2258
    %v2443 = vpack.c.b16 %v2267, %v2263
    %v2444 = vpack.c.b16 %v2268, %v2264
    %v2445 = vpack.c.b16 %v2269, %v2265
    %v2446 = vpack.c.b16 %v2270, %v2266
    %v2447 = vpack.c.b16 %v2275, %v2271
    %v2448 = vpack.c.b16 %v2276, %v2272
    %v2449 = vpack.c.b16 %v2277, %v2273
    %v2450 = vpack.c.b16 %v2278, %v2274
    %v2451 = vpack.c.b16 %v2283, %v2279
    %v2452 = vpack.c.b16 %v2284, %v2280
    %v2453 = vpack.c.b16 %v2285, %v2281
    %v2454 = vpack.c.b16 %v2286, %v2282
    %v2455 = vpack.c.b16 %v2291, %v2287
    %v2456 = vpack.c.b16 %v2292, %v2288
    %v2457 = vpack.c.b16 %v2293, %v2289
    %v2458 = vpack.c.b16 %v2294, %v2290
    %v2459 = vpack.c.b16 %v2299, %v2295
    %v2460 = vpack.c.b16 %v2300, %v2296
    %v2461 = vpack.c.b16 %v2301, %v2297
    %v2462 = vpack.c.b16 %v2302, %v2298
    %v2463 = vpack.c.b16 %v2307, %v2303
    %v2464 = vpack.c.b16 %v2308, %v2304
    %v2465 = vpack.c.b16 %v2309, %v2305
    %v2466 = vpack.c.b16 %v2310, %v2306
    %v2467 = vpack.c.b16 %v2315, %v2311
    %v2468 = vpack.c.b16 %v2316, %v2312
    %v2469 = vpack.c.b16 %v2317, %v2313
    %v2470 = vpack.c.b16 %v2318, %v2314
    %v2471 = vpack.c.b16 %v2323, %v2319
    %v2472 = vpack.c.b16 %v2324, %v2320
    %v2473 = vpack.c.b16 %v2325, %v2321
    %v2474 = vpack.c.b16 %v2326, %v2322
    %v2475 = vpack.c.b16 %v2331, %v2327
    %v2476 = vpack.c.b16 %v2332, %v2328
    %v2477 = vpack.c.b16 %v2333, %v2329
    %v2478 = vpack.c.b16 %v2334, %v2330
    %v2479 = vpack.c.b16 %v2339, %v2335
    %v2480 = vpack.c.b16 %v2340, %v2336
    %v2481 = vpack.c.b16 %v2341, %v2337
    %v2482 = vpack.c.b16 %v2342, %v2338
    %v2483 = vpack.c.b16 %v2347, %v2343
    %v2484 = vpack.c.b16 %v2348, %v2344
    %v2485 = vpack.c.b16 %v2349, %v2345
    %v2486 = vpack.c.b16 %v2350, %v2346
    %v2487 = vpack.c.b16 %v2355, %v2351
    %v2488 = vpack.c.b16 %v2356, %v2352
    %v2489 = vpack.c.b16 %v2357, %v2353
    %v2490 = vpack.c.b16 %v2358, %v2354
    %v2491 = vpack.c.b16 %v2363, %v2359
    %v2492 = vpack.c.b16 %v2364, %v2360
    %v2493 = vpack.c.b16 %v2365, %v2361
    %v2494 = vpack.c.b16 %v2366, %v2362
    %2623 = vmatprep.subr.bf16.mxu0 %v2368
    %2624 = vmatpush1.bf16.msra.mxu0 %v2367
    %2625 = vmatprep.subr.bf16.mxu0 %v2372
    %2626 = vmatpush1.bf16.msra.mxu0 %v2371
    %2627 = vmatprep.subr.bf16.mxu0 %v2376
    %2628 = vmatpush1.bf16.msra.mxu0 %v2375
    %2629 = vmatprep.subr.bf16.mxu0 %v2380
    %2630 = vmatpush1.bf16.msra.mxu0 %v2379
    %2631 = vmatprep.subr.bf16.mxu0 %v2384
    %2632 = vmatpush1.bf16.msra.mxu0 %v2383
    %2633 = vmatprep.subr.bf16.mxu0 %v2388
    %2634 = vmatpush1.bf16.msra.mxu0 %v2387
    %2635 = vmatprep.subr.bf16.mxu0 %v2392
    %2636 = vmatpush1.bf16.msra.mxu0 %v2391
    %2637 = vmatprep.subr.bf16.mxu0 %v2396
    %2638 = vmatpush1.bf16.msra.mxu0 %v2395
    %2639 = vmatprep.subr.bf16.mxu0 %v2400
    %2640 = vmatpush1.bf16.msra.mxu0 %v2399
    %2641 = vmatprep.subr.bf16.mxu0 %v2404
    %2642 = vmatpush1.bf16.msra.mxu0 %v2403
    %2643 = vmatprep.subr.bf16.mxu0 %v2408
    %2644 = vmatpush1.bf16.msra.mxu0 %v2407
    %2645 = vmatprep.subr.bf16.mxu0 %v2412
    %2646 = vmatpush1.bf16.msra.mxu0 %v2411
    %2647 = vmatprep.subr.bf16.mxu0 %v2416
    %2648 = vmatpush1.bf16.msra.mxu0 %v2415
    %2649 = vmatprep.subr.bf16.mxu0 %v2420
    %2650 = vmatpush1.bf16.msra.mxu0 %v2419
    %2651 = vmatprep.subr.bf16.mxu0 %v2424
    %2652 = vmatpush1.bf16.msra.mxu0 %v2423
    %2653 = vmatprep.subr.bf16.mxu0 %v2428
    %2654 = vmatpush1.bf16.msra.mxu0 %v2427
    %2655 = vmatprep.mubr.bf16.mxu0 %v1852
    %2656 = vmatmul.mubr.bf16.gmra.mrb[0].mxu0 %v1851
    %v2657 = vpop.f32.mrb[0].mxu0
    %v2658 = vadd.f32 0.0, %v2657
    %v2659 = vpop.f32.mrb[0].mxu0
    %v2660 = vadd.f32 0.0, %v2659
    %v2661 = vpop.f32.mrb[0].mxu0
    %v2662 = vadd.f32 0.0, %v2661
    %v2663 = vpop.f32.mrb[0].mxu0
    %v2664 = vadd.f32 0.0, %v2663
    %2665 = vdwg.mxu0
    %2666 = vmatprep.subr.bf16.mxu0 %v2432
    %2667 = vmatpush1.bf16.msra.mxu0 %v2431
    %2668 = vmatprep.subr.bf16.mxu0 %v2436
    %2669 = vmatpush1.bf16.msra.mxu0 %v2435
    %2670 = vmatprep.subr.bf16.mxu0 %v2440
    %2671 = vmatpush1.bf16.msra.mxu0 %v2439
    %2672 = vmatprep.subr.bf16.mxu0 %v2444
    %2673 = vmatpush1.bf16.msra.mxu0 %v2443
    %2674 = vmatprep.subr.bf16.mxu0 %v2448
    %2675 = vmatpush1.bf16.msra.mxu0 %v2447
    %2676 = vmatprep.subr.bf16.mxu0 %v2452
    %2677 = vmatpush1.bf16.msra.mxu0 %v2451
    %2678 = vmatprep.subr.bf16.mxu0 %v2456
    %2679 = vmatpush1.bf16.msra.mxu0 %v2455
    %2680 = vmatprep.subr.bf16.mxu0 %v2460
    %2681 = vmatpush1.bf16.msra.mxu0 %v2459
    %2682 = vmatprep.subr.bf16.mxu0 %v2464
    %2683 = vmatpush1.bf16.msra.mxu0 %v2463
    %2684 = vmatprep.subr.bf16.mxu0 %v2468
    %2685 = vmatpush1.bf16.msra.mxu0 %v2467
    %2686 = vmatprep.subr.bf16.mxu0 %v2472
    %2687 = vmatpush1.bf16.msra.mxu0 %v2471
    %2688 = vmatprep.subr.bf16.mxu0 %v2476
    %2689 = vmatpush1.bf16.msra.mxu0 %v2475
    %2690 = vmatprep.subr.bf16.mxu0 %v2480
    %2691 = vmatpush1.bf16.msra.mxu0 %v2479
    %2692 = vmatprep.subr.bf16.mxu0 %v2484
    %2693 = vmatpush1.bf16.msra.mxu0 %v2483
    %2694 = vmatprep.subr.bf16.mxu0 %v2488
    %2695 = vmatpush1.bf16.msra.mxu0 %v2487
    %2696 = vmatprep.subr.bf16.mxu0 %v2492
    %2697 = vmatpush1.bf16.msra.mxu0 %v2491
    %2698 = vmatprep.mubr.bf16.mxu0 %v1854
    %2699 = vmatmul.mubr.bf16.gmra.mrb[0].mxu0 %v1853
    %v2700 = vpop.f32.mrb[0].mxu0
    %v2701 = vadd.f32 %v2658, %v2700
    %v2702 = vpop.f32.mrb[0].mxu0
    %v2703 = vadd.f32 %v2660, %v2702
    %v2704 = vpop.f32.mrb[0].mxu0
    %v2705 = vadd.f32 %v2662, %v2704
    %v2706 = vpop.f32.mrb[0].mxu0
    %v2707 = vadd.f32 %v2664, %v2706
    %2708 = vdwg.mxu0
    %2709 = vmatprep.subr.bf16.mxu0 %v2370
    %2710 = vmatpush1.bf16.msra.mxu0 %v2369
    %2711 = vmatprep.subr.bf16.mxu0 %v2374
    %2712 = vmatpush1.bf16.msra.mxu0 %v2373
    %2713 = vmatprep.subr.bf16.mxu0 %v2378
    %2714 = vmatpush1.bf16.msra.mxu0 %v2377
    %2715 = vmatprep.subr.bf16.mxu0 %v2382
    %2716 = vmatpush1.bf16.msra.mxu0 %v2381
    %2717 = vmatprep.subr.bf16.mxu0 %v2386
    %2718 = vmatpush1.bf16.msra.mxu0 %v2385
    %2719 = vmatprep.subr.bf16.mxu0 %v2390
    %2720 = vmatpush1.bf16.msra.mxu0 %v2389
    %2721 = vmatprep.subr.bf16.mxu0 %v2394
    %2722 = vmatpush1.bf16.msra.mxu0 %v2393
    %2723 = vmatprep.subr.bf16.mxu0 %v2398
    %2724 = vmatpush1.bf16.msra.mxu0 %v2397
    %2725 = vmatprep.subr.bf16.mxu0 %v2402
    %2726 = vmatpush1.bf16.msra.mxu0 %v2401
    %2727 = vmatprep.subr.bf16.mxu0 %v2406
    %2728 = vmatpush1.bf16.msra.mxu0 %v2405
    %2729 = vmatprep.subr.bf16.mxu0 %v2410
    %2730 = vmatpush1.bf16.msra.mxu0 %v2409
    %2731 = vmatprep.subr.bf16.mxu0 %v2414
    %2732 = vmatpush1.bf16.msra.mxu0 %v2413
    %2733 = vmatprep.subr.bf16.mxu0 %v2418
    %2734 = vmatpush1.bf16.msra.mxu0 %v2417
    %2735 = vmatprep.subr.bf16.mxu0 %v2422
    %2736 = vmatpush1.bf16.msra.mxu0 %v2421
    %2737 = vmatprep.subr.bf16.mxu0 %v2426
    %2738 = vmatpush1.bf16.msra.mxu0 %v2425
    %2739 = vmatprep.subr.bf16.mxu0 %v2430
    %2740 = vmatpush1.bf16.msra.mxu0 %v2429
    %2741 = vmatprep.mubr.bf16.mxu0 %v1852
    %2742 = vmatmul.mubr.bf16.gmra.mrb[0].mxu0 %v1851
    %v2743 = vpop.f32.mrb[0].mxu0
    %v2744 = vadd.f32 0.0, %v2743
    %v2745 = vpop.f32.mrb[0].mxu0
    %v2746 = vadd.f32 0.0, %v2745
    %v2747 = vpop.f32.mrb[0].mxu0
    %v2748 = vadd.f32 0.0, %v2747
    %v2749 = vpop.f32.mrb[0].mxu0
    %v2750 = vadd.f32 0.0, %v2749
    %2751 = vdwg.mxu0
    %2752 = vmatprep.subr.bf16.mxu0 %v2434
    %2753 = vmatpush1.bf16.msra.mxu0 %v2433
    %2754 = vmatprep.subr.bf16.mxu0 %v2438
    %2755 = vmatpush1.bf16.msra.mxu0 %v2437
    %2756 = vmatprep.subr.bf16.mxu0 %v2442
    %2757 = vmatpush1.bf16.msra.mxu0 %v2441
    %2758 = vmatprep.subr.bf16.mxu0 %v2446
    %2759 = vmatpush1.bf16.msra.mxu0 %v2445
    %2760 = vmatprep.subr.bf16.mxu0 %v2450
    %2761 = vmatpush1.bf16.msra.mxu0 %v2449
    %2762 = vmatprep.subr.bf16.mxu0 %v2454
    %2763 = vmatpush1.bf16.msra.mxu0 %v2453
    %2764 = vmatprep.subr.bf16.mxu0 %v2458
    %2765 = vmatpush1.bf16.msra.mxu0 %v2457
    %2766 = vmatprep.subr.bf16.mxu0 %v2462
    %2767 = vmatpush1.bf16.msra.mxu0 %v2461
    %2768 = vmatprep.subr.bf16.mxu0 %v2466
    %2769 = vmatpush1.bf16.msra.mxu0 %v2465
    %2770 = vmatprep.subr.bf16.mxu0 %v2470
    %2771 = vmatpush1.bf16.msra.mxu0 %v2469
    %2772 = vmatprep.subr.bf16.mxu0 %v2474
    %2773 = vmatpush1.bf16.msra.mxu0 %v2473
    %2774 = vmatprep.subr.bf16.mxu0 %v2478
    %2775 = vmatpush1.bf16.msra.mxu0 %v2477
    %2776 = vmatprep.subr.bf16.mxu0 %v2482
    %2777 = vmatpush1.bf16.msra.mxu0 %v2481
    %2778 = vmatprep.subr.bf16.mxu0 %v2486
    %2779 = vmatpush1.bf16.msra.mxu0 %v2485
    %2780 = vmatprep.subr.bf16.mxu0 %v2490
    %2781 = vmatpush1.bf16.msra.mxu0 %v2489
    %2782 = vmatprep.subr.bf16.mxu0 %v2494
    %2783 = vmatpush1.bf16.msra.mxu0 %v2493
    %2784 = vmatprep.mubr.bf16.mxu0 %v1854
    %2785 = vmatmul.mubr.bf16.gmra.mrb[0].mxu0 %v1853
    %v2786 = vpop.f32.mrb[0].mxu0
    %v2787 = vadd.f32 %v2744, %v2786
    %v2788 = vpop.f32.mrb[0].mxu0
    %v2789 = vadd.f32 %v2746, %v2788
    %v2790 = vpop.f32.mrb[0].mxu0
    %v2791 = vadd.f32 %v2748, %v2790
    %v2792 = vpop.f32.mrb[0].mxu0
    %v2793 = vadd.f32 %v2750, %v2792
    %2794 = vdwg.mxu0
    %v2796 = vlaneseq
    %v2797 = vshrl.u32 %v2796, 7
    %v2798 = vsub.s32 0, %v2797
    %v2799 = vrot.slane %v1850, %v2798
    %v2800 = vlaneseq
    %v2801 = vshrl.u32 %v2800, 7
    %v2802 = vsub.s32 1, %v2801
    %v2803 = vrot.slane %v1850, %v2802
    %v2804 = vlaneseq
    %v2805 = vshrl.u32 %v2804, 7
    %v2806 = vsub.s32 2, %v2805
    %v2807 = vrot.slane %v1850, %v2806
    %v2808 = vlaneseq
    %v2809 = vshrl.u32 %v2808, 7
    %v2810 = vsub.s32 3, %v2809
    %v2811 = vrot.slane %v1850, %v2810
    %v2816 = vadd.f32 %v2799, %v2701
    %v2817 = vadd.f32 %v2803, %v2703
    %v2818 = vadd.f32 %v2807, %v2787
    %v2819 = vadd.f32 %v2811, %v2789
    %v2820 = vadd.f32 %v2799, %v2705
    %v2821 = vadd.f32 %v2803, %v2707
    %v2822 = vadd.f32 %v2807, %v2791
    %v2823 = vadd.f32 %v2811, %v2793
    %v2824 = vld [vmem:[%s6] sm:$0xf]
    %v2825 = vpack.c.bf16 %v2820, %v2816
    %v2826 = vpack.c.bf16 %v2821, %v2817
    %v2827 = vpack.c.bf16 %v2822, %v2818
    %v2828 = vpack.c.bf16 %v2823, %v2819
    %v2829 = vld [vmem:[#allocation6] sm:$0xff]
    %v2830 = vld [vmem:[#allocation6 + $0x8] sm:$0xff]
    %v2831 = vld [vmem:[#allocation6 + $0x10] sm:$0xff]
    %v2832 = vld [vmem:[#allocation6 + $0x18] sm:$0xff]
    %v2833 = vld [vmem:[#allocation6 + $0x20] sm:$0xff]
    %v2834 = vld [vmem:[#allocation6 + $0x28] sm:$0xff]
    %v2835 = vld [vmem:[#allocation6 + $0x30] sm:$0xff]
    %v2836 = vld [vmem:[#allocation6 + $0x38] sm:$0xff]
    %v2837 = vld [vmem:[#allocation6 + $0x40] sm:$0xff]
    %v2838 = vld [vmem:[#allocation6 + $0x48] sm:$0xff]
    %v2839 = vld [vmem:[#allocation6 + $0x50] sm:$0xff]
    %v2840 = vld [vmem:[#allocation6 + $0x58] sm:$0xff]
    %v2841 = vld [vmem:[#allocation6 + $0x60] sm:$0xff]
    %v2842 = vld [vmem:[#allocation6 + $0x68] sm:$0xff]
    %v2843 = vld [vmem:[#allocation6 + $0x70] sm:$0xff]
    %v2844 = vld [vmem:[#allocation6 + $0x78] sm:$0xff]
    %v2845 = vld [vmem:[#allocation6 + $0x80] sm:$0xff]
    %v2846 = vld [vmem:[#allocation6 + $0x88] sm:$0xff]
    %v2847 = vld [vmem:[#allocation6 + $0x90] sm:$0xff]
    %v2848 = vld [vmem:[#allocation6 + $0x98] sm:$0xff]
    %v2849 = vld [vmem:[#allocation6 + $0xa0] sm:$0xff]
    %v2850 = vld [vmem:[#allocation6 + $0xa8] sm:$0xff]
    %v2851 = vld [vmem:[#allocation6 + $0xb0] sm:$0xff]
    %v2852 = vld [vmem:[#allocation6 + $0xb8] sm:$0xff]
    %v2853 = vld [vmem:[#allocation6 + $0xc0] sm:$0xff]
    %v2854 = vld [vmem:[#allocation6 + $0xc8] sm:$0xff]
    %v2855 = vld [vmem:[#allocation6 + $0xd0] sm:$0xff]
    %v2856 = vld [vmem:[#allocation6 + $0xd8] sm:$0xff]
    %v2857 = vld [vmem:[#allocation6 + $0xe0] sm:$0xff]
    %v2858 = vld [vmem:[#allocation6 + $0xe8] sm:$0xff]
    %v2859 = vld [vmem:[#allocation6 + $0xf0] sm:$0xff]
    %v2860 = vld [vmem:[#allocation6 + $0xf8] sm:$0xff]
    %v2861 = vld [vmem:[#allocation6 + $0x100] sm:$0xff]
    %v2862 = vld [vmem:[#allocation6 + $0x108] sm:$0xff]
    %v2863 = vld [vmem:[#allocation6 + $0x110] sm:$0xff]
    %v2864 = vld [vmem:[#allocation6 + $0x118] sm:$0xff]
    %v2865 = vld [vmem:[#allocation6 + $0x120] sm:$0xff]
    %v2866 = vld [vmem:[#allocation6 + $0x128] sm:$0xff]
    %v2867 = vld [vmem:[#allocation6 + $0x130] sm:$0xff]
    %v2868 = vld [vmem:[#allocation6 + $0x138] sm:$0xff]
    %v2869 = vld [vmem:[#allocation6 + $0x140] sm:$0xff]
    %v2870 = vld [vmem:[#allocation6 + $0x148] sm:$0xff]
    %v2871 = vld [vmem:[#allocation6 + $0x150] sm:$0xff]
    %v2872 = vld [vmem:[#allocation6 + $0x158] sm:$0xff]
    %v2873 = vld [vmem:[#allocation6 + $0x160] sm:$0xff]
    %v2874 = vld [vmem:[#allocation6 + $0x168] sm:$0xff]
    %v2875 = vld [vmem:[#allocation6 + $0x170] sm:$0xff]
    %v2876 = vld [vmem:[#allocation6 + $0x178] sm:$0xff]
    %v2877 = vld [vmem:[#allocation6 + $0x180] sm:$0xff]
    %v2878 = vld [vmem:[#allocation6 + $0x188] sm:$0xff]
    %v2879 = vld [vmem:[#allocation6 + $0x190] sm:$0xff]
    %v2880 = vld [vmem:[#allocation6 + $0x198] sm:$0xff]
    %v2881 = vld [vmem:[#allocation6 + $0x1a0] sm:$0xff]
    %v2882 = vld [vmem:[#allocation6 + $0x1a8] sm:$0xff]
    %v2883 = vld [vmem:[#allocation6 + $0x1b0] sm:$0xff]
    %v2884 = vld [vmem:[#allocation6 + $0x1b8] sm:$0xff]
    %v2885 = vld [vmem:[#allocation6 + $0x1c0] sm:$0xff]
    %v2886 = vld [vmem:[#allocation6 + $0x1c8] sm:$0xff]
    %v2887 = vld [vmem:[#allocation6 + $0x1d0] sm:$0xff]
    %v2888 = vld [vmem:[#allocation6 + $0x1d8] sm:$0xff]
    %v2889 = vld [vmem:[#allocation6 + $0x1e0] sm:$0xff]
    %v2890 = vld [vmem:[#allocation6 + $0x1e8] sm:$0xff]
    %v2891 = vld [vmem:[#allocation6 + $0x1f0] sm:$0xff]
    %v2892 = vld [vmem:[#allocation6 + $0x1f8] sm:$0xff]
    %v2893 = vld [vmem:[#allocation6 + $0x200] sm:$0xff]
    %v2894 = vld [vmem:[#allocation6 + $0x208] sm:$0xff]
    %v2895 = vld [vmem:[#allocation6 + $0x210] sm:$0xff]
    %v2896 = vld [vmem:[#allocation6 + $0x218] sm:$0xff]
    %v2897 = vld [vmem:[#allocation6 + $0x220] sm:$0xff]
    %v2898 = vld [vmem:[#allocation6 + $0x228] sm:$0xff]
    %v2899 = vld [vmem:[#allocation6 + $0x230] sm:$0xff]
    %v2900 = vld [vmem:[#allocation6 + $0x238] sm:$0xff]
    %v2901 = vld [vmem:[#allocation6 + $0x240] sm:$0xff]
    %v2902 = vld [vmem:[#allocation6 + $0x248] sm:$0xff]
    %v2903 = vld [vmem:[#allocation6 + $0x250] sm:$0xff]
    %v2904 = vld [vmem:[#allocation6 + $0x258] sm:$0xff]
    %v2905 = vld [vmem:[#allocation6 + $0x260] sm:$0xff]
    %v2906 = vld [vmem:[#allocation6 + $0x268] sm:$0xff]
    %v2907 = vld [vmem:[#allocation6 + $0x270] sm:$0xff]
    %v2908 = vld [vmem:[#allocation6 + $0x278] sm:$0xff]
    %v2909 = vld [vmem:[#allocation6 + $0x280] sm:$0xff]
    %v2910 = vld [vmem:[#allocation6 + $0x288] sm:$0xff]
    %v2911 = vld [vmem:[#allocation6 + $0x290] sm:$0xff]
    %v2912 = vld [vmem:[#allocation6 + $0x298] sm:$0xff]
    %v2913 = vld [vmem:[#allocation6 + $0x2a0] sm:$0xff]
    %v2914 = vld [vmem:[#allocation6 + $0x2a8] sm:$0xff]
    %v2915 = vld [vmem:[#allocation6 + $0x2b0] sm:$0xff]
    %v2916 = vld [vmem:[#allocation6 + $0x2b8] sm:$0xff]
    %v2917 = vld [vmem:[#allocation6 + $0x2c0] sm:$0xff]
    %v2918 = vld [vmem:[#allocation6 + $0x2c8] sm:$0xff]
    %v2919 = vld [vmem:[#allocation6 + $0x2d0] sm:$0xff]
    %v2920 = vld [vmem:[#allocation6 + $0x2d8] sm:$0xff]
    %v2921 = vld [vmem:[#allocation6 + $0x2e0] sm:$0xff]
    %v2922 = vld [vmem:[#allocation6 + $0x2e8] sm:$0xff]
    %v2923 = vld [vmem:[#allocation6 + $0x2f0] sm:$0xff]
    %v2924 = vld [vmem:[#allocation6 + $0x2f8] sm:$0xff]
    %v2925 = vld [vmem:[#allocation6 + $0x300] sm:$0xff]
    %v2926 = vld [vmem:[#allocation6 + $0x308] sm:$0xff]
    %v2927 = vld [vmem:[#allocation6 + $0x310] sm:$0xff]
    %v2928 = vld [vmem:[#allocation6 + $0x318] sm:$0xff]
    %v2929 = vld [vmem:[#allocation6 + $0x320] sm:$0xff]
    %v2930 = vld [vmem:[#allocation6 + $0x328] sm:$0xff]
    %v2931 = vld [vmem:[#allocation6 + $0x330] sm:$0xff]
    %v2932 = vld [vmem:[#allocation6 + $0x338] sm:$0xff]
    %v2933 = vld [vmem:[#allocation6 + $0x340] sm:$0xff]
    %v2934 = vld [vmem:[#allocation6 + $0x348] sm:$0xff]
    %v2935 = vld [vmem:[#allocation6 + $0x350] sm:$0xff]
    %v2936 = vld [vmem:[#allocation6 + $0x358] sm:$0xff]
    %v2937 = vld [vmem:[#allocation6 + $0x360] sm:$0xff]
    %v2938 = vld [vmem:[#allocation6 + $0x368] sm:$0xff]
    %v2939 = vld [vmem:[#allocation6 + $0x370] sm:$0xff]
    %v2940 = vld [vmem:[#allocation6 + $0x378] sm:$0xff]
    %v2941 = vld [vmem:[#allocation6 + $0x380] sm:$0xff]
    %v2942 = vld [vmem:[#allocation6 + $0x388] sm:$0xff]
    %v2943 = vld [vmem:[#allocation6 + $0x390] sm:$0xff]
    %v2944 = vld [vmem:[#allocation6 + $0x398] sm:$0xff]
    %v2945 = vld [vmem:[#allocation6 + $0x3a0] sm:$0xff]
    %v2946 = vld [vmem:[#allocation6 + $0x3a8] sm:$0xff]
    %v2947 = vld [vmem:[#allocation6 + $0x3b0] sm:$0xff]
    %v2948 = vld [vmem:[#allocation6 + $0x3b8] sm:$0xff]
    %v2949 = vld [vmem:[#allocation6 + $0x3c0] sm:$0xff]
    %v2950 = vld [vmem:[#allocation6 + $0x3c8] sm:$0xff]
    %v2951 = vld [vmem:[#allocation6 + $0x3d0] sm:$0xff]
    %v2952 = vld [vmem:[#allocation6 + $0x3d8] sm:$0xff]
    %v2953 = vld [vmem:[#allocation6 + $0x3e0] sm:$0xff]
    %v2954 = vld [vmem:[#allocation6 + $0x3e8] sm:$0xff]
    %v2955 = vld [vmem:[#allocation6 + $0x3f0] sm:$0xff]
    %v2956 = vld [vmem:[#allocation6 + $0x3f8] sm:$0xff]
    %v3085 = vunpack.c.l.b16 %v2829
    %v3086 = vunpack.c.h.b16 %v2829
    %v3087 = vunpack.c.l.b16 %v2830
    %v3088 = vunpack.c.h.b16 %v2830
    %v3089 = vunpack.c.l.b16 %v2831
    %v3090 = vunpack.c.h.b16 %v2831
    %v3091 = vunpack.c.l.b16 %v2832
    %v3092 = vunpack.c.h.b16 %v2832
    %v3093 = vunpack.c.l.b16 %v2833
    %v3094 = vunpack.c.h.b16 %v2833
    %v3095 = vunpack.c.l.b16 %v2834
    %v3096 = vunpack.c.h.b16 %v2834
    %v3097 = vunpack.c.l.b16 %v2835
    %v3098 = vunpack.c.h.b16 %v2835
    %v3099 = vunpack.c.l.b16 %v2836
    %v3100 = vunpack.c.h.b16 %v2836
    %v3101 = vunpack.c.l.b16 %v2837
    %v3102 = vunpack.c.h.b16 %v2837
    %v3103 = vunpack.c.l.b16 %v2838
    %v3104 = vunpack.c.h.b16 %v2838
    %v3105 = vunpack.c.l.b16 %v2839
    %v3106 = vunpack.c.h.b16 %v2839
    %v3107 = vunpack.c.l.b16 %v2840
    %v3108 = vunpack.c.h.b16 %v2840
    %v3109 = vunpack.c.l.b16 %v2841
    %v3110 = vunpack.c.h.b16 %v2841
    %v3111 = vunpack.c.l.b16 %v2842
    %v3112 = vunpack.c.h.b16 %v2842
    %v3113 = vunpack.c.l.b16 %v2843
    %v3114 = vunpack.c.h.b16 %v2843
    %v3115 = vunpack.c.l.b16 %v2844
    %v3116 = vunpack.c.h.b16 %v2844
    %v3117 = vunpack.c.l.b16 %v2845
    %v3118 = vunpack.c.h.b16 %v2845
    %v3119 = vunpack.c.l.b16 %v2846
    %v3120 = vunpack.c.h.b16 %v2846
    %v3121 = vunpack.c.l.b16 %v2847
    %v3122 = vunpack.c.h.b16 %v2847
    %v3123 = vunpack.c.l.b16 %v2848
    %v3124 = vunpack.c.h.b16 %v2848
    %v3125 = vunpack.c.l.b16 %v2849
    %v3126 = vunpack.c.h.b16 %v2849
    %v3127 = vunpack.c.l.b16 %v2850
    %v3128 = vunpack.c.h.b16 %v2850
    %v3129 = vunpack.c.l.b16 %v2851
    %v3130 = vunpack.c.h.b16 %v2851
    %v3131 = vunpack.c.l.b16 %v2852
    %v3132 = vunpack.c.h.b16 %v2852
    %v3133 = vunpack.c.l.b16 %v2853
    %v3134 = vunpack.c.h.b16 %v2853
    %v3135 = vunpack.c.l.b16 %v2854
    %v3136 = vunpack.c.h.b16 %v2854
    %v3137 = vunpack.c.l.b16 %v2855
    %v3138 = vunpack.c.h.b16 %v2855
    %v3139 = vunpack.c.l.b16 %v2856
    %v3140 = vunpack.c.h.b16 %v2856
    %v3141 = vunpack.c.l.b16 %v2857
    %v3142 = vunpack.c.h.b16 %v2857
    %v3143 = vunpack.c.l.b16 %v2858
    %v3144 = vunpack.c.h.b16 %v2858
    %v3145 = vunpack.c.l.b16 %v2859
    %v3146 = vunpack.c.h.b16 %v2859
    %v3147 = vunpack.c.l.b16 %v2860
    %v3148 = vunpack.c.h.b16 %v2860
    %v3149 = vunpack.c.l.b16 %v2861
    %v3150 = vunpack.c.h.b16 %v2861
    %v3151 = vunpack.c.l.b16 %v2862
    %v3152 = vunpack.c.h.b16 %v2862
    %v3153 = vunpack.c.l.b16 %v2863
    %v3154 = vunpack.c.h.b16 %v2863
    %v3155 = vunpack.c.l.b16 %v2864
    %v3156 = vunpack.c.h.b16 %v2864
    %v3157 = vunpack.c.l.b16 %v2865
    %v3158 = vunpack.c.h.b16 %v2865
    %v3159 = vunpack.c.l.b16 %v2866
    %v3160 = vunpack.c.h.b16 %v2866
    %v3161 = vunpack.c.l.b16 %v2867
    %v3162 = vunpack.c.h.b16 %v2867
    %v3163 = vunpack.c.l.b16 %v2868
    %v3164 = vunpack.c.h.b16 %v2868
    %v3165 = vunpack.c.l.b16 %v2869
    %v3166 = vunpack.c.h.b16 %v2869
    %v3167 = vunpack.c.l.b16 %v2870
    %v3168 = vunpack.c.h.b16 %v2870
    %v3169 = vunpack.c.l.b16 %v2871
    %v3170 = vunpack.c.h.b16 %v2871
    %v3171 = vunpack.c.l.b16 %v2872
    %v3172 = vunpack.c.h.b16 %v2872
    %v3173 = vunpack.c.l.b16 %v2873
    %v3174 = vunpack.c.h.b16 %v2873
    %v3175 = vunpack.c.l.b16 %v2874
    %v3176 = vunpack.c.h.b16 %v2874
    %v3177 = vunpack.c.l.b16 %v2875
    %v3178 = vunpack.c.h.b16 %v2875
    %v3179 = vunpack.c.l.b16 %v2876
    %v3180 = vunpack.c.h.b16 %v2876
    %v3181 = vunpack.c.l.b16 %v2877
    %v3182 = vunpack.c.h.b16 %v2877
    %v3183 = vunpack.c.l.b16 %v2878
    %v3184 = vunpack.c.h.b16 %v2878
    %v3185 = vunpack.c.l.b16 %v2879
    %v3186 = vunpack.c.h.b16 %v2879
    %v3187 = vunpack.c.l.b16 %v2880
    %v3188 = vunpack.c.h.b16 %v2880
    %v3189 = vunpack.c.l.b16 %v2881
    %v3190 = vunpack.c.h.b16 %v2881
    %v3191 = vunpack.c.l.b16 %v2882
    %v3192 = vunpack.c.h.b16 %v2882
    %v3193 = vunpack.c.l.b16 %v2883
    %v3194 = vunpack.c.h.b16 %v2883
    %v3195 = vunpack.c.l.b16 %v2884
    %v3196 = vunpack.c.h.b16 %v2884
    %v3197 = vunpack.c.l.b16 %v2885
    %v3198 = vunpack.c.h.b16 %v2885
    %v3199 = vunpack.c.l.b16 %v2886
    %v3200 = vunpack.c.h.b16 %v2886
    %v3201 = vunpack.c.l.b16 %v2887
    %v3202 = vunpack.c.h.b16 %v2887
    %v3203 = vunpack.c.l.b16 %v2888
    %v3204 = vunpack.c.h.b16 %v2888
    %v3205 = vunpack.c.l.b16 %v2889
    %v3206 = vunpack.c.h.b16 %v2889
    %v3207 = vunpack.c.l.b16 %v2890
    %v3208 = vunpack.c.h.b16 %v2890
    %v3209 = vunpack.c.l.b16 %v2891
    %v3210 = vunpack.c.h.b16 %v2891
    %v3211 = vunpack.c.l.b16 %v2892
    %v3212 = vunpack.c.h.b16 %v2892
    %v3213 = vunpack.c.l.b16 %v2893
    %v3214 = vunpack.c.h.b16 %v2893
    %v3215 = vunpack.c.l.b16 %v2894
    %v3216 = vunpack.c.h.b16 %v2894
    %v3217 = vunpack.c.l.b16 %v2895
    %v3218 = vunpack.c.h.b16 %v2895
    %v3219 = vunpack.c.l.b16 %v2896
    %v3220 = vunpack.c.h.b16 %v2896
    %v3221 = vunpack.c.l.b16 %v2897
    %v3222 = vunpack.c.h.b16 %v2897
    %v3223 = vunpack.c.l.b16 %v2898
    %v3224 = vunpack.c.h.b16 %v2898
    %v3225 = vunpack.c.l.b16 %v2899
    %v3226 = vunpack.c.h.b16 %v2899
    %v3227 = vunpack.c.l.b16 %v2900
    %v3228 = vunpack.c.h.b16 %v2900
    %v3229 = vunpack.c.l.b16 %v2901
    %v3230 = vunpack.c.h.b16 %v2901
    %v3231 = vunpack.c.l.b16 %v2902
    %v3232 = vunpack.c.h.b16 %v2902
    %v3233 = vunpack.c.l.b16 %v2903
    %v3234 = vunpack.c.h.b16 %v2903
    %v3235 = vunpack.c.l.b16 %v2904
    %v3236 = vunpack.c.h.b16 %v2904
    %v3237 = vunpack.c.l.b16 %v2905
    %v3238 = vunpack.c.h.b16 %v2905
    %v3239 = vunpack.c.l.b16 %v2906
    %v3240 = vunpack.c.h.b16 %v2906
    %v3241 = vunpack.c.l.b16 %v2907
    %v3242 = vunpack.c.h.b16 %v2907
    %v3243 = vunpack.c.l.b16 %v2908
    %v3244 = vunpack.c.h.b16 %v2908
    %v3245 = vunpack.c.l.b16 %v2909
    %v3246 = vunpack.c.h.b16 %v2909
    %v3247 = vunpack.c.l.b16 %v2910
    %v3248 = vunpack.c.h.b16 %v2910
    %v3249 = vunpack.c.l.b16 %v2911
    %v3250 = vunpack.c.h.b16 %v2911
    %v3251 = vunpack.c.l.b16 %v2912
    %v3252 = vunpack.c.h.b16 %v2912
    %v3253 = vunpack.c.l.b16 %v2913
    %v3254 = vunpack.c.h.b16 %v2913
    %v3255 = vunpack.c.l.b16 %v2914
    %v3256 = vunpack.c.h.b16 %v2914
    %v3257 = vunpack.c.l.b16 %v2915
    %v3258 = vunpack.c.h.b16 %v2915
    %v3259 = vunpack.c.l.b16 %v2916
    %v3260 = vunpack.c.h.b16 %v2916
    %v3261 = vunpack.c.l.b16 %v2917
    %v3262 = vunpack.c.h.b16 %v2917
    %v3263 = vunpack.c.l.b16 %v2918
    %v3264 = vunpack.c.h.b16 %v2918
    %v3265 = vunpack.c.l.b16 %v2919
    %v3266 = vunpack.c.h.b16 %v2919
    %v3267 = vunpack.c.l.b16 %v2920
    %v3268 = vunpack.c.h.b16 %v2920
    %v3269 = vunpack.c.l.b16 %v2921
    %v3270 = vunpack.c.h.b16 %v2921
    %v3271 = vunpack.c.l.b16 %v2922
    %v3272 = vunpack.c.h.b16 %v2922
    %v3273 = vunpack.c.l.b16 %v2923
    %v3274 = vunpack.c.h.b16 %v2923
    %v3275 = vunpack.c.l.b16 %v2924
    %v3276 = vunpack.c.h.b16 %v2924
    %v3277 = vunpack.c.l.b16 %v2925
    %v3278 = vunpack.c.h.b16 %v2925
    %v3279 = vunpack.c.l.b16 %v2926
    %v3280 = vunpack.c.h.b16 %v2926
    %v3281 = vunpack.c.l.b16 %v2927
    %v3282 = vunpack.c.h.b16 %v2927
    %v3283 = vunpack.c.l.b16 %v2928
    %v3284 = vunpack.c.h.b16 %v2928
    %v3285 = vunpack.c.l.b16 %v2929
    %v3286 = vunpack.c.h.b16 %v2929
    %v3287 = vunpack.c.l.b16 %v2930
    %v3288 = vunpack.c.h.b16 %v2930
    %v3289 = vunpack.c.l.b16 %v2931
    %v3290 = vunpack.c.h.b16 %v2931
    %v3291 = vunpack.c.l.b16 %v2932
    %v3292 = vunpack.c.h.b16 %v2932
    %v3293 = vunpack.c.l.b16 %v2933
    %v3294 = vunpack.c.h.b16 %v2933
    %v3295 = vunpack.c.l.b16 %v2934
    %v3296 = vunpack.c.h.b16 %v2934
    %v3297 = vunpack.c.l.b16 %v2935
    %v3298 = vunpack.c.h.b16 %v2935
    %v3299 = vunpack.c.l.b16 %v2936
    %v3300 = vunpack.c.h.b16 %v2936
    %v3301 = vunpack.c.l.b16 %v2937
    %v3302 = vunpack.c.h.b16 %v2937
    %v3303 = vunpack.c.l.b16 %v2938
    %v3304 = vunpack.c.h.b16 %v2938
    %v3305 = vunpack.c.l.b16 %v2939
    %v3306 = vunpack.c.h.b16 %v2939
    %v3307 = vunpack.c.l.b16 %v2940
    %v3308 = vunpack.c.h.b16 %v2940
    %v3309 = vunpack.c.l.b16 %v2941
    %v3310 = vunpack.c.h.b16 %v2941
    %v3311 = vunpack.c.l.b16 %v2942
    %v3312 = vunpack.c.h.b16 %v2942
    %v3313 = vunpack.c.l.b16 %v2943
    %v3314 = vunpack.c.h.b16 %v2943
    %v3315 = vunpack.c.l.b16 %v2944
    %v3316 = vunpack.c.h.b16 %v2944
    %v3317 = vunpack.c.l.b16 %v2945
    %v3318 = vunpack.c.h.b16 %v2945
    %v3319 = vunpack.c.l.b16 %v2946
    %v3320 = vunpack.c.h.b16 %v2946
    %v3321 = vunpack.c.l.b16 %v2947
    %v3322 = vunpack.c.h.b16 %v2947
    %v3323 = vunpack.c.l.b16 %v2948
    %v3324 = vunpack.c.h.b16 %v2948
    %v3325 = vunpack.c.l.b16 %v2949
    %v3326 = vunpack.c.h.b16 %v2949
    %v3327 = vunpack.c.l.b16 %v2950
    %v3328 = vunpack.c.h.b16 %v2950
    %v3329 = vunpack.c.l.b16 %v2951
    %v3330 = vunpack.c.h.b16 %v2951
    %v3331 = vunpack.c.l.b16 %v2952
    %v3332 = vunpack.c.h.b16 %v2952
    %v3333 = vunpack.c.l.b16 %v2953
    %v3334 = vunpack.c.h.b16 %v2953
    %v3335 = vunpack.c.l.b16 %v2954
    %v3336 = vunpack.c.h.b16 %v2954
    %v3337 = vunpack.c.l.b16 %v2955
    %v3338 = vunpack.c.h.b16 %v2955
    %v3339 = vunpack.c.l.b16 %v2956
    %v3340 = vunpack.c.h.b16 %v2956
    %v3341 = vpack.c.b16 %v3089, %v3085
    %v3342 = vpack.c.b16 %v3090, %v3086
    %v3343 = vpack.c.b16 %v3091, %v3087
    %v3344 = vpack.c.b16 %v3092, %v3088
    %v3345 = vpack.c.b16 %v3097, %v3093
    %v3346 = vpack.c.b16 %v3098, %v3094
    %v3347 = vpack.c.b16 %v3099, %v3095
    %v3348 = vpack.c.b16 %v3100, %v3096
    %v3349 = vpack.c.b16 %v3105, %v3101
    %v3350 = vpack.c.b16 %v3106, %v3102
    %v3351 = vpack.c.b16 %v3107, %v3103
    %v3352 = vpack.c.b16 %v3108, %v3104
    %v3353 = vpack.c.b16 %v3113, %v3109
    %v3354 = vpack.c.b16 %v3114, %v3110
    %v3355 = vpack.c.b16 %v3115, %v3111
    %v3356 = vpack.c.b16 %v3116, %v3112
    %v3357 = vpack.c.b16 %v3121, %v3117
    %v3358 = vpack.c.b16 %v3122, %v3118
    %v3359 = vpack.c.b16 %v3123, %v3119
    %v3360 = vpack.c.b16 %v3124, %v3120
    %v3361 = vpack.c.b16 %v3129, %v3125
    %v3362 = vpack.c.b16 %v3130, %v3126
    %v3363 = vpack.c.b16 %v3131, %v3127
    %v3364 = vpack.c.b16 %v3132, %v3128
    %v3365 = vpack.c.b16 %v3137, %v3133
    %v3366 = vpack.c.b16 %v3138, %v3134
    %v3367 = vpack.c.b16 %v3139, %v3135
    %v3368 = vpack.c.b16 %v3140, %v3136
    %v3369 = vpack.c.b16 %v3145, %v3141
    %v3370 = vpack.c.b16 %v3146, %v3142
    %v3371 = vpack.c.b16 %v3147, %v3143
    %v3372 = vpack.c.b16 %v3148, %v3144
    %v3373 = vpack.c.b16 %v3153, %v3149
    %v3374 = vpack.c.b16 %v3154, %v3150
    %v3375 = vpack.c.b16 %v3155, %v3151
    %v3376 = vpack.c.b16 %v3156, %v3152
    %v3377 = vpack.c.b16 %v3161, %v3157
    %v3378 = vpack.c.b16 %v3162, %v3158
    %v3379 = vpack.c.b16 %v3163, %v3159
    %v3380 = vpack.c.b16 %v3164, %v3160
    %v3381 = vpack.c.b16 %v3169, %v3165
    %v3382 = vpack.c.b16 %v3170, %v3166
    %v3383 = vpack.c.b16 %v3171, %v3167
    %v3384 = vpack.c.b16 %v3172, %v3168
    %v3385 = vpack.c.b16 %v3177, %v3173
    %v3386 = vpack.c.b16 %v3178, %v3174
    %v3387 = vpack.c.b16 %v3179, %v3175
    %v3388 = vpack.c.b16 %v3180, %v3176
    %v3389 = vpack.c.b16 %v3185, %v3181
    %v3390 = vpack.c.b16 %v3186, %v3182
    %v3391 = vpack.c.b16 %v3187, %v3183
    %v3392 = vpack.c.b16 %v3188, %v3184
    %v3393 = vpack.c.b16 %v3193, %v3189
    %v3394 = vpack.c.b16 %v3194, %v3190
    %v3395 = vpack.c.b16 %v3195, %v3191
    %v3396 = vpack.c.b16 %v3196, %v3192
    %v3397 = vpack.c.b16 %v3201, %v3197
    %v3398 = vpack.c.b16 %v3202, %v3198
    %v3399 = vpack.c.b16 %v3203, %v3199
    %v3400 = vpack.c.b16 %v3204, %v3200
    %v3401 = vpack.c.b16 %v3209, %v3205
    %v3402 = vpack.c.b16 %v3210, %v3206
    %v3403 = vpack.c.b16 %v3211, %v3207
    %v3404 = vpack.c.b16 %v3212, %v3208
    %v3405 = vpack.c.b16 %v3217, %v3213
    %v3406 = vpack.c.b16 %v3218, %v3214
    %v3407 = vpack.c.b16 %v3219, %v3215
    %v3408 = vpack.c.b16 %v3220, %v3216
    %v3409 = vpack.c.b16 %v3225, %v3221
    %v3410 = vpack.c.b16 %v3226, %v3222
    %v3411 = vpack.c.b16 %v3227, %v3223
    %v3412 = vpack.c.b16 %v3228, %v3224
    %v3413 = vpack.c.b16 %v3233, %v3229
    %v3414 = vpack.c.b16 %v3234, %v3230
    %v3415 = vpack.c.b16 %v3235, %v3231
    %v3416 = vpack.c.b16 %v3236, %v3232
    %v3417 = vpack.c.b16 %v3241, %v3237
    %v3418 = vpack.c.b16 %v3242, %v3238
    %v3419 = vpack.c.b16 %v3243, %v3239
    %v3420 = vpack.c.b16 %v3244, %v3240
    %v3421 = vpack.c.b16 %v3249, %v3245
    %v3422 = vpack.c.b16 %v3250, %v3246
    %v3423 = vpack.c.b16 %v3251, %v3247
    %v3424 = vpack.c.b16 %v3252, %v3248
    %v3425 = vpack.c.b16 %v3257, %v3253
    %v3426 = vpack.c.b16 %v3258, %v3254
    %v3427 = vpack.c.b16 %v3259, %v3255
    %v3428 = vpack.c.b16 %v3260, %v3256
    %v3429 = vpack.c.b16 %v3265, %v3261
    %v3430 = vpack.c.b16 %v3266, %v3262
    %v3431 = vpack.c.b16 %v3267, %v3263
    %v3432 = vpack.c.b16 %v3268, %v3264
    %v3433 = vpack.c.b16 %v3273, %v3269
    %v3434 = vpack.c.b16 %v3274, %v3270
    %v3435 = vpack.c.b16 %v3275, %v3271
    %v3436 = vpack.c.b16 %v3276, %v3272
    %v3437 = vpack.c.b16 %v3281, %v3277
    %v3438 = vpack.c.b16 %v3282, %v3278
    %v3439 = vpack.c.b16 %v3283, %v3279
    %v3440 = vpack.c.b16 %v3284, %v3280
    %v3441 = vpack.c.b16 %v3289, %v3285
    %v3442 = vpack.c.b16 %v3290, %v3286
    %v3443 = vpack.c.b16 %v3291, %v3287
    %v3444 = vpack.c.b16 %v3292, %v3288
    %v3445 = vpack.c.b16 %v3297, %v3293
    %v3446 = vpack.c.b16 %v3298, %v3294
    %v3447 = vpack.c.b16 %v3299, %v3295
    %v3448 = vpack.c.b16 %v3300, %v3296
    %v3449 = vpack.c.b16 %v3305, %v3301
    %v3450 = vpack.c.b16 %v3306, %v3302
    %v3451 = vpack.c.b16 %v3307, %v3303
    %v3452 = vpack.c.b16 %v3308, %v3304
    %v3453 = vpack.c.b16 %v3313, %v3309
    %v3454 = vpack.c.b16 %v3314, %v3310
    %v3455 = vpack.c.b16 %v3315, %v3311
    %v3456 = vpack.c.b16 %v3316, %v3312
    %v3457 = vpack.c.b16 %v3321, %v3317
    %v3458 = vpack.c.b16 %v3322, %v3318
    %v3459 = vpack.c.b16 %v3323, %v3319
    %v3460 = vpack.c.b16 %v3324, %v3320
    %v3461 = vpack.c.b16 %v3329, %v3325
    %v3462 = vpack.c.b16 %v3330, %v3326
    %v3463 = vpack.c.b16 %v3331, %v3327
    %v3464 = vpack.c.b16 %v3332, %v3328
    %v3465 = vpack.c.b16 %v3337, %v3333
    %v3466 = vpack.c.b16 %v3338, %v3334
    %v3467 = vpack.c.b16 %v3339, %v3335
    %v3468 = vpack.c.b16 %v3340, %v3336
    %3597 = vmatprep.subr.bf16.mxu0 %v3342
    %3598 = vmatpush1.bf16.msra.mxu0 %v3341
    %3599 = vmatprep.subr.bf16.mxu0 %v3346
    %3600 = vmatpush1.bf16.msra.mxu0 %v3345
    %3601 = vmatprep.subr.bf16.mxu0 %v3350
    %3602 = vmatpush1.bf16.msra.mxu0 %v3349
    %3603 = vmatprep.subr.bf16.mxu0 %v3354
    %3604 = vmatpush1.bf16.msra.mxu0 %v3353
    %3605 = vmatprep.subr.bf16.mxu0 %v3358
    %3606 = vmatpush1.bf16.msra.mxu0 %v3357
    %3607 = vmatprep.subr.bf16.mxu0 %v3362
    %3608 = vmatpush1.bf16.msra.mxu0 %v3361
    %3609 = vmatprep.subr.bf16.mxu0 %v3366
    %3610 = vmatpush1.bf16.msra.mxu0 %v3365
    %3611 = vmatprep.subr.bf16.mxu0 %v3370
    %3612 = vmatpush1.bf16.msra.mxu0 %v3369
    %3613 = vmatprep.subr.bf16.mxu0 %v3374
    %3614 = vmatpush1.bf16.msra.mxu0 %v3373
    %3615 = vmatprep.subr.bf16.mxu0 %v3378
    %3616 = vmatpush1.bf16.msra.mxu0 %v3377
    %3617 = vmatprep.subr.bf16.mxu0 %v3382
    %3618 = vmatpush1.bf16.msra.mxu0 %v3381
    %3619 = vmatprep.subr.bf16.mxu0 %v3386
    %3620 = vmatpush1.bf16.msra.mxu0 %v3385
    %3621 = vmatprep.subr.bf16.mxu0 %v3390
    %3622 = vmatpush1.bf16.msra.mxu0 %v3389
    %3623 = vmatprep.subr.bf16.mxu0 %v3394
    %3624 = vmatpush1.bf16.msra.mxu0 %v3393
    %3625 = vmatprep.subr.bf16.mxu0 %v3398
    %3626 = vmatpush1.bf16.msra.mxu0 %v3397
    %3627 = vmatprep.subr.bf16.mxu0 %v3402
    %3628 = vmatpush1.bf16.msra.mxu0 %v3401
    %3629 = vmatprep.mubr.bf16.mxu0 %v2826
    %3630 = vmatmul.mubr.bf16.gmra.mrb[0].mxu0 %v2825
    %v3631 = vpop.f32.mrb[0].mxu0
    %v3632 = vadd.f32 0.0, %v3631
    %v3633 = vpop.f32.mrb[0].mxu0
    %v3634 = vadd.f32 0.0, %v3633
    %v3635 = vpop.f32.mrb[0].mxu0
    %v3636 = vadd.f32 0.0, %v3635
    %v3637 = vpop.f32.mrb[0].mxu0
    %v3638 = vadd.f32 0.0, %v3637
    %3639 = vdwg.mxu0
    %3640 = vmatprep.subr.bf16.mxu0 %v3406
    %3641 = vmatpush1.bf16.msra.mxu0 %v3405
    %3642 = vmatprep.subr.bf16.mxu0 %v3410
    %3643 = vmatpush1.bf16.msra.mxu0 %v3409
    %3644 = vmatprep.subr.bf16.mxu0 %v3414
    %3645 = vmatpush1.bf16.msra.mxu0 %v3413
    %3646 = vmatprep.subr.bf16.mxu0 %v3418
    %3647 = vmatpush1.bf16.msra.mxu0 %v3417
    %3648 = vmatprep.subr.bf16.mxu0 %v3422
    %3649 = vmatpush1.bf16.msra.mxu0 %v3421
    %3650 = vmatprep.subr.bf16.mxu0 %v3426
    %3651 = vmatpush1.bf16.msra.mxu0 %v3425
    %3652 = vmatprep.subr.bf16.mxu0 %v3430
    %3653 = vmatpush1.bf16.msra.mxu0 %v3429
    %3654 = vmatprep.subr.bf16.mxu0 %v3434
    %3655 = vmatpush1.bf16.msra.mxu0 %v3433
    %3656 = vmatprep.subr.bf16.mxu0 %v3438
    %3657 = vmatpush1.bf16.msra.mxu0 %v3437
    %3658 = vmatprep.subr.bf16.mxu0 %v3442
    %3659 = vmatpush1.bf16.msra.mxu0 %v3441
    %3660 = vmatprep.subr.bf16.mxu0 %v3446
    %3661 = vmatpush1.bf16.msra.mxu0 %v3445
    %3662 = vmatprep.subr.bf16.mxu0 %v3450
    %3663 = vmatpush1.bf16.msra.mxu0 %v3449
    %3664 = vmatprep.subr.bf16.mxu0 %v3454
    %3665 = vmatpush1.bf16.msra.mxu0 %v3453
    %3666 = vmatprep.subr.bf16.mxu0 %v3458
    %3667 = vmatpush1.bf16.msra.mxu0 %v3457
    %3668 = vmatprep.subr.bf16.mxu0 %v3462
    %3669 = vmatpush1.bf16.msra.mxu0 %v3461
    %3670 = vmatprep.subr.bf16.mxu0 %v3466
    %3671 = vmatpush1.bf16.msra.mxu0 %v3465
    %3672 = vmatprep.mubr.bf16.mxu0 %v2828
    %3673 = vmatmul.mubr.bf16.gmra.mrb[0].mxu0 %v2827
    %v3674 = vpop.f32.mrb[0].mxu0
    %v3675 = vadd.f32 %v3632, %v3674
    %v3676 = vpop.f32.mrb[0].mxu0
    %v3677 = vadd.f32 %v3634, %v3676
    %v3678 = vpop.f32.mrb[0].mxu0
    %v3679 = vadd.f32 %v3636, %v3678
    %v3680 = vpop.f32.mrb[0].mxu0
    %v3681 = vadd.f32 %v3638, %v3680
    %3682 = vdwg.mxu0
    %3683 = vmatprep.subr.bf16.mxu0 %v3344
    %3684 = vmatpush1.bf16.msra.mxu0 %v3343
    %3685 = vmatprep.subr.bf16.mxu0 %v3348
    %3686 = vmatpush1.bf16.msra.mxu0 %v3347
    %3687 = vmatprep.subr.bf16.mxu0 %v3352
    %3688 = vmatpush1.bf16.msra.mxu0 %v3351
    %3689 = vmatprep.subr.bf16.mxu0 %v3356
    %3690 = vmatpush1.bf16.msra.mxu0 %v3355
    %3691 = vmatprep.subr.bf16.mxu0 %v3360
    %3692 = vmatpush1.bf16.msra.mxu0 %v3359
    %3693 = vmatprep.subr.bf16.mxu0 %v3364
    %3694 = vmatpush1.bf16.msra.mxu0 %v3363
    %3695 = vmatprep.subr.bf16.mxu0 %v3368
    %3696 = vmatpush1.bf16.msra.mxu0 %v3367
    %3697 = vmatprep.subr.bf16.mxu0 %v3372
    %3698 = vmatpush1.bf16.msra.mxu0 %v3371
    %3699 = vmatprep.subr.bf16.mxu0 %v3376
    %3700 = vmatpush1.bf16.msra.mxu0 %v3375
    %3701 = vmatprep.subr.bf16.mxu0 %v3380
    %3702 = vmatpush1.bf16.msra.mxu0 %v3379
    %3703 = vmatprep.subr.bf16.mxu0 %v3384
    %3704 = vmatpush1.bf16.msra.mxu0 %v3383
    %3705 = vmatprep.subr.bf16.mxu0 %v3388
    %3706 = vmatpush1.bf16.msra.mxu0 %v3387
    %3707 = vmatprep.subr.bf16.mxu0 %v3392
    %3708 = vmatpush1.bf16.msra.mxu0 %v3391
    %3709 = vmatprep.subr.bf16.mxu0 %v3396
    %3710 = vmatpush1.bf16.msra.mxu0 %v3395
    %3711 = vmatprep.subr.bf16.mxu0 %v3400
    %3712 = vmatpush1.bf16.msra.mxu0 %v3399
    %3713 = vmatprep.subr.bf16.mxu0 %v3404
    %3714 = vmatpush1.bf16.msra.mxu0 %v3403
    %3715 = vmatprep.mubr.bf16.mxu0 %v2826
    %3716 = vmatmul.mubr.bf16.gmra.mrb[0].mxu0 %v2825
    %v3717 = vpop.f32.mrb[0].mxu0
    %v3718 = vadd.f32 0.0, %v3717
    %v3719 = vpop.f32.mrb[0].mxu0
    %v3720 = vadd.f32 0.0, %v3719
    %v3721 = vpop.f32.mrb[0].mxu0
    %v3722 = vadd.f32 0.0, %v3721
    %v3723 = vpop.f32.mrb[0].mxu0
    %v3724 = vadd.f32 0.0, %v3723
    %3725 = vdwg.mxu0
    %3726 = vmatprep.subr.bf16.mxu0 %v3408
    %3727 = vmatpush1.bf16.msra.mxu0 %v3407
    %3728 = vmatprep.subr.bf16.mxu0 %v3412
    %3729 = vmatpush1.bf16.msra.mxu0 %v3411
    %3730 = vmatprep.subr.bf16.mxu0 %v3416
    %3731 = vmatpush1.bf16.msra.mxu0 %v3415
    %3732 = vmatprep.subr.bf16.mxu0 %v3420
    %3733 = vmatpush1.bf16.msra.mxu0 %v3419
    %3734 = vmatprep.subr.bf16.mxu0 %v3424
    %3735 = vmatpush1.bf16.msra.mxu0 %v3423
    %3736 = vmatprep.subr.bf16.mxu0 %v3428
    %3737 = vmatpush1.bf16.msra.mxu0 %v3427
    %3738 = vmatprep.subr.bf16.mxu0 %v3432
    %3739 = vmatpush1.bf16.msra.mxu0 %v3431
    %3740 = vmatprep.subr.bf16.mxu0 %v3436
    %3741 = vmatpush1.bf16.msra.mxu0 %v3435
    %3742 = vmatprep.subr.bf16.mxu0 %v3440
    %3743 = vmatpush1.bf16.msra.mxu0 %v3439
    %3744 = vmatprep.subr.bf16.mxu0 %v3444
    %3745 = vmatpush1.bf16.msra.mxu0 %v3443
    %3746 = vmatprep.subr.bf16.mxu0 %v3448
    %3747 = vmatpush1.bf16.msra.mxu0 %v3447
    %3748 = vmatprep.subr.bf16.mxu0 %v3452
    %3749 = vmatpush1.bf16.msra.mxu0 %v3451
    %3750 = vmatprep.subr.bf16.mxu0 %v3456
    %3751 = vmatpush1.bf16.msra.mxu0 %v3455
    %3752 = vmatprep.subr.bf16.mxu0 %v3460
    %3753 = vmatpush1.bf16.msra.mxu0 %v3459
    %3754 = vmatprep.subr.bf16.mxu0 %v3464
    %3755 = vmatpush1.bf16.msra.mxu0 %v3463
    %3756 = vmatprep.subr.bf16.mxu0 %v3468
    %3757 = vmatpush1.bf16.msra.mxu0 %v3467
    %3758 = vmatprep.mubr.bf16.mxu0 %v2828
    %3759 = vmatmul.mubr.bf16.gmra.mrb[0].mxu0 %v2827
    %v3760 = vpop.f32.mrb[0].mxu0
    %v3761 = vadd.f32 %v3718, %v3760
    %v3762 = vpop.f32.mrb[0].mxu0
    %v3763 = vadd.f32 %v3720, %v3762
    %v3764 = vpop.f32.mrb[0].mxu0
    %v3765 = vadd.f32 %v3722, %v3764
    %v3766 = vpop.f32.mrb[0].mxu0
    %v3767 = vadd.f32 %v3724, %v3766
    %3768 = vdwg.mxu0
    %v3770 = vlaneseq
    %v3771 = vshrl.u32 %v3770, 7
    %v3772 = vsub.s32 0, %v3771
    %v3773 = vrot.slane %v2824, %v3772
    %v3774 = vlaneseq
    %v3775 = vshrl.u32 %v3774, 7
    %v3776 = vsub.s32 1, %v3775
    %v3777 = vrot.slane %v2824, %v3776
    %v3778 = vlaneseq
    %v3779 = vshrl.u32 %v3778, 7
    %v3780 = vsub.s32 2, %v3779
    %v3781 = vrot.slane %v2824, %v3780
    %v3782 = vlaneseq
    %v3783 = vshrl.u32 %v3782, 7
    %v3784 = vsub.s32 3, %v3783
    %v3785 = vrot.slane %v2824, %v3784
    %v3790 = vadd.f32 %v3773, %v3675
    %v3791 = vadd.f32 %v3777, %v3677
    %v3792 = vadd.f32 %v3781, %v3761
    %v3793 = vadd.f32 %v3785, %v3763
    %v3794 = vadd.f32 %v3773, %v3679
    %v3795 = vadd.f32 %v3777, %v3681
    %v3796 = vadd.f32 %v3781, %v3765
    %v3797 = vadd.f32 %v3785, %v3767
    %v3798 = vld [vmem:[%s8] sm:$0xf]
    %v3799 = vpack.c.bf16 %v3794, %v3790
    %v3800 = vpack.c.bf16 %v3795, %v3791
    %v3801 = vpack.c.bf16 %v3796, %v3792
    %v3802 = vpack.c.bf16 %v3797, %v3793
    %v3803 = vld [vmem:[#allocation7] sm:$0xff]
    %v3804 = vld [vmem:[#allocation7 + $0x8] sm:$0xff]
    %v3805 = vld [vmem:[#allocation7 + $0x10] sm:$0xff]
    %v3806 = vld [vmem:[#allocation7 + $0x18] sm:$0xff]
    %v3807 = vld [vmem:[#allocation7 + $0x20] sm:$0xff]
    %v3808 = vld [vmem:[#allocation7 + $0x28] sm:$0xff]
    %v3809 = vld [vmem:[#allocation7 + $0x30] sm:$0xff]
    %v3810 = vld [vmem:[#allocation7 + $0x38] sm:$0xff]
    %v3811 = vld [vmem:[#allocation7 + $0x40] sm:$0xff]
    %v3812 = vld [vmem:[#allocation7 + $0x48] sm:$0xff]
    %v3813 = vld [vmem:[#allocation7 + $0x50] sm:$0xff]
    %v3814 = vld [vmem:[#allocation7 + $0x58] sm:$0xff]
    %v3815 = vld [vmem:[#allocation7 + $0x60] sm:$0xff]
    %v3816 = vld [vmem:[#allocation7 + $0x68] sm:$0xff]
    %v3817 = vld [vmem:[#allocation7 + $0x70] sm:$0xff]
    %v3818 = vld [vmem:[#allocation7 + $0x78] sm:$0xff]
    %v3819 = vld [vmem:[#allocation7 + $0x80] sm:$0xff]
    %v3820 = vld [vmem:[#allocation7 + $0x88] sm:$0xff]
    %v3821 = vld [vmem:[#allocation7 + $0x90] sm:$0xff]
    %v3822 = vld [vmem:[#allocation7 + $0x98] sm:$0xff]
    %v3823 = vld [vmem:[#allocation7 + $0xa0] sm:$0xff]
    %v3824 = vld [vmem:[#allocation7 + $0xa8] sm:$0xff]
    %v3825 = vld [vmem:[#allocation7 + $0xb0] sm:$0xff]
    %v3826 = vld [vmem:[#allocation7 + $0xb8] sm:$0xff]
    %v3827 = vld [vmem:[#allocation7 + $0xc0] sm:$0xff]
    %v3828 = vld [vmem:[#allocation7 + $0xc8] sm:$0xff]
    %v3829 = vld [vmem:[#allocation7 + $0xd0] sm:$0xff]
    %v3830 = vld [vmem:[#allocation7 + $0xd8] sm:$0xff]
    %v3831 = vld [vmem:[#allocation7 + $0xe0] sm:$0xff]
    %v3832 = vld [vmem:[#allocation7 + $0xe8] sm:$0xff]
    %v3833 = vld [vmem:[#allocation7 + $0xf0] sm:$0xff]
    %v3834 = vld [vmem:[#allocation7 + $0xf8] sm:$0xff]
    %v3835 = vld [vmem:[#allocation7 + $0x100] sm:$0xff]
    %v3836 = vld [vmem:[#allocation7 + $0x108] sm:$0xff]
    %v3837 = vld [vmem:[#allocation7 + $0x110] sm:$0xff]
    %v3838 = vld [vmem:[#allocation7 + $0x118] sm:$0xff]
    %v3839 = vld [vmem:[#allocation7 + $0x120] sm:$0xff]
    %v3840 = vld [vmem:[#allocation7 + $0x128] sm:$0xff]
    %v3841 = vld [vmem:[#allocation7 + $0x130] sm:$0xff]
    %v3842 = vld [vmem:[#allocation7 + $0x138] sm:$0xff]
    %v3843 = vld [vmem:[#allocation7 + $0x140] sm:$0xff]
    %v3844 = vld [vmem:[#allocation7 + $0x148] sm:$0xff]
    %v3845 = vld [vmem:[#allocation7 + $0x150] sm:$0xff]
    %v3846 = vld [vmem:[#allocation7 + $0x158] sm:$0xff]
    %v3847 = vld [vmem:[#allocation7 + $0x160] sm:$0xff]
    %v3848 = vld [vmem:[#allocation7 + $0x168] sm:$0xff]
    %v3849 = vld [vmem:[#allocation7 + $0x170] sm:$0xff]
    %v3850 = vld [vmem:[#allocation7 + $0x178] sm:$0xff]
    %v3851 = vld [vmem:[#allocation7 + $0x180] sm:$0xff]
    %v3852 = vld [vmem:[#allocation7 + $0x188] sm:$0xff]
    %v3853 = vld [vmem:[#allocation7 + $0x190] sm:$0xff]
    %v3854 = vld [vmem:[#allocation7 + $0x198] sm:$0xff]
    %v3855 = vld [vmem:[#allocation7 + $0x1a0] sm:$0xff]
    %v3856 = vld [vmem:[#allocation7 + $0x1a8] sm:$0xff]
    %v3857 = vld [vmem:[#allocation7 + $0x1b0] sm:$0xff]
    %v3858 = vld [vmem:[#allocation7 + $0x1b8] sm:$0xff]
    %v3859 = vld [vmem:[#allocation7 + $0x1c0] sm:$0xff]
    %v3860 = vld [vmem:[#allocation7 + $0x1c8] sm:$0xff]
    %v3861 = vld [vmem:[#allocation7 + $0x1d0] sm:$0xff]
    %v3862 = vld [vmem:[#allocation7 + $0x1d8] sm:$0xff]
    %v3863 = vld [vmem:[#allocation7 + $0x1e0] sm:$0xff]
    %v3864 = vld [vmem:[#allocation7 + $0x1e8] sm:$0xff]
    %v3865 = vld [vmem:[#allocation7 + $0x1f0] sm:$0xff]
    %v3866 = vld [vmem:[#allocation7 + $0x1f8] sm:$0xff]
    %v3867 = vld [vmem:[#allocation7 + $0x200] sm:$0xff]
    %v3868 = vld [vmem:[#allocation7 + $0x208] sm:$0xff]
    %v3869 = vld [vmem:[#allocation7 + $0x210] sm:$0xff]
    %v3870 = vld [vmem:[#allocation7 + $0x218] sm:$0xff]
    %v3871 = vld [vmem:[#allocation7 + $0x220] sm:$0xff]
    %v3872 = vld [vmem:[#allocation7 + $0x228] sm:$0xff]
    %v3873 = vld [vmem:[#allocation7 + $0x230] sm:$0xff]
    %v3874 = vld [vmem:[#allocation7 + $0x238] sm:$0xff]
    %v3875 = vld [vmem:[#allocation7 + $0x240] sm:$0xff]
    %v3876 = vld [vmem:[#allocation7 + $0x248] sm:$0xff]
    %v3877 = vld [vmem:[#allocation7 + $0x250] sm:$0xff]
    %v3878 = vld [vmem:[#allocation7 + $0x258] sm:$0xff]
    %v3879 = vld [vmem:[#allocation7 + $0x260] sm:$0xff]
    %v3880 = vld [vmem:[#allocation7 + $0x268] sm:$0xff]
    %v3881 = vld [vmem:[#allocation7 + $0x270] sm:$0xff]
    %v3882 = vld [vmem:[#allocation7 + $0x278] sm:$0xff]
    %v3883 = vld [vmem:[#allocation7 + $0x280] sm:$0xff]
    %v3884 = vld [vmem:[#allocation7 + $0x288] sm:$0xff]
    %v3885 = vld [vmem:[#allocation7 + $0x290] sm:$0xff]
    %v3886 = vld [vmem:[#allocation7 + $0x298] sm:$0xff]
    %v3887 = vld [vmem:[#allocation7 + $0x2a0] sm:$0xff]
    %v3888 = vld [vmem:[#allocation7 + $0x2a8] sm:$0xff]
    %v3889 = vld [vmem:[#allocation7 + $0x2b0] sm:$0xff]
    %v3890 = vld [vmem:[#allocation7 + $0x2b8] sm:$0xff]
    %v3891 = vld [vmem:[#allocation7 + $0x2c0] sm:$0xff]
    %v3892 = vld [vmem:[#allocation7 + $0x2c8] sm:$0xff]
    %v3893 = vld [vmem:[#allocation7 + $0x2d0] sm:$0xff]
    %v3894 = vld [vmem:[#allocation7 + $0x2d8] sm:$0xff]
    %v3895 = vld [vmem:[#allocation7 + $0x2e0] sm:$0xff]
    %v3896 = vld [vmem:[#allocation7 + $0x2e8] sm:$0xff]
    %v3897 = vld [vmem:[#allocation7 + $0x2f0] sm:$0xff]
    %v3898 = vld [vmem:[#allocation7 + $0x2f8] sm:$0xff]
    %v3899 = vld [vmem:[#allocation7 + $0x300] sm:$0xff]
    %v3900 = vld [vmem:[#allocation7 + $0x308] sm:$0xff]
    %v3901 = vld [vmem:[#allocation7 + $0x310] sm:$0xff]
    %v3902 = vld [vmem:[#allocation7 + $0x318] sm:$0xff]
    %v3903 = vld [vmem:[#allocation7 + $0x320] sm:$0xff]
    %v3904 = vld [vmem:[#allocation7 + $0x328] sm:$0xff]
    %v3905 = vld [vmem:[#allocation7 + $0x330] sm:$0xff]
    %v3906 = vld [vmem:[#allocation7 + $0x338] sm:$0xff]
    %v3907 = vld [vmem:[#allocation7 + $0x340] sm:$0xff]
    %v3908 = vld [vmem:[#allocation7 + $0x348] sm:$0xff]
    %v3909 = vld [vmem:[#allocation7 + $0x350] sm:$0xff]
    %v3910 = vld [vmem:[#allocation7 + $0x358] sm:$0xff]
    %v3911 = vld [vmem:[#allocation7 + $0x360] sm:$0xff]
    %v3912 = vld [vmem:[#allocation7 + $0x368] sm:$0xff]
    %v3913 = vld [vmem:[#allocation7 + $0x370] sm:$0xff]
    %v3914 = vld [vmem:[#allocation7 + $0x378] sm:$0xff]
    %v3915 = vld [vmem:[#allocation7 + $0x380] sm:$0xff]
    %v3916 = vld [vmem:[#allocation7 + $0x388] sm:$0xff]
    %v3917 = vld [vmem:[#allocation7 + $0x390] sm:$0xff]
    %v3918 = vld [vmem:[#allocation7 + $0x398] sm:$0xff]
    %v3919 = vld [vmem:[#allocation7 + $0x3a0] sm:$0xff]
    %v3920 = vld [vmem:[#allocation7 + $0x3a8] sm:$0xff]
    %v3921 = vld [vmem:[#allocation7 + $0x3b0] sm:$0xff]
    %v3922 = vld [vmem:[#allocation7 + $0x3b8] sm:$0xff]
    %v3923 = vld [vmem:[#allocation7 + $0x3c0] sm:$0xff]
    %v3924 = vld [vmem:[#allocation7 + $0x3c8] sm:$0xff]
    %v3925 = vld [vmem:[#allocation7 + $0x3d0] sm:$0xff]
    %v3926 = vld [vmem:[#allocation7 + $0x3d8] sm:$0xff]
    %v3927 = vld [vmem:[#allocation7 + $0x3e0] sm:$0xff]
    %v3928 = vld [vmem:[#allocation7 + $0x3e8] sm:$0xff]
    %v3929 = vld [vmem:[#allocation7 + $0x3f0] sm:$0xff]
    %v3930 = vld [vmem:[#allocation7 + $0x3f8] sm:$0xff]
    %v4059 = vunpack.c.l.b16 %v3803
    %v4060 = vunpack.c.h.b16 %v3803
    %v4061 = vunpack.c.l.b16 %v3804
    %v4062 = vunpack.c.h.b16 %v3804
    %v4063 = vunpack.c.l.b16 %v3805
    %v4064 = vunpack.c.h.b16 %v3805
    %v4065 = vunpack.c.l.b16 %v3806
    %v4066 = vunpack.c.h.b16 %v3806
    %v4067 = vunpack.c.l.b16 %v3807
    %v4068 = vunpack.c.h.b16 %v3807
    %v4069 = vunpack.c.l.b16 %v3808
    %v4070 = vunpack.c.h.b16 %v3808
    %v4071 = vunpack.c.l.b16 %v3809
    %v4072 = vunpack.c.h.b16 %v3809
    %v4073 = vunpack.c.l.b16 %v3810
    %v4074 = vunpack.c.h.b16 %v3810
    %v4075 = vunpack.c.l.b16 %v3811
    %v4076 = vunpack.c.h.b16 %v3811
    %v4077 = vunpack.c.l.b16 %v3812
    %v4078 = vunpack.c.h.b16 %v3812
    %v4079 = vunpack.c.l.b16 %v3813
    %v4080 = vunpack.c.h.b16 %v3813
    %v4081 = vunpack.c.l.b16 %v3814
    %v4082 = vunpack.c.h.b16 %v3814
    %v4083 = vunpack.c.l.b16 %v3815
    %v4084 = vunpack.c.h.b16 %v3815
    %v4085 = vunpack.c.l.b16 %v3816
    %v4086 = vunpack.c.h.b16 %v3816
    %v4087 = vunpack.c.l.b16 %v3817
    %v4088 = vunpack.c.h.b16 %v3817
    %v4089 = vunpack.c.l.b16 %v3818
    %v4090 = vunpack.c.h.b16 %v3818
    %v4091 = vunpack.c.l.b16 %v3819
    %v4092 = vunpack.c.h.b16 %v3819
    %v4093 = vunpack.c.l.b16 %v3820
    %v4094 = vunpack.c.h.b16 %v3820
    %v4095 = vunpack.c.l.b16 %v3821
    %v4096 = vunpack.c.h.b16 %v3821
    %v4097 = vunpack.c.l.b16 %v3822
    %v4098 = vunpack.c.h.b16 %v3822
    %v4099 = vunpack.c.l.b16 %v3823
    %v4100 = vunpack.c.h.b16 %v3823
    %v4101 = vunpack.c.l.b16 %v3824
    %v4102 = vunpack.c.h.b16 %v3824
    %v4103 = vunpack.c.l.b16 %v3825
    %v4104 = vunpack.c.h.b16 %v3825
    %v4105 = vunpack.c.l.b16 %v3826
    %v4106 = vunpack.c.h.b16 %v3826
    %v4107 = vunpack.c.l.b16 %v3827
    %v4108 = vunpack.c.h.b16 %v3827
    %v4109 = vunpack.c.l.b16 %v3828
    %v4110 = vunpack.c.h.b16 %v3828
    %v4111 = vunpack.c.l.b16 %v3829
    %v4112 = vunpack.c.h.b16 %v3829
    %v4113 = vunpack.c.l.b16 %v3830
    %v4114 = vunpack.c.h.b16 %v3830
    %v4115 = vunpack.c.l.b16 %v3831
    %v4116 = vunpack.c.h.b16 %v3831
    %v4117 = vunpack.c.l.b16 %v3832
    %v4118 = vunpack.c.h.b16 %v3832
    %v4119 = vunpack.c.l.b16 %v3833
    %v4120 = vunpack.c.h.b16 %v3833
    %v4121 = vunpack.c.l.b16 %v3834
    %v4122 = vunpack.c.h.b16 %v3834
    %v4123 = vunpack.c.l.b16 %v3835
    %v4124 = vunpack.c.h.b16 %v3835
    %v4125 = vunpack.c.l.b16 %v3836
    %v4126 = vunpack.c.h.b16 %v3836
    %v4127 = vunpack.c.l.b16 %v3837
    %v4128 = vunpack.c.h.b16 %v3837
    %v4129 = vunpack.c.l.b16 %v3838
    %v4130 = vunpack.c.h.b16 %v3838
    %v4131 = vunpack.c.l.b16 %v3839
    %v4132 = vunpack.c.h.b16 %v3839
    %v4133 = vunpack.c.l.b16 %v3840
    %v4134 = vunpack.c.h.b16 %v3840
    %v4135 = vunpack.c.l.b16 %v3841
    %v4136 = vunpack.c.h.b16 %v3841
    %v4137 = vunpack.c.l.b16 %v3842
    %v4138 = vunpack.c.h.b16 %v3842
    %v4139 = vunpack.c.l.b16 %v3843
    %v4140 = vunpack.c.h.b16 %v3843
    %v4141 = vunpack.c.l.b16 %v3844
    %v4142 = vunpack.c.h.b16 %v3844
    %v4143 = vunpack.c.l.b16 %v3845
    %v4144 = vunpack.c.h.b16 %v3845
    %v4145 = vunpack.c.l.b16 %v3846
    %v4146 = vunpack.c.h.b16 %v3846
    %v4147 = vunpack.c.l.b16 %v3847
    %v4148 = vunpack.c.h.b16 %v3847
    %v4149 = vunpack.c.l.b16 %v3848
    %v4150 = vunpack.c.h.b16 %v3848
    %v4151 = vunpack.c.l.b16 %v3849
    %v4152 = vunpack.c.h.b16 %v3849
    %v4153 = vunpack.c.l.b16 %v3850
    %v4154 = vunpack.c.h.b16 %v3850
    %v4155 = vunpack.c.l.b16 %v3851
    %v4156 = vunpack.c.h.b16 %v3851
    %v4157 = vunpack.c.l.b16 %v3852
    %v4158 = vunpack.c.h.b16 %v3852
    %v4159 = vunpack.c.l.b16 %v3853
    %v4160 = vunpack.c.h.b16 %v3853
    %v4161 = vunpack.c.l.b16 %v3854
    %v4162 = vunpack.c.h.b16 %v3854
    %v4163 = vunpack.c.l.b16 %v3855
    %v4164 = vunpack.c.h.b16 %v3855
    %v4165 = vunpack.c.l.b16 %v3856
    %v4166 = vunpack.c.h.b16 %v3856
    %v4167 = vunpack.c.l.b16 %v3857
    %v4168 = vunpack.c.h.b16 %v3857
    %v4169 = vunpack.c.l.b16 %v3858
    %v4170 = vunpack.c.h.b16 %v3858
    %v4171 = vunpack.c.l.b16 %v3859
    %v4172 = vunpack.c.h.b16 %v3859
    %v4173 = vunpack.c.l.b16 %v3860
    %v4174 = vunpack.c.h.b16 %v3860
    %v4175 = vunpack.c.l.b16 %v3861
    %v4176 = vunpack.c.h.b16 %v3861
    %v4177 = vunpack.c.l.b16 %v3862
    %v4178 = vunpack.c.h.b16 %v3862
    %v4179 = vunpack.c.l.b16 %v3863
    %v4180 = vunpack.c.h.b16 %v3863
    %v4181 = vunpack.c.l.b16 %v3864
    %v4182 = vunpack.c.h.b16 %v3864
    %v4183 = vunpack.c.l.b16 %v3865
    %v4184 = vunpack.c.h.b16 %v3865
    %v4185 = vunpack.c.l.b16 %v3866
    %v4186 = vunpack.c.h.b16 %v3866
    %v4187 = vunpack.c.l.b16 %v3867
    %v4188 = vunpack.c.h.b16 %v3867
    %v4189 = vunpack.c.l.b16 %v3868
    %v4190 = vunpack.c.h.b16 %v3868
    %v4191 = vunpack.c.l.b16 %v3869
    %v4192 = vunpack.c.h.b16 %v3869
    %v4193 = vunpack.c.l.b16 %v3870
    %v4194 = vunpack.c.h.b16 %v3870
    %v4195 = vunpack.c.l.b16 %v3871
    %v4196 = vunpack.c.h.b16 %v3871
    %v4197 = vunpack.c.l.b16 %v3872
    %v4198 = vunpack.c.h.b16 %v3872
    %v4199 = vunpack.c.l.b16 %v3873
    %v4200 = vunpack.c.h.b16 %v3873
    %v4201 = vunpack.c.l.b16 %v3874
    %v4202 = vunpack.c.h.b16 %v3874
    %v4203 = vunpack.c.l.b16 %v3875
    %v4204 = vunpack.c.h.b16 %v3875
    %v4205 = vunpack.c.l.b16 %v3876
    %v4206 = vunpack.c.h.b16 %v3876
    %v4207 = vunpack.c.l.b16 %v3877
    %v4208 = vunpack.c.h.b16 %v3877
    %v4209 = vunpack.c.l.b16 %v3878
    %v4210 = vunpack.c.h.b16 %v3878
    %v4211 = vunpack.c.l.b16 %v3879
    %v4212 = vunpack.c.h.b16 %v3879
    %v4213 = vunpack.c.l.b16 %v3880
    %v4214 = vunpack.c.h.b16 %v3880
    %v4215 = vunpack.c.l.b16 %v3881
    %v4216 = vunpack.c.h.b16 %v3881
    %v4217 = vunpack.c.l.b16 %v3882
    %v4218 = vunpack.c.h.b16 %v3882
    %v4219 = vunpack.c.l.b16 %v3883
    %v4220 = vunpack.c.h.b16 %v3883
    %v4221 = vunpack.c.l.b16 %v3884
    %v4222 = vunpack.c.h.b16 %v3884
    %v4223 = vunpack.c.l.b16 %v3885
    %v4224 = vunpack.c.h.b16 %v3885
    %v4225 = vunpack.c.l.b16 %v3886
    %v4226 = vunpack.c.h.b16 %v3886
    %v4227 = vunpack.c.l.b16 %v3887
    %v4228 = vunpack.c.h.b16 %v3887
    %v4229 = vunpack.c.l.b16 %v3888
    %v4230 = vunpack.c.h.b16 %v3888
    %v4231 = vunpack.c.l.b16 %v3889
    %v4232 = vunpack.c.h.b16 %v3889
    %v4233 = vunpack.c.l.b16 %v3890
    %v4234 = vunpack.c.h.b16 %v3890
    %v4235 = vunpack.c.l.b16 %v3891
    %v4236 = vunpack.c.h.b16 %v3891
    %v4237 = vunpack.c.l.b16 %v3892
    %v4238 = vunpack.c.h.b16 %v3892
    %v4239 = vunpack.c.l.b16 %v3893
    %v4240 = vunpack.c.h.b16 %v3893
    %v4241 = vunpack.c.l.b16 %v3894
    %v4242 = vunpack.c.h.b16 %v3894
    %v4243 = vunpack.c.l.b16 %v3895
    %v4244 = vunpack.c.h.b16 %v3895
    %v4245 = vunpack.c.l.b16 %v3896
    %v4246 = vunpack.c.h.b16 %v3896
    %v4247 = vunpack.c.l.b16 %v3897
    %v4248 = vunpack.c.h.b16 %v3897
    %v4249 = vunpack.c.l.b16 %v3898
    %v4250 = vunpack.c.h.b16 %v3898
    %v4251 = vunpack.c.l.b16 %v3899
    %v4252 = vunpack.c.h.b16 %v3899
    %v4253 = vunpack.c.l.b16 %v3900
    %v4254 = vunpack.c.h.b16 %v3900
    %v4255 = vunpack.c.l.b16 %v3901
    %v4256 = vunpack.c.h.b16 %v3901
    %v4257 = vunpack.c.l.b16 %v3902
    %v4258 = vunpack.c.h.b16 %v3902
    %v4259 = vunpack.c.l.b16 %v3903
    %v4260 = vunpack.c.h.b16 %v3903
    %v4261 = vunpack.c.l.b16 %v3904
    %v4262 = vunpack.c.h.b16 %v3904
    %v4263 = vunpack.c.l.b16 %v3905
    %v4264 = vunpack.c.h.b16 %v3905
    %v4265 = vunpack.c.l.b16 %v3906
    %v4266 = vunpack.c.h.b16 %v3906
    %v4267 = vunpack.c.l.b16 %v3907
    %v4268 = vunpack.c.h.b16 %v3907
    %v4269 = vunpack.c.l.b16 %v3908
    %v4270 = vunpack.c.h.b16 %v3908
    %v4271 = vunpack.c.l.b16 %v3909
    %v4272 = vunpack.c.h.b16 %v3909
    %v4273 = vunpack.c.l.b16 %v3910
    %v4274 = vunpack.c.h.b16 %v3910
    %v4275 = vunpack.c.l.b16 %v3911
    %v4276 = vunpack.c.h.b16 %v3911
    %v4277 = vunpack.c.l.b16 %v3912
    %v4278 = vunpack.c.h.b16 %v3912
    %v4279 = vunpack.c.l.b16 %v3913
    %v4280 = vunpack.c.h.b16 %v3913
    %v4281 = vunpack.c.l.b16 %v3914
    %v4282 = vunpack.c.h.b16 %v3914
    %v4283 = vunpack.c.l.b16 %v3915
    %v4284 = vunpack.c.h.b16 %v3915
    %v4285 = vunpack.c.l.b16 %v3916
    %v4286 = vunpack.c.h.b16 %v3916
    %v4287 = vunpack.c.l.b16 %v3917
    %v4288 = vunpack.c.h.b16 %v3917
    %v4289 = vunpack.c.l.b16 %v3918
    %v4290 = vunpack.c.h.b16 %v3918
    %v4291 = vunpack.c.l.b16 %v3919
    %v4292 = vunpack.c.h.b16 %v3919
    %v4293 = vunpack.c.l.b16 %v3920
    %v4294 = vunpack.c.h.b16 %v3920
    %v4295 = vunpack.c.l.b16 %v3921
    %v4296 = vunpack.c.h.b16 %v3921
    %v4297 = vunpack.c.l.b16 %v3922
    %v4298 = vunpack.c.h.b16 %v3922
    %v4299 = vunpack.c.l.b16 %v3923
    %v4300 = vunpack.c.h.b16 %v3923
    %v4301 = vunpack.c.l.b16 %v3924
    %v4302 = vunpack.c.h.b16 %v3924
    %v4303 = vunpack.c.l.b16 %v3925
    %v4304 = vunpack.c.h.b16 %v3925
    %v4305 = vunpack.c.l.b16 %v3926
    %v4306 = vunpack.c.h.b16 %v3926
    %v4307 = vunpack.c.l.b16 %v3927
    %v4308 = vunpack.c.h.b16 %v3927
    %v4309 = vunpack.c.l.b16 %v3928
    %v4310 = vunpack.c.h.b16 %v3928
    %v4311 = vunpack.c.l.b16 %v3929
    %v4312 = vunpack.c.h.b16 %v3929
    %v4313 = vunpack.c.l.b16 %v3930
    %v4314 = vunpack.c.h.b16 %v3930
    %v4315 = vpack.c.b16 %v4063, %v4059
    %v4316 = vpack.c.b16 %v4064, %v4060
    %v4317 = vpack.c.b16 %v4065, %v4061
    %v4318 = vpack.c.b16 %v4066, %v4062
    %v4319 = vpack.c.b16 %v4071, %v4067
    %v4320 = vpack.c.b16 %v4072, %v4068
    %v4321 = vpack.c.b16 %v4073, %v4069
    %v4322 = vpack.c.b16 %v4074, %v4070
    %v4323 = vpack.c.b16 %v4079, %v4075
    %v4324 = vpack.c.b16 %v4080, %v4076
    %v4325 = vpack.c.b16 %v4081, %v4077
    %v4326 = vpack.c.b16 %v4082, %v4078
    %v4327 = vpack.c.b16 %v4087, %v4083
    %v4328 = vpack.c.b16 %v4088, %v4084
    %v4329 = vpack.c.b16 %v4089, %v4085
    %v4330 = vpack.c.b16 %v4090, %v4086
    %v4331 = vpack.c.b16 %v4095, %v4091
    %v4332 = vpack.c.b16 %v4096, %v4092
    %v4333 = vpack.c.b16 %v4097, %v4093
    %v4334 = vpack.c.b16 %v4098, %v4094
    %v4335 = vpack.c.b16 %v4103, %v4099
    %v4336 = vpack.c.b16 %v4104, %v4100
    %v4337 = vpack.c.b16 %v4105, %v4101
    %v4338 = vpack.c.b16 %v4106, %v4102
    %v4339 = vpack.c.b16 %v4111, %v4107
    %v4340 = vpack.c.b16 %v4112, %v4108
    %v4341 = vpack.c.b16 %v4113, %v4109
    %v4342 = vpack.c.b16 %v4114, %v4110
    %v4343 = vpack.c.b16 %v4119, %v4115
    %v4344 = vpack.c.b16 %v4120, %v4116
    %v4345 = vpack.c.b16 %v4121, %v4117
    %v4346 = vpack.c.b16 %v4122, %v4118
    %v4347 = vpack.c.b16 %v4127, %v4123
    %v4348 = vpack.c.b16 %v4128, %v4124
    %v4349 = vpack.c.b16 %v4129, %v4125
    %v4350 = vpack.c.b16 %v4130, %v4126
    %v4351 = vpack.c.b16 %v4135, %v4131
    %v4352 = vpack.c.b16 %v4136, %v4132
    %v4353 = vpack.c.b16 %v4137, %v4133
    %v4354 = vpack.c.b16 %v4138, %v4134
    %v4355 = vpack.c.b16 %v4143, %v4139
    %v4356 = vpack.c.b16 %v4144, %v4140
    %v4357 = vpack.c.b16 %v4145, %v4141
    %v4358 = vpack.c.b16 %v4146, %v4142
    %v4359 = vpack.c.b16 %v4151, %v4147
    %v4360 = vpack.c.b16 %v4152, %v4148
    %v4361 = vpack.c.b16 %v4153, %v4149
    %v4362 = vpack.c.b16 %v4154, %v4150
    %v4363 = vpack.c.b16 %v4159, %v4155
    %v4364 = vpack.c.b16 %v4160, %v4156
    %v4365 = vpack.c.b16 %v4161, %v4157
    %v4366 = vpack.c.b16 %v4162, %v4158
    %v4367 = vpack.c.b16 %v4167, %v4163
    %v4368 = vpack.c.b16 %v4168, %v4164
    %v4369 = vpack.c.b16 %v4169, %v4165
    %v4370 = vpack.c.b16 %v4170, %v4166
    %v4371 = vpack.c.b16 %v4175, %v4171
    %v4372 = vpack.c.b16 %v4176, %v4172
    %v4373 = vpack.c.b16 %v4177, %v4173
    %v4374 = vpack.c.b16 %v4178, %v4174
    %v4375 = vpack.c.b16 %v4183, %v4179
    %v4376 = vpack.c.b16 %v4184, %v4180
    %v4377 = vpack.c.b16 %v4185, %v4181
    %v4378 = vpack.c.b16 %v4186, %v4182
    %v4379 = vpack.c.b16 %v4191, %v4187
    %v4380 = vpack.c.b16 %v4192, %v4188
    %v4381 = vpack.c.b16 %v4193, %v4189
    %v4382 = vpack.c.b16 %v4194, %v4190
    %v4383 = vpack.c.b16 %v4199, %v4195
    %v4384 = vpack.c.b16 %v4200, %v4196
    %v4385 = vpack.c.b16 %v4201, %v4197
    %v4386 = vpack.c.b16 %v4202, %v4198
    %v4387 = vpack.c.b16 %v4207, %v4203
    %v4388 = vpack.c.b16 %v4208, %v4204
    %v4389 = vpack.c.b16 %v4209, %v4205
    %v4390 = vpack.c.b16 %v4210, %v4206
    %v4391 = vpack.c.b16 %v4215, %v4211
    %v4392 = vpack.c.b16 %v4216, %v4212
    %v4393 = vpack.c.b16 %v4217, %v4213
    %v4394 = vpack.c.b16 %v4218, %v4214
    %v4395 = vpack.c.b16 %v4223, %v4219
    %v4396 = vpack.c.b16 %v4224, %v4220
    %v4397 = vpack.c.b16 %v4225, %v4221
    %v4398 = vpack.c.b16 %v4226, %v4222
    %v4399 = vpack.c.b16 %v4231, %v4227
    %v4400 = vpack.c.b16 %v4232, %v4228
    %v4401 = vpack.c.b16 %v4233, %v4229
    %v4402 = vpack.c.b16 %v4234, %v4230
    %v4403 = vpack.c.b16 %v4239, %v4235
    %v4404 = vpack.c.b16 %v4240, %v4236
    %v4405 = vpack.c.b16 %v4241, %v4237
    %v4406 = vpack.c.b16 %v4242, %v4238
    %v4407 = vpack.c.b16 %v4247, %v4243
    %v4408 = vpack.c.b16 %v4248, %v4244
    %v4409 = vpack.c.b16 %v4249, %v4245
    %v4410 = vpack.c.b16 %v4250, %v4246
    %v4411 = vpack.c.b16 %v4255, %v4251
    %v4412 = vpack.c.b16 %v4256, %v4252
    %v4413 = vpack.c.b16 %v4257, %v4253
    %v4414 = vpack.c.b16 %v4258, %v4254
    %v4415 = vpack.c.b16 %v4263, %v4259
    %v4416 = vpack.c.b16 %v4264, %v4260
    %v4417 = vpack.c.b16 %v4265, %v4261
    %v4418 = vpack.c.b16 %v4266, %v4262
    %v4419 = vpack.c.b16 %v4271, %v4267
    %v4420 = vpack.c.b16 %v4272, %v4268
    %v4421 = vpack.c.b16 %v4273, %v4269
    %v4422 = vpack.c.b16 %v4274, %v4270
    %v4423 = vpack.c.b16 %v4279, %v4275
    %v4424 = vpack.c.b16 %v4280, %v4276
    %v4425 = vpack.c.b16 %v4281, %v4277
    %v4426 = vpack.c.b16 %v4282, %v4278
    %v4427 = vpack.c.b16 %v4287, %v4283
    %v4428 = vpack.c.b16 %v4288, %v4284
    %v4429 = vpack.c.b16 %v4289, %v4285
    %v4430 = vpack.c.b16 %v4290, %v4286
    %v4431 = vpack.c.b16 %v4295, %v4291
    %v4432 = vpack.c.b16 %v4296, %v4292
    %v4433 = vpack.c.b16 %v4297, %v4293
    %v4434 = vpack.c.b16 %v4298, %v4294
    %v4435 = vpack.c.b16 %v4303, %v4299
    %v4436 = vpack.c.b16 %v4304, %v4300
    %v4437 = vpack.c.b16 %v4305, %v4301
    %v4438 = vpack.c.b16 %v4306, %v4302
    %v4439 = vpack.c.b16 %v4311, %v4307
    %v4440 = vpack.c.b16 %v4312, %v4308
    %v4441 = vpack.c.b16 %v4313, %v4309
    %v4442 = vpack.c.b16 %v4314, %v4310
    %4571 = vmatprep.subr.bf16.mxu0 %v4316
    %4572 = vmatpush1.bf16.msra.mxu0 %v4315
    %4573 = vmatprep.subr.bf16.mxu0 %v4320
    %4574 = vmatpush1.bf16.msra.mxu0 %v4319
    %4575 = vmatprep.subr.bf16.mxu0 %v4324
    %4576 = vmatpush1.bf16.msra.mxu0 %v4323
    %4577 = vmatprep.subr.bf16.mxu0 %v4328
    %4578 = vmatpush1.bf16.msra.mxu0 %v4327
    %4579 = vmatprep.subr.bf16.mxu0 %v4332
    %4580 = vmatpush1.bf16.msra.mxu0 %v4331
    %4581 = vmatprep.subr.bf16.mxu0 %v4336
    %4582 = vmatpush1.bf16.msra.mxu0 %v4335
    %4583 = vmatprep.subr.bf16.mxu0 %v4340
    %4584 = vmatpush1.bf16.msra.mxu0 %v4339
    %4585 = vmatprep.subr.bf16.mxu0 %v4344
    %4586 = vmatpush1.bf16.msra.mxu0 %v4343
    %4587 = vmatprep.subr.bf16.mxu0 %v4348
    %4588 = vmatpush1.bf16.msra.mxu0 %v4347
    %4589 = vmatprep.subr.bf16.mxu0 %v4352
    %4590 = vmatpush1.bf16.msra.mxu0 %v4351
    %4591 = vmatprep.subr.bf16.mxu0 %v4356
    %4592 = vmatpush1.bf16.msra.mxu0 %v4355
    %4593 = vmatprep.subr.bf16.mxu0 %v4360
    %4594 = vmatpush1.bf16.msra.mxu0 %v4359
    %4595 = vmatprep.subr.bf16.mxu0 %v4364
    %4596 = vmatpush1.bf16.msra.mxu0 %v4363
    %4597 = vmatprep.subr.bf16.mxu0 %v4368
    %4598 = vmatpush1.bf16.msra.mxu0 %v4367
    %4599 = vmatprep.subr.bf16.mxu0 %v4372
    %4600 = vmatpush1.bf16.msra.mxu0 %v4371
    %4601 = vmatprep.subr.bf16.mxu0 %v4376
    %4602 = vmatpush1.bf16.msra.mxu0 %v4375
    %4603 = vmatprep.mubr.bf16.mxu0 %v3800
    %4604 = vmatmul.mubr.bf16.gmra.mrb[0].mxu0 %v3799
    %v4605 = vpop.f32.mrb[0].mxu0
    %v4606 = vadd.f32 0.0, %v4605
    %v4607 = vpop.f32.mrb[0].mxu0
    %v4608 = vadd.f32 0.0, %v4607
    %v4609 = vpop.f32.mrb[0].mxu0
    %v4610 = vadd.f32 0.0, %v4609
    %v4611 = vpop.f32.mrb[0].mxu0
    %v4612 = vadd.f32 0.0, %v4611
    %4613 = vdwg.mxu0
    %4614 = vmatprep.subr.bf16.mxu0 %v4380
    %4615 = vmatpush1.bf16.msra.mxu0 %v4379
    %4616 = vmatprep.subr.bf16.mxu0 %v4384
    %4617 = vmatpush1.bf16.msra.mxu0 %v4383
    %4618 = vmatprep.subr.bf16.mxu0 %v4388
    %4619 = vmatpush1.bf16.msra.mxu0 %v4387
    %4620 = vmatprep.subr.bf16.mxu0 %v4392
    %4621 = vmatpush1.bf16.msra.mxu0 %v4391
    %4622 = vmatprep.subr.bf16.mxu0 %v4396
    %4623 = vmatpush1.bf16.msra.mxu0 %v4395
    %4624 = vmatprep.subr.bf16.mxu0 %v4400
    %4625 = vmatpush1.bf16.msra.mxu0 %v4399
    %4626 = vmatprep.subr.bf16.mxu0 %v4404
    %4627 = vmatpush1.bf16.msra.mxu0 %v4403
    %4628 = vmatprep.subr.bf16.mxu0 %v4408
    %4629 = vmatpush1.bf16.msra.mxu0 %v4407
    %4630 = vmatprep.subr.bf16.mxu0 %v4412
    %4631 = vmatpush1.bf16.msra.mxu0 %v4411
    %4632 = vmatprep.subr.bf16.mxu0 %v4416
    %4633 = vmatpush1.bf16.msra.mxu0 %v4415
    %4634 = vmatprep.subr.bf16.mxu0 %v4420
    %4635 = vmatpush1.bf16.msra.mxu0 %v4419
    %4636 = vmatprep.subr.bf16.mxu0 %v4424
    %4637 = vmatpush1.bf16.msra.mxu0 %v4423
    %4638 = vmatprep.subr.bf16.mxu0 %v4428
    %4639 = vmatpush1.bf16.msra.mxu0 %v4427
    %4640 = vmatprep.subr.bf16.mxu0 %v4432
    %4641 = vmatpush1.bf16.msra.mxu0 %v4431
    %4642 = vmatprep.subr.bf16.mxu0 %v4436
    %4643 = vmatpush1.bf16.msra.mxu0 %v4435
    %4644 = vmatprep.subr.bf16.mxu0 %v4440
    %4645 = vmatpush1.bf16.msra.mxu0 %v4439
    %4646 = vmatprep.mubr.bf16.mxu0 %v3802
    %4647 = vmatmul.mubr.bf16.gmra.mrb[0].mxu0 %v3801
    %v4648 = vpop.f32.mrb[0].mxu0
    %v4649 = vadd.f32 %v4606, %v4648
    %v4650 = vpop.f32.mrb[0].mxu0
    %v4651 = vadd.f32 %v4608, %v4650
    %v4652 = vpop.f32.mrb[0].mxu0
    %v4653 = vadd.f32 %v4610, %v4652
    %v4654 = vpop.f32.mrb[0].mxu0
    %v4655 = vadd.f32 %v4612, %v4654
    %4656 = vdwg.mxu0
    %4657 = vmatprep.subr.bf16.mxu0 %v4318
    %4658 = vmatpush1.bf16.msra.mxu0 %v4317
    %4659 = vmatprep.subr.bf16.mxu0 %v4322
    %4660 = vmatpush1.bf16.msra.mxu0 %v4321
    %4661 = vmatprep.subr.bf16.mxu0 %v4326
    %4662 = vmatpush1.bf16.msra.mxu0 %v4325
    %4663 = vmatprep.subr.bf16.mxu0 %v4330
    %4664 = vmatpush1.bf16.msra.mxu0 %v4329
    %4665 = vmatprep.subr.bf16.mxu0 %v4334
    %4666 = vmatpush1.bf16.msra.mxu0 %v4333
    %4667 = vmatprep.subr.bf16.mxu0 %v4338
    %4668 = vmatpush1.bf16.msra.mxu0 %v4337
    %4669 = vmatprep.subr.bf16.mxu0 %v4342
    %4670 = vmatpush1.bf16.msra.mxu0 %v4341
    %4671 = vmatprep.subr.bf16.mxu0 %v4346
    %4672 = vmatpush1.bf16.msra.mxu0 %v4345
    %4673 = vmatprep.subr.bf16.mxu0 %v4350
    %4674 = vmatpush1.bf16.msra.mxu0 %v4349
    %4675 = vmatprep.subr.bf16.mxu0 %v4354
    %4676 = vmatpush1.bf16.msra.mxu0 %v4353
    %4677 = vmatprep.subr.bf16.mxu0 %v4358
    %4678 = vmatpush1.bf16.msra.mxu0 %v4357
    %4679 = vmatprep.subr.bf16.mxu0 %v4362
    %4680 = vmatpush1.bf16.msra.mxu0 %v4361
    %4681 = vmatprep.subr.bf16.mxu0 %v4366
    %4682 = vmatpush1.bf16.msra.mxu0 %v4365
    %4683 = vmatprep.subr.bf16.mxu0 %v4370
    %4684 = vmatpush1.bf16.msra.mxu0 %v4369
    %4685 = vmatprep.subr.bf16.mxu0 %v4374
    %4686 = vmatpush1.bf16.msra.mxu0 %v4373
    %4687 = vmatprep.subr.bf16.mxu0 %v4378
    %4688 = vmatpush1.bf16.msra.mxu0 %v4377
    %4689 = vmatprep.mubr.bf16.mxu0 %v3800
    %4690 = vmatmul.mubr.bf16.gmra.mrb[0].mxu0 %v3799
    %v4691 = vpop.f32.mrb[0].mxu0
    %v4692 = vadd.f32 0.0, %v4691
    %v4693 = vpop.f32.mrb[0].mxu0
    %v4694 = vadd.f32 0.0, %v4693
    %v4695 = vpop.f32.mrb[0].mxu0
    %v4696 = vadd.f32 0.0, %v4695
    %v4697 = vpop.f32.mrb[0].mxu0
    %v4698 = vadd.f32 0.0, %v4697
    %4699 = vdwg.mxu0
    %4700 = vmatprep.subr.bf16.mxu0 %v4382
    %4701 = vmatpush1.bf16.msra.mxu0 %v4381
    %4702 = vmatprep.subr.bf16.mxu0 %v4386
    %4703 = vmatpush1.bf16.msra.mxu0 %v4385
    %4704 = vmatprep.subr.bf16.mxu0 %v4390
    %4705 = vmatpush1.bf16.msra.mxu0 %v4389
    %4706 = vmatprep.subr.bf16.mxu0 %v4394
    %4707 = vmatpush1.bf16.msra.mxu0 %v4393
    %4708 = vmatprep.subr.bf16.mxu0 %v4398
    %4709 = vmatpush1.bf16.msra.mxu0 %v4397
    %4710 = vmatprep.subr.bf16.mxu0 %v4402
    %4711 = vmatpush1.bf16.msra.mxu0 %v4401
    %4712 = vmatprep.subr.bf16.mxu0 %v4406
    %4713 = vmatpush1.bf16.msra.mxu0 %v4405
    %4714 = vmatprep.subr.bf16.mxu0 %v4410
    %4715 = vmatpush1.bf16.msra.mxu0 %v4409
    %4716 = vmatprep.subr.bf16.mxu0 %v4414
    %4717 = vmatpush1.bf16.msra.mxu0 %v4413
    %4718 = vmatprep.subr.bf16.mxu0 %v4418
    %4719 = vmatpush1.bf16.msra.mxu0 %v4417
    %4720 = vmatprep.subr.bf16.mxu0 %v4422
    %4721 = vmatpush1.bf16.msra.mxu0 %v4421
    %4722 = vmatprep.subr.bf16.mxu0 %v4426
    %4723 = vmatpush1.bf16.msra.mxu0 %v4425
    %4724 = vmatprep.subr.bf16.mxu0 %v4430
    %4725 = vmatpush1.bf16.msra.mxu0 %v4429
    %4726 = vmatprep.subr.bf16.mxu0 %v4434
    %4727 = vmatpush1.bf16.msra.mxu0 %v4433
    %4728 = vmatprep.subr.bf16.mxu0 %v4438
    %4729 = vmatpush1.bf16.msra.mxu0 %v4437
    %4730 = vmatprep.subr.bf16.mxu0 %v4442
    %4731 = vmatpush1.bf16.msra.mxu0 %v4441
    %4732 = vmatprep.mubr.bf16.mxu0 %v3802
    %4733 = vmatmul.mubr.bf16.gmra.mrb[0].mxu0 %v3801
    %v4734 = vpop.f32.mrb[0].mxu0
    %v4735 = vadd.f32 %v4692, %v4734
    %v4736 = vpop.f32.mrb[0].mxu0
    %v4737 = vadd.f32 %v4694, %v4736
    %v4738 = vpop.f32.mrb[0].mxu0
    %v4739 = vadd.f32 %v4696, %v4738
    %v4740 = vpop.f32.mrb[0].mxu0
    %v4741 = vadd.f32 %v4698, %v4740
    %4742 = vdwg.mxu0
    %v4744 = vlaneseq
    %v4745 = vshrl.u32 %v4744, 7
    %v4746 = vsub.s32 0, %v4745
    %v4747 = vrot.slane %v3798, %v4746
    %v4748 = vlaneseq
    %v4749 = vshrl.u32 %v4748, 7
    %v4750 = vsub.s32 1, %v4749
    %v4751 = vrot.slane %v3798, %v4750
    %v4752 = vlaneseq
    %v4753 = vshrl.u32 %v4752, 7
    %v4754 = vsub.s32 2, %v4753
    %v4755 = vrot.slane %v3798, %v4754
    %v4756 = vlaneseq
    %v4757 = vshrl.u32 %v4756, 7
    %v4758 = vsub.s32 3, %v4757
    %v4759 = vrot.slane %v3798, %v4758
    %v4764 = vadd.f32 %v4747, %v4649
    %v4765 = vadd.f32 %v4751, %v4651
    %v4766 = vadd.f32 %v4755, %v4735
    %v4767 = vadd.f32 %v4759, %v4737
    %v4768 = vadd.f32 %v4747, %v4653
    %v4769 = vadd.f32 %v4751, %v4655
    %v4770 = vadd.f32 %v4755, %v4739
    %v4771 = vadd.f32 %v4759, %v4741
    %v4772 = vpack.c.bf16 %v4768, %v4764
    %v4773 = vpack.c.bf16 %v4769, %v4765
    %v4774 = vpack.c.bf16 %v4770, %v4766
    %v4775 = vpack.c.bf16 %v4771, %v4767
    %v4780 = vunpack.c.l.b16 %v4772
    %v4781 = vunpack.c.l.b16 %v4773
    %v4782 = vunpack.c.l.b16 %v4774
    %v4783 = vunpack.c.l.b16 %v4775
    %v4784 = vunpack.c.h.b16 %v4772
    %v4785 = vunpack.c.h.b16 %v4773
    %v4786 = vunpack.c.h.b16 %v4774
    %v4787 = vunpack.c.h.b16 %v4775
    %v4788 = vpack.c.b16 %v4781, %v4780
    %v4789 = vpack.c.b16 %v4783, %v4782
    %v4790 = vpack.c.b16 %v4785, %v4784
    %v4791 = vpack.c.b16 %v4787, %v4786
    %4796 = vst [vmem:[%s9] sm:$0xff] %v4788
    %4797 = vst [vmem:[%s9 + $0x8] sm:$0xff] %v4789
    %4798 = vst [vmem:[%s9 + $0x10] sm:$0xff] %v4790
    %4799 = vst [vmem:[%s9 + $0x18] sm:$0xff] %v4791
    // Predicated region
    $region54: #{_mlp_forward_impl.1} parent=1 // pred_check
      _
    $region55: #{_mlp_forward_impl.1} parent=1 // pred_check_branch
      %4801 = sbr.rel (0) target = $region57
    $region56: #{_mlp_forward_impl.1} parent=1 // pred_region
      _
    $region57: #{_mlp_forward_impl.1} parent=1 // pred_fallthru
      _
    // Predicated region
    $region58: #{_mlp_forward_impl.1} parent=1 // pred_check
      _
    $region59: #{_mlp_forward_impl.1} parent=1 // pred_check_branch
      %4803 = sbr.rel (0) target = $region61
    $region60: #{_mlp_forward_impl.1} parent=1 // pred_region
      _
    $region61: #{_mlp_forward_impl.1} parent=1 // pred_fallthru
      _
    %4804 = vsyncpa [#allocation3], 1
    %4805 = vsyncpa [#allocation5], 1
    %4806 = vsyncpa [#allocation8], 1

</llo_original>
